<compile_context>
chip_gen: v6e
topology: v6e:2x2x1
jax: 0.10.0
libtpu: 0.0.40
codegen_flags: <defaults>
</compile_context>

<pallas_src>
import jax
import jax.numpy as jnp
from jax.experimental import pallas as pl
from jax.experimental.pallas import tpu as pltpu

LANE = 128
SUB = 8


def _rup(v, m):
    return ((v + m - 1) // m) * m


def dec_kernel(ids_ref, reprs_ref, w1_ref, b1_ref, w2_ref, b2_ref,
               w3t_ref, b3_ref, out_ref):
    nr = reprs_ref.shape[0]          # NRp (sublane-padded table rows)
    tm = out_ref.shape[1]            # batch tile

    # Fused gather + add: add = reprs[id0] + reprs[id1], as a transposed
    # one-hot matmul.  ids arrive as a lane-dense (2, TM) block, so the
    # comparisons below are sublane broadcasts (no cross-lane relayout).
    r_iota = jax.lax.broadcasted_iota(jnp.int32, (nr, tm), 0)
    onehot_t = (jnp.where(ids_ref[0:1, :] == r_iota, 1.0, 0.0)
                + jnp.where(ids_ref[1:2, :] == r_iota, 1.0, 0.0)
                ).astype(jnp.float32)                      # (NRp, TM)
    # x = onehot_t^T @ reprs -> (TM, Dp).  HIGHEST keeps the gather exact.
    x = jax.lax.dot_general(
        onehot_t, reprs_ref[...],
        dimension_numbers=(((0,), (0,)), ((), ())),
        precision=jax.lax.Precision.HIGHEST,
        preferred_element_type=jnp.float32)

    # TODO(synk): cast x/h1/h2 + weights to bf16 for the L1-L3 MXU matmuls on
    # v6e/v7x if ~1e-3 relative error is acceptable; kept f32/HIGHEST here so
    # the output matches the f32 reference to 1e-5.
    h1 = jnp.tanh(
        jnp.dot(x, w1_ref[...], precision=jax.lax.Precision.HIGHEST,
                preferred_element_type=jnp.float32) + b1_ref[...])
    h2 = jnp.tanh(
        jnp.dot(h1, w2_ref[...], precision=jax.lax.Precision.HIGHEST,
                preferred_element_type=jnp.float32) + b2_ref[...])

    # x3 = l3(x2), computed transposed: (O, TM) so the store is lane-dense.
    out_t = jax.lax.dot_general(
        w3t_ref[...], h2,
        dimension_numbers=(((1,), (1,)), ((), ())),
        precision=jax.lax.Precision.HIGHEST,
        preferred_element_type=jnp.float32)                # (O, TM)
    out_ref[...] = (out_t + b3_ref[...]).astype(out_ref.dtype)


def pad_dec_params(reprs, params):
    """One-time zero-padding of the reprs table + MLP weights to lane-dense
    shapes.  Hoisted out of the per-call hot path -- compute once and reuse."""
    w1, b1, w2, b2, w3, b3 = params
    NR, D = reprs.shape
    H = w1.shape[1]
    O = w3.shape[1]
    NRp, Dp, Hp = _rup(NR, SUB), _rup(D, LANE), _rup(H, LANE)

    padded = dict(
        reprs=jnp.zeros((NRp, Dp), jnp.float32).at[:NR, :D].set(reprs),
        w1=jnp.zeros((Dp, Hp), jnp.float32).at[:D, :H].set(w1),
        b1=jnp.zeros((1, Hp), jnp.float32).at[:, :H].set(b1),
        w2=jnp.zeros((Hp, Hp), jnp.float32).at[:H, :H].set(w2),
        b2=jnp.zeros((1, Hp), jnp.float32).at[:, :H].set(b2),
        # Final layer stored transposed (O, Hp); bias (O, 1) broadcasts over lanes.
        w3t=jnp.zeros((O, Hp), jnp.float32).at[:, :H].set(w3.T),
        b3=b3.reshape(O, 1).astype(jnp.float32),
    )
    meta = dict(NR=NR, D=D, H=H, O=O, NRp=NRp, Dp=Dp, Hp=Hp)
    return padded, meta


def _choose_tile(B):
    """Batch tile TM (multiple of 128).  Large tiles amortize per-step overhead;
    for B > 128 we force >= 2 grid steps so both v7x TensorCores get work."""
    if B <= LANE:
        TM = LANE
    else:
        TM = min(2048, max(LANE, _rup(B, 2 * LANE) // 2))
    return TM, _rup(B, TM)


def dec_forward_padded(padded, meta, x_id):
    """DEC.forward given pre-padded params.  Returns (B, O)."""
    B = x_id.shape[0]
    O = meta["O"]
    NRp, Dp, Hp = meta["NRp"], meta["Dp"], meta["Hp"]
    TM, B_pad = _choose_tile(B)

    # ids stored transposed (2, B_pad) so the streamed block is lane-dense.
    ids_t = jnp.zeros((2, B_pad), jnp.int32).at[:, :B].set(
        x_id.astype(jnp.int32).T)

    pinned = lambda shp: pl.BlockSpec(shp, lambda i: (0, 0))
    out_t = pl.pallas_call(
        dec_kernel,
        out_shape=jax.ShapeDtypeStruct((O, B_pad), jnp.float32),
        grid_spec=pltpu.PrefetchScalarGridSpec(
            num_scalar_prefetch=0,
            grid=(B_pad // TM,),
            in_specs=[
                pl.BlockSpec((2, TM), lambda i: (0, i)),   # ids tile (lane-dense)
                pinned((NRp, Dp)),                         # reprs table (resident)
                pinned((Dp, Hp)), pinned((1, Hp)),         # l1
                pinned((Hp, Hp)), pinned((1, Hp)),         # l2
                pinned((O, Hp)), pinned((O, 1)),           # l3 (transposed)
            ],
            out_specs=pl.BlockSpec((O, TM), lambda i: (0, i)),
        ),
        compiler_params=pltpu.CompilerParams(
            dimension_semantics=("parallel",)),
    )(ids_t, padded["reprs"], padded["w1"], padded["b1"],
      padded["w2"], padded["b2"], padded["w3t"], padded["b3"])

    # TODO(synk): callers that can consume the (O, B) layout directly should
    # skip this slice + transpose.
    return out_t[:, :B].T                                   # (B, O)


def dec_forward(reprs, x_id, params):
    """Convenience wrapper: pad params (every call) + run the kernel."""
    padded, meta = pad_dec_params(reprs, params)
    return dec_forward_padded(padded, meta, x_id)


def init_params(key, reprs_dim, output_dim, w):
    """nn.Linear-style init: U(-1/sqrt(fan_in), 1/sqrt(fan_in)).
    Weights stored as (in_features, out_features); biases as (1, out)."""
    ks = jax.random.split(key, 6)

    def lin(kw, kb, fan_in, fan_out):
        bound = 1.0 / jnp.sqrt(fan_in)
        W = jax.random.uniform(kw, (fan_in, fan_out), jnp.float32, -bound, bound)
        b = jax.random.uniform(kb, (1, fan_out), jnp.float32, -bound, bound)
        return W, b

    w1, b1 = lin(ks[0], ks[1], reprs_dim, w)
    w2, b2 = lin(ks[2], ks[3], w, w)
    w3, b3 = lin(ks[4], ks[5], w, output_dim)
    return (w1, b1, w2, b2, w3, b3)


def dec_reference(reprs, x_id, params):
    """Pure-JAX reference of DEC.forward (f32, HIGHEST precision)."""
    w1, b1, w2, b2, w3, b3 = params
    hp = jax.lax.Precision.HIGHEST
    add = reprs[x_id[:, 0]] + reprs[x_id[:, 1]]
    x1 = jnp.tanh(jnp.dot(add, w1, precision=hp) + b1)
    x2 = jnp.tanh(jnp.dot(x1, w2, precision=hp) + b2)
    return jnp.dot(x2, w3, precision=hp) + b3


if __name__ == "__main__":
    num_reprs = 10
    reprs_dim = 16
    hidden_w = 32
    output_dim = 8
    batch = 8

    key = jax.random.PRNGKey(0)
    k_reprs, k_id, k_params, k_id2 = jax.random.split(key, 4)

    reprs = jax.random.normal(k_reprs, (num_reprs, reprs_dim), jnp.float32)
    x_id = jax.random.randint(k_id, (batch, 2), 0, num_reprs, jnp.int32)
    params = init_params(k_params, reprs_dim, output_dim, hidden_w)

    # Hoisted one-time parameter padding; the jitted forward only streams ids.
    padded, meta = pad_dec_params(reprs, params)
    fwd = jax.jit(lambda ids: dec_forward_padded(padded, meta, ids))

    out = jax.block_until_ready(fwd(x_id))
    ref = dec_reference(reprs, x_id, params)
    assert out.shape == (batch, output_dim)
    assert jnp.allclose(out, ref, atol=1e-5, rtol=1e-5)

    # Exercise the multi-grid-step tiling path (>= 2 steps, v7x 2-TC split).
    batch2 = 300
    x_id2 = jax.random.randint(k_id2, (batch2, 2), 0, num_reprs, jnp.int32)
    out2 = jax.block_until_ready(dec_forward(reprs, x_id2, params))
    ref2 = dec_reference(reprs, x_id2, params)
    assert out2.shape == (batch2, output_dim)
    assert jnp.allclose(out2, ref2, atol=1e-5, rtol=1e-5)

    print("KERNEL_OK")
</pallas_src>

<mosaic_0001>
module attributes {stable_mosaic.version = 11 : i64} {
  func.func @dec_kernel(%arg0: i32, %arg1: memref<2x128xi32, #tpu.memory_space<vmem>>, %arg2: memref<16x128xf32, #tpu.memory_space<vmem>>, %arg3: memref<128x128xf32, #tpu.memory_space<vmem>>, %arg4: memref<1x128xf32, #tpu.memory_space<vmem>>, %arg5: memref<128x128xf32, #tpu.memory_space<vmem>>, %arg6: memref<1x128xf32, #tpu.memory_space<vmem>>, %arg7: memref<8x128xf32, #tpu.memory_space<vmem>>, %arg8: memref<8x1xf32, #tpu.memory_space<vmem>>, %arg9: memref<8x128xf32, #tpu.memory_space<vmem>>) attributes {dimension_semantics = [#tpu.dimension_semantics<parallel>], iteration_bounds = array<i64: 1>, scalar_prefetch = 0 : i64, scratch_operands = 0 : i64, tpu.core_type = #tpu.core_type<tc>, window_params = [{transform_indices = @transform_0, window_bounds = array<i64: 2, 128>}, {pipeline_mode = #tpu.pipeline_mode<synchronous>, transform_indices = @transform_1, window_bounds = array<i64: 16, 128>}, {pipeline_mode = #tpu.pipeline_mode<synchronous>, transform_indices = @transform_2, window_bounds = array<i64: 128, 128>}, {pipeline_mode = #tpu.pipeline_mode<synchronous>, transform_indices = @transform_3, window_bounds = array<i64: 1, 128>}, {pipeline_mode = #tpu.pipeline_mode<synchronous>, transform_indices = @transform_4, window_bounds = array<i64: 128, 128>}, {pipeline_mode = #tpu.pipeline_mode<synchronous>, transform_indices = @transform_5, window_bounds = array<i64: 1, 128>}, {pipeline_mode = #tpu.pipeline_mode<synchronous>, transform_indices = @transform_6, window_bounds = array<i64: 8, 128>}, {pipeline_mode = #tpu.pipeline_mode<synchronous>, transform_indices = @transform_7, window_bounds = array<i64: 8, 1>}, {transform_indices = @transform_8, window_bounds = array<i64: 8, 128>}]} {
    %0 = tpu.iota {dimensions = array<i32: 0>} : vector<16x128xi32>
    %c0 = arith.constant 0 : index
    %c0_0 = arith.constant 0 : index
    %1 = vector.load %arg1[%c0, %c0_0] : memref<2x128xi32, #tpu.memory_space<vmem>>, vector<1x128xi32>
    %2 = vector.broadcast %1 : vector<1x128xi32> to vector<16x128xi32>
    %3 = arith.cmpi eq, %2, %0 : vector<16x128xi32>
    %cst = arith.constant 1.000000e+00 : f32
    %cst_1 = arith.constant 0.000000e+00 : f32
    %4 = vector.broadcast %cst : f32 to vector<16x128xf32>
    %5 = vector.broadcast %cst_1 : f32 to vector<16x128xf32>
    %6 = arith.select %3, %4, %5 : vector<16x128xi1>, vector<16x128xf32>
    %c1 = arith.constant 1 : index
    %c0_2 = arith.constant 0 : index
    %7 = vector.load %arg1[%c1, %c0_2] : memref<2x128xi32, #tpu.memory_space<vmem>>, vector<1x128xi32>
    %8 = vector.broadcast %7 : vector<1x128xi32> to vector<16x128xi32>
    %9 = arith.cmpi eq, %8, %0 : vector<16x128xi32>
    %cst_3 = arith.constant 1.000000e+00 : f32
    %cst_4 = arith.constant 0.000000e+00 : f32
    %10 = vector.broadcast %cst_3 : f32 to vector<16x128xf32>
    %11 = vector.broadcast %cst_4 : f32 to vector<16x128xf32>
    %12 = arith.select %9, %10, %11 : vector<16x128xi1>, vector<16x128xf32>
    %13 = arith.addf %6, %12 : vector<16x128xf32>
    %c0_5 = arith.constant 0 : index
    %c0_6 = arith.constant 0 : index
    %14 = vector.load %arg2[%c0_5, %c0_6] : memref<16x128xf32, #tpu.memory_space<vmem>>, vector<16x128xf32>
    %cst_7 = arith.constant dense<0.000000e+00> : vector<128x128xf32>
    %15 = tpu.matmul %13, %14, %cst_7 {dimension_numbers = #tpu.dot_dimension_numbers<[0], [0], [1], [1], [0, 1, 1, 1], [], []>, precision = #tpu.contract_precision<fp32>} : vector<16x128xf32>, vector<16x128xf32>, vector<128x128xf32> -> vector<128x128xf32>
    %c0_8 = arith.constant 0 : index
    %c0_9 = arith.constant 0 : index
    %16 = vector.load %arg3[%c0_8, %c0_9] : memref<128x128xf32, #tpu.memory_space<vmem>>, vector<128x128xf32>
    %cst_10 = arith.constant dense<0.000000e+00> : vector<128x128xf32>
    %17 = tpu.matmul %15, %16, %cst_10 {dimension_numbers = #tpu.dot_dimension_numbers<[1], [0], [0], [1], [0, 0, 1, 1], [], []>, precision = #tpu.contract_precision<fp32>} : vector<128x128xf32>, vector<128x128xf32>, vector<128x128xf32> -> vector<128x128xf32>
    %c0_11 = arith.constant 0 : index
    %c0_12 = arith.constant 0 : index
    %18 = vector.load %arg4[%c0_11, %c0_12] : memref<1x128xf32, #tpu.memory_space<vmem>>, vector<1x128xf32>
    %19 = vector.broadcast %18 : vector<1x128xf32> to vector<128x128xf32>
    %20 = arith.addf %17, %19 : vector<128x128xf32>
    %21 = math.tanh %20 : vector<128x128xf32>
    %c0_13 = arith.constant 0 : index
    %c0_14 = arith.constant 0 : index
    %22 = vector.load %arg5[%c0_13, %c0_14] : memref<128x128xf32, #tpu.memory_space<vmem>>, vector<128x128xf32>
    %cst_15 = arith.constant dense<0.000000e+00> : vector<128x128xf32>
    %23 = tpu.matmul %21, %22, %cst_15 {dimension_numbers = #tpu.dot_dimension_numbers<[1], [0], [0], [1], [0, 0, 1, 1], [], []>, precision = #tpu.contract_precision<fp32>} : vector<128x128xf32>, vector<128x128xf32>, vector<128x128xf32> -> vector<128x128xf32>
    %c0_16 = arith.constant 0 : index
    %c0_17 = arith.constant 0 : index
    %24 = vector.load %arg6[%c0_16, %c0_17] : memref<1x128xf32, #tpu.memory_space<vmem>>, vector<1x128xf32>
    %25 = vector.broadcast %24 : vector<1x128xf32> to vector<128x128xf32>
    %26 = arith.addf %23, %25 : vector<128x128xf32>
    %27 = math.tanh %26 : vector<128x128xf32>
    %c0_18 = arith.constant 0 : index
    %c0_19 = arith.constant 0 : index
    %28 = vector.load %arg7[%c0_18, %c0_19] : memref<8x128xf32, #tpu.memory_space<vmem>>, vector<8x128xf32>
    %cst_20 = arith.constant dense<0.000000e+00> : vector<8x128xf32>
    %29 = tpu.matmul %28, %27, %cst_20 {dimension_numbers = #tpu.dot_dimension_numbers<[1], [1], [0], [0], [0, 0, 1, 0], [], []>, precision = #tpu.contract_precision<fp32>} : vector<8x128xf32>, vector<128x128xf32>, vector<8x128xf32> -> vector<8x128xf32>
    %c0_21 = arith.constant 0 : index
    %c0_22 = arith.constant 0 : index
    %30 = vector.load %arg8[%c0_21, %c0_22] : memref<8x1xf32, #tpu.memory_space<vmem>>, vector<8x1xf32>
    %31 = vector.broadcast %30 : vector<8x1xf32> to vector<8x128xf32>
    %32 = arith.addf %29, %31 : vector<8x128xf32>
    %c0_23 = arith.constant 0 : index
    %c0_24 = arith.constant 0 : index
    %33 = vector.load %arg9[%c0_23, %c0_24] : memref<8x128xf32, #tpu.memory_space<vmem>>, vector<8x128xf32>
    tpu.vector_store %arg9[%c0_23, %c0_24], %32 {strides = array<i32>} : memref<8x128xf32, #tpu.memory_space<vmem>>, vector<8x128xf32>,
    return
  }
  func.func @transform_0(%arg0: i32) -> (i32, i32) {
    %c0_i32 = arith.constant 0 : i32
    %c0_i32_0 = arith.constant 0 : i32
    return %c0_i32, %arg0 : i32, i32
  }
  func.func @transform_1(%arg0: i32) -> (i32, i32) {
    %c0_i32 = arith.constant 0 : i32
    %c0_i32_0 = arith.constant 0 : i32
    %c0_i32_1 = arith.constant 0 : i32
    return %c0_i32, %c0_i32_0 : i32, i32
  }
  func.func @transform_2(%arg0: i32) -> (i32, i32) {
    %c0_i32 = arith.constant 0 : i32
    %c0_i32_0 = arith.constant 0 : i32
    %c0_i32_1 = arith.constant 0 : i32
    return %c0_i32, %c0_i32_0 : i32, i32
  }
  func.func @transform_3(%arg0: i32) -> (i32, i32) {
    %c0_i32 = arith.constant 0 : i32
    %c0_i32_0 = arith.constant 0 : i32
    %c0_i32_1 = arith.constant 0 : i32
    return %c0_i32, %c0_i32_0 : i32, i32
  }
  func.func @transform_4(%arg0: i32) -> (i32, i32) {
    %c0_i32 = arith.constant 0 : i32
    %c0_i32_0 = arith.constant 0 : i32
    %c0_i32_1 = arith.constant 0 : i32
    return %c0_i32, %c0_i32_0 : i32, i32
  }
  func.func @transform_5(%arg0: i32) -> (i32, i32) {
    %c0_i32 = arith.constant 0 : i32
    %c0_i32_0 = arith.constant 0 : i32
    %c0_i32_1 = arith.constant 0 : i32
    return %c0_i32, %c0_i32_0 : i32, i32
  }
  func.func @transform_6(%arg0: i32) -> (i32, i32) {
    %c0_i32 = arith.constant 0 : i32
    %c0_i32_0 = arith.constant 0 : i32
    %c0_i32_1 = arith.constant 0 : i32
    return %c0_i32, %c0_i32_0 : i32, i32
  }
  func.func @transform_7(%arg0: i32) -> (i32, i32) {
    %c0_i32 = arith.constant 0 : i32
    %c0_i32_0 = arith.constant 0 : i32
    %c0_i32_1 = arith.constant 0 : i32
    return %c0_i32, %c0_i32_0 : i32, i32
  }
  func.func @transform_8(%arg0: i32) -> (i32, i32) {
    %c0_i32 = arith.constant 0 : i32
    %c0_i32_0 = arith.constant 0 : i32
    return %c0_i32, %arg0 : i32, i32
  }
}

</mosaic_0001>

<llo_original>
// kernel: _lambda_.1
$region0: #{_lambda_.1}
  #allocation0 [shape = 'u32[]', space=smem, size = 0x4, offset = 0x4, fixed_abs, tag = 'smem constant byte address 0x4 - core index']
  #allocation1 [shape = 'u32[144,128]{1,0:T(1,128)}', space=vmem, size = 0x12000, scoped, tag = 'internal scratch']
  %s0 = inlined_call_operand.vmem [shape: s32[2,128], index: 0, kind: input, shape index: {}]
  %s1 = inlined_call_operand.hbm [shape: f32[16,128], index: 1, kind: input, shape index: {}]
  %s2 = inlined_call_operand.hbm [shape: f32[128,128], index: 2, kind: input, shape index: {}]
  %s3 = inlined_call_operand.hbm [shape: f32[1,128], index: 3, kind: input, shape index: {}]
  %s4 = inlined_call_operand.hbm [shape: f32[128,128], index: 4, kind: input, shape index: {}]
  %s5 = inlined_call_operand.vmem [shape: f32[1,128], index: 5, kind: input, shape index: {}]
  %s6 = inlined_call_operand.vmem [shape: f32[8,128], index: 6, kind: input, shape index: {}]
  %s7 = inlined_call_operand.vmem [shape: f32[8,1], index: 7, kind: input, shape index: {}]
  %s8 = inlined_call_operand.vmem [shape: f32[8,128], index: 8, kind: output, shape index: {}]
  %s9 = sld [smem:[#allocation0]]
  $region58: #{_lambda_.1} parent=0
    _
  %s11 = ssub.s32 1, %s9
  %s12 = scalar_select 0, %s11, %s9
  $region1: #{_lambda_.1} parent=0
    #allocation2 [shape = 'u8[8192]{0}', space=vmem, size = 0x2000, scoped, tag = 'input window, operand 1, single buffered']
    #allocation3 [shape = 's32[1]{0}', space=sflag, size = 0x4, scoped, tag = 'scoped memory for _lambda_.1']
    #allocation4 [shape = 'u8[65536]{0}', space=vmem, size = 0x10000, scoped, tag = 'input window, operand 2, single buffered']
    #allocation5 [shape = 's32[1]{0}', space=sflag, size = 0x4, scoped, tag = 'scoped memory for _lambda_.1']
    #allocation6 [shape = 'u8[512]{0}', space=vmem, size = 0x400, scoped, tag = 'input window, operand 3, single buffered']
    #allocation7 [shape = 'u8[65536]{0}', space=vmem, size = 0x10000, scoped, tag = 'input window, operand 4, single buffered']
    #allocation8 [shape = 's32[1]{0}', space=sflag, size = 0x4, scoped, tag = 'scoped memory for _lambda_.1']
    %13 = vsyncpa [#allocation3], 0
    %14 = vsyncpa [#allocation5], 0
    %15 = vsyncpa [#allocation8], 0
    // Predicated region
    $region2: #{_lambda_.1} parent=1 // pred_check
      _
    $region3: #{_lambda_.1} parent=1 // pred_check_branch
      %17 = sbr.rel (0) target = $region5
    $region4: #{_lambda_.1} parent=1 // pred_region
      _
    $region5: #{_lambda_.1} parent=1 // pred_fallthru
      _
    // Predicated region
    $region6: #{_lambda_.1} parent=1 // pred_check
      _
    $region7: #{_lambda_.1} parent=1 // pred_check_branch
      %19 = sbr.rel (0) target = $region9
    $region8: #{_lambda_.1} parent=1 // pred_region
      %s21 = ssub.s32 256, 256
      %22 = vsyncadd [#allocation3], %s21
      %s23 = sshll.u32 [#allocation2], 4
      %s24 = int_to_ptr.vmem [resolvable:$true] %s23
      %29 = dma.hbm_to_vmem [thread:$0]  %s1, 256, %s24, [#allocation3], 128, 128, 8
    $region9: #{_lambda_.1} parent=1 // pred_fallthru
      _
    // Predicated region
    $region10: #{_lambda_.1} parent=1 // pred_check
      _
    $region11: #{_lambda_.1} parent=1 // pred_check_branch
      %31 = sbr.rel (0) target = $region13
    $region12: #{_lambda_.1} parent=1 // pred_region
      %s33 = ssub.s32 2048, 2048
      %34 = vsyncadd [#allocation5], %s33
      %s35 = sshll.u32 [#allocation4], 4
      %s36 = int_to_ptr.vmem [resolvable:$true] %s35
      %41 = dma.hbm_to_vmem [thread:$0]  %s2, 2048, %s36, [#allocation5], 128, 128, 8
    $region13: #{_lambda_.1} parent=1 // pred_fallthru
      _
    // Predicated region
    $region14: #{_lambda_.1} parent=1 // pred_check
      _
    $region15: #{_lambda_.1} parent=1 // pred_check_branch
      %43 = sbr.rel (0) target = $region17
    $region16: #{_lambda_.1} parent=1 // pred_region
      %s45 = ssub.s32 16, 16
      %46 = vsyncadd [#allocation5], %s45
      %s48 = sshll.u32 [#allocation6], 4
      %s49 = int_to_ptr.vmem [resolvable:$true] %s48
      %51 = dma.hbm_to_vmem [thread:$0]  %s3, 16, %s49, [#allocation5]
    $region17: #{_lambda_.1} parent=1 // pred_fallthru
      _
    // Predicated region
    $region18: #{_lambda_.1} parent=1 // pred_check
      _
    $region19: #{_lambda_.1} parent=1 // pred_check_branch
      %53 = sbr.rel (0) target = $region21
    $region20: #{_lambda_.1} parent=1 // pred_region
      %s55 = ssub.s32 2048, 2048
      %56 = vsyncadd [#allocation8], %s55
      %s57 = sshll.u32 [#allocation7], 4
      %s58 = int_to_ptr.vmem [resolvable:$true] %s57
      %63 = dma.hbm_to_vmem [thread:$0]  %s4, 2048, %s58, [#allocation8], 128, 128, 8
    $region21: #{_lambda_.1} parent=1 // pred_fallthru
      _
    // Predicated region
    $region22: #{_lambda_.1} parent=1 // pred_check
      _
    $region23: #{_lambda_.1} parent=1 // pred_check_branch
      %65 = sbr.rel (0) target = $region25
    $region24: #{_lambda_.1} parent=1 // pred_region
      _
    $region25: #{_lambda_.1} parent=1 // pred_fallthru
      _
    // Predicated region
    $region26: #{_lambda_.1} parent=1 // pred_check
      _
    $region27: #{_lambda_.1} parent=1 // pred_check_branch
      %67 = sbr.rel (0) target = $region29
    $region28: #{_lambda_.1} parent=1 // pred_region
      _
    $region29: #{_lambda_.1} parent=1 // pred_fallthru
      _
    // Predicated region
    $region30: #{_lambda_.1} parent=1 // pred_check
      _
    $region31: #{_lambda_.1} parent=1 // pred_check_branch
      %69 = sbr.rel (0) target = $region33
    $region32: #{_lambda_.1} parent=1 // pred_region
      _
    $region33: #{_lambda_.1} parent=1 // pred_fallthru
      _
    // Predicated region
    $region34: #{_lambda_.1} parent=1 // pred_check
      _
    $region35: #{_lambda_.1} parent=1 // pred_check_branch
      %71 = sbr.rel (0) target = $region37
    $region36: #{_lambda_.1} parent=1 // pred_region
      %72 = dma.done [#allocation3], 256
    $region37: #{_lambda_.1} parent=1 // pred_fallthru
      _
    // Predicated region
    $region38: #{_lambda_.1} parent=1 // pred_check
      _
    $region39: #{_lambda_.1} parent=1 // pred_check_branch
      %74 = sbr.rel (0) target = $region41
    $region40: #{_lambda_.1} parent=1 // pred_region
      %75 = dma.done [#allocation5], 2048
    $region41: #{_lambda_.1} parent=1 // pred_fallthru
      _
    // Predicated region
    $region42: #{_lambda_.1} parent=1 // pred_check
      _
    $region43: #{_lambda_.1} parent=1 // pred_check_branch
      %77 = sbr.rel (0) target = $region45
    $region44: #{_lambda_.1} parent=1 // pred_region
      %78 = dma.done [#allocation5], 16
    $region45: #{_lambda_.1} parent=1 // pred_fallthru
      _
    // Predicated region
    $region46: #{_lambda_.1} parent=1 // pred_check
      _
    $region47: #{_lambda_.1} parent=1 // pred_check_branch
      %80 = sbr.rel (0) target = $region49
    $region48: #{_lambda_.1} parent=1 // pred_region
      %81 = dma.done [#allocation8], 2048
    $region49: #{_lambda_.1} parent=1 // pred_fallthru
      _
    %v82 = vlaneseq
    %v83 = vshrl.u32 %v82, 7
    %v84 = vadd.s32 %v83, 8
    %v85 = vld [vmem:[%s0] sm:$0x1]
    %v86 = vlaneseq
    %v87 = vshrl.u32 %v86, 7
    %v88 = vsub.s32 0, %v87
    %v89 = vrot.slane %v85, %v88
    %vm90 = vcmp.eq.s32.totalorder %v89, %v83
    %vm91 = vcmp.eq.s32.totalorder %v89, %v84
    %v92 = vsel %vm90, 1.0, 0.0
    %v93 = vsel %vm91, 1.0, 0.0
    %v94 = vld [vmem:[%s0 + $0x1] sm:$0x1]
    %v95 = vlaneseq
    %v96 = vshrl.u32 %v95, 7
    %v97 = vsub.s32 0, %v96
    %v98 = vrot.slane %v94, %v97
    %vm99 = vcmp.eq.s32.totalorder %v98, %v83
    %vm100 = vcmp.eq.s32.totalorder %v98, %v84
    %v101 = vsel %vm99, 1.0, 0.0
    %v102 = vsel %vm100, 1.0, 0.0
    %v103 = vadd.f32 %v92, %v101
    %v104 = vadd.f32 %v93, %v102
    %v105 = vld [vmem:[#allocation2] sm:$0xff]
    %v106 = vld [vmem:[#allocation2 + $0x8] sm:$0xff]
    %107 = vxpose.xlu0.b32.start [1/16] %v103, 128
    %108 = vxpose.xlu0.b32.cont [2/16] %v104, 128
    %109 = vxpose.xlu0.b32.cont [3/16] 0.0, 128
    %110 = vxpose.xlu0.b32.cont [4/16] 0.0, 128
    %111 = vxpose.xlu0.b32.cont [5/16] 0.0, 128
    %112 = vxpose.xlu0.b32.cont [6/16] 0.0, 128
    %113 = vxpose.xlu0.b32.cont [7/16] 0.0, 128
    %114 = vxpose.xlu0.b32.cont [8/16] 0.0, 128
    %115 = vxpose.xlu0.b32.cont [9/16] 0.0, 128
    %116 = vxpose.xlu0.b32.cont [10/16] 0.0, 128
    %117 = vxpose.xlu0.b32.cont [11/16] 0.0, 128
    %118 = vxpose.xlu0.b32.cont [12/16] 0.0, 128
    %119 = vxpose.xlu0.b32.cont [13/16] 0.0, 128
    %120 = vxpose.xlu0.b32.cont [14/16] 0.0, 128
    %121 = vxpose.xlu0.b32.cont [15/16] 0.0, 128
    %122 = vxpose.xlu0.b32.end [16/16] 0.0, 128
    %v123 = vpop.trf.xlu0
    %v124 = vpop.trf.xlu0
    %v125 = vpop.trf.xlu0
    %v126 = vpop.trf.xlu0
    %v127 = vpop.trf.xlu0
    %v128 = vpop.trf.xlu0
    %v129 = vpop.trf.xlu0
    %v130 = vpop.trf.xlu0
    %v131 = vpop.trf.xlu0
    %v132 = vpop.trf.xlu0
    %v133 = vpop.trf.xlu0
    %v134 = vpop.trf.xlu0
    %v135 = vpop.trf.xlu0
    %v136 = vpop.trf.xlu0
    %v137 = vpop.trf.xlu0
    %v138 = vpop.trf.xlu0
    %vm139 = vcmask 130048
    %v141 = vsel %vm139, %v123, 0
    %v144 = vsel %vm139, %v124, 0
    %v147 = vsel %vm139, %v125, 0
    %v150 = vsel %vm139, %v126, 0
    %v153 = vsel %vm139, %v127, 0
    %v156 = vsel %vm139, %v128, 0
    %v159 = vsel %vm139, %v129, 0
    %v162 = vsel %vm139, %v130, 0
    %v165 = vsel %vm139, %v131, 0
    %v168 = vsel %vm139, %v132, 0
    %v171 = vsel %vm139, %v133, 0
    %v174 = vsel %vm139, %v134, 0
    %v177 = vsel %vm139, %v135, 0
    %v180 = vsel %vm139, %v136, 0
    %v183 = vsel %vm139, %v137, 0
    %v186 = vsel %vm139, %v138, 0
    %188 = vmatprep.subr.mxu0 0.0
    %189 = vmatpush1.msra.mxu0 0.0
    %190 = vmatprep.subr.mxu0 0.0
    %191 = vmatpush1.msra.mxu0 0.0
    %192 = vmatprep.subr.mxu0 0.0
    %193 = vmatpush1.msra.mxu0 0.0
    %194 = vmatprep.subr.mxu0 0.0
    %195 = vmatpush1.msra.mxu0 0.0
    %196 = vmatprep.subr.mxu0 0.0
    %197 = vmatpush1.msra.mxu0 0.0
    %198 = vmatprep.subr.mxu0 0.0
    %199 = vmatpush1.msra.mxu0 0.0
    %200 = vmatprep.subr.mxu0 0.0
    %201 = vmatpush1.msra.mxu0 0.0
    %202 = vmatprep.subr.mxu0 0.0
    %203 = vmatpush1.msra.mxu0 0.0
    %204 = vmatprep.subr.mxu0 0.0
    %205 = vmatpush1.msra.mxu0 0.0
    %206 = vmatprep.subr.mxu0 0.0
    %207 = vmatpush1.msra.mxu0 0.0
    %208 = vmatprep.subr.mxu0 0.0
    %209 = vmatpush1.msra.mxu0 0.0
    %210 = vmatprep.subr.mxu0 0.0
    %211 = vmatpush1.msra.mxu0 0.0
    %212 = vmatprep.subr.mxu0 0.0
    %213 = vmatpush1.msra.mxu0 0.0
    %214 = vmatprep.subr.mxu0 0.0
    %215 = vmatpush1.msra.mxu0 0.0
    %216 = vmatprep.subr.mxu0 0.0
    %v217 = vand.u32 %v106, 4294901760
    %218 = vmatpush1.msra.mxu0 %v217
    %219 = vmatprep.subr.mxu0 0.0
    %v220 = vand.u32 %v105, 4294901760
    %221 = vmatpush1.msra.mxu0 %v220
    %222 = vmatprep.subr.mxu0 0.0
    %223 = vmatpush2.msra.mxu0 0.0
    %224 = vmatprep.subr.mxu0 0.0
    %225 = vmatpush2.msra.mxu0 0.0
    %226 = vmatprep.subr.mxu0 0.0
    %227 = vmatpush2.msra.mxu0 0.0
    %228 = vmatprep.subr.mxu0 0.0
    %229 = vmatpush2.msra.mxu0 0.0
    %230 = vmatprep.subr.mxu0 0.0
    %231 = vmatpush2.msra.mxu0 0.0
    %232 = vmatprep.subr.mxu0 0.0
    %233 = vmatpush2.msra.mxu0 0.0
    %234 = vmatprep.subr.mxu0 0.0
    %235 = vmatpush2.msra.mxu0 0.0
    %236 = vmatprep.subr.mxu0 0.0
    %237 = vmatpush2.msra.mxu0 0.0
    %238 = vmatprep.subr.mxu0 0.0
    %239 = vmatpush2.msra.mxu0 0.0
    %240 = vmatprep.subr.mxu0 0.0
    %241 = vmatpush2.msra.mxu0 0.0
    %242 = vmatprep.subr.mxu0 0.0
    %243 = vmatpush2.msra.mxu0 0.0
    %244 = vmatprep.subr.mxu0 0.0
    %245 = vmatpush2.msra.mxu0 0.0
    %246 = vmatprep.subr.mxu0 0.0
    %247 = vmatpush2.msra.mxu0 0.0
    %248 = vmatprep.subr.mxu0 0.0
    %249 = vmatpush2.msra.mxu0 0.0
    %250 = vmatprep.subr.mxu0 0.0
    %251 = vmatpush2.msra.mxu0 0.0
    %252 = vmatprep.subr.mxu0 0.0
    %253 = vmatpush2.msra.mxu0 0.0
    %254 = vmatprep.mubr.f32.mxu0 0.0
    %v255 = vand.u32 %v141, 4294901760
    %v256 = vsub.f32 %v141, %v255
    %v257 = vand.u32 %v256, 4294901760
    %v258 = vsub.f32 %v256, %v257
    %v259 = vand.u32 %v258, 4294901760
    %260 = vmatmul.mubr.f32.gmra.mxu0 %v259
    %v261 = vpop.f32.mrf.mxu0
    %v262 = vadd.f32 0.0, %v261
    %v263 = vpop.f32.mrf.mxu0
    %264 = vmatprep.mubr.f32.mxu0 0.0
    %v265 = vand.u32 %v144, 4294901760
    %v266 = vsub.f32 %v144, %v265
    %v267 = vand.u32 %v266, 4294901760
    %v268 = vsub.f32 %v266, %v267
    %v269 = vand.u32 %v268, 4294901760
    %270 = vmatmul.mubr.f32.gmra.mxu0 %v269
    %v271 = vpop.f32.mrf.mxu0
    %v272 = vadd.f32 0.0, %v271
    %v273 = vpop.f32.mrf.mxu0
    %274 = vmatprep.mubr.f32.mxu0 0.0
    %v275 = vand.u32 %v147, 4294901760
    %v276 = vsub.f32 %v147, %v275
    %v277 = vand.u32 %v276, 4294901760
    %v278 = vsub.f32 %v276, %v277
    %v279 = vand.u32 %v278, 4294901760
    %280 = vmatmul.mubr.f32.gmra.mxu0 %v279
    %v281 = vpop.f32.mrf.mxu0
    %v282 = vadd.f32 0.0, %v281
    %v283 = vpop.f32.mrf.mxu0
    %284 = vmatprep.mubr.f32.mxu0 0.0
    %v285 = vand.u32 %v150, 4294901760
    %v286 = vsub.f32 %v150, %v285
    %v287 = vand.u32 %v286, 4294901760
    %v288 = vsub.f32 %v286, %v287
    %v289 = vand.u32 %v288, 4294901760
    %290 = vmatmul.mubr.f32.gmra.mxu0 %v289
    %v291 = vpop.f32.mrf.mxu0
    %v292 = vadd.f32 0.0, %v291
    %v293 = vpop.f32.mrf.mxu0
    %294 = vmatprep.mubr.f32.mxu0 0.0
    %v295 = vand.u32 %v153, 4294901760
    %v296 = vsub.f32 %v153, %v295
    %v297 = vand.u32 %v296, 4294901760
    %v298 = vsub.f32 %v296, %v297
    %v299 = vand.u32 %v298, 4294901760
    %300 = vmatmul.mubr.f32.gmra.mxu0 %v299
    %v301 = vpop.f32.mrf.mxu0
    %v302 = vadd.f32 0.0, %v301
    %v303 = vpop.f32.mrf.mxu0
    %304 = vmatprep.mubr.f32.mxu0 0.0
    %v305 = vand.u32 %v156, 4294901760
    %v306 = vsub.f32 %v156, %v305
    %v307 = vand.u32 %v306, 4294901760
    %v308 = vsub.f32 %v306, %v307
    %v309 = vand.u32 %v308, 4294901760
    %310 = vmatmul.mubr.f32.gmra.mxu0 %v309
    %v311 = vpop.f32.mrf.mxu0
    %v312 = vadd.f32 0.0, %v311
    %v313 = vpop.f32.mrf.mxu0
    %314 = vmatprep.mubr.f32.mxu0 0.0
    %v315 = vand.u32 %v159, 4294901760
    %v316 = vsub.f32 %v159, %v315
    %v317 = vand.u32 %v316, 4294901760
    %v318 = vsub.f32 %v316, %v317
    %v319 = vand.u32 %v318, 4294901760
    %320 = vmatmul.mubr.f32.gmra.mxu0 %v319
    %v321 = vpop.f32.mrf.mxu0
    %v322 = vadd.f32 0.0, %v321
    %v323 = vpop.f32.mrf.mxu0
    %324 = vmatprep.mubr.f32.mxu0 0.0
    %v325 = vand.u32 %v162, 4294901760
    %v326 = vsub.f32 %v162, %v325
    %v327 = vand.u32 %v326, 4294901760
    %v328 = vsub.f32 %v326, %v327
    %v329 = vand.u32 %v328, 4294901760
    %330 = vmatmul.mubr.f32.gmra.mxu0 %v329
    %v331 = vpop.f32.mrf.mxu0
    %v332 = vadd.f32 0.0, %v331
    %v333 = vpop.f32.mrf.mxu0
    %334 = vmatprep.mubr.f32.mxu0 0.0
    %v335 = vand.u32 %v165, 4294901760
    %v336 = vsub.f32 %v165, %v335
    %v337 = vand.u32 %v336, 4294901760
    %v338 = vsub.f32 %v336, %v337
    %v339 = vand.u32 %v338, 4294901760
    %340 = vmatmul.mubr.f32.gmra.mxu0 %v339
    %v341 = vpop.f32.mrf.mxu0
    %v342 = vadd.f32 0.0, %v341
    %v343 = vpop.f32.mrf.mxu0
    %344 = vmatprep.mubr.f32.mxu0 0.0
    %v345 = vand.u32 %v168, 4294901760
    %v346 = vsub.f32 %v168, %v345
    %v347 = vand.u32 %v346, 4294901760
    %v348 = vsub.f32 %v346, %v347
    %v349 = vand.u32 %v348, 4294901760
    %350 = vmatmul.mubr.f32.gmra.mxu0 %v349
    %v351 = vpop.f32.mrf.mxu0
    %v352 = vadd.f32 0.0, %v351
    %v353 = vpop.f32.mrf.mxu0
    %354 = vmatprep.mubr.f32.mxu0 0.0
    %v355 = vand.u32 %v171, 4294901760
    %v356 = vsub.f32 %v171, %v355
    %v357 = vand.u32 %v356, 4294901760
    %v358 = vsub.f32 %v356, %v357
    %v359 = vand.u32 %v358, 4294901760
    %360 = vmatmul.mubr.f32.gmra.mxu0 %v359
    %v361 = vpop.f32.mrf.mxu0
    %v362 = vadd.f32 0.0, %v361
    %v363 = vpop.f32.mrf.mxu0
    %364 = vmatprep.mubr.f32.mxu0 0.0
    %v365 = vand.u32 %v174, 4294901760
    %v366 = vsub.f32 %v174, %v365
    %v367 = vand.u32 %v366, 4294901760
    %v368 = vsub.f32 %v366, %v367
    %v369 = vand.u32 %v368, 4294901760
    %370 = vmatmul.mubr.f32.gmra.mxu0 %v369
    %v371 = vpop.f32.mrf.mxu0
    %v372 = vadd.f32 0.0, %v371
    %v373 = vpop.f32.mrf.mxu0
    %374 = vmatprep.mubr.f32.mxu0 0.0
    %v375 = vand.u32 %v177, 4294901760
    %v376 = vsub.f32 %v177, %v375
    %v377 = vand.u32 %v376, 4294901760
    %v378 = vsub.f32 %v376, %v377
    %v379 = vand.u32 %v378, 4294901760
    %380 = vmatmul.mubr.f32.gmra.mxu0 %v379
    %v381 = vpop.f32.mrf.mxu0
    %v382 = vadd.f32 0.0, %v381
    %v383 = vpop.f32.mrf.mxu0
    %384 = vmatprep.mubr.f32.mxu0 0.0
    %v385 = vand.u32 %v180, 4294901760
    %v386 = vsub.f32 %v180, %v385
    %v387 = vand.u32 %v386, 4294901760
    %v388 = vsub.f32 %v386, %v387
    %v389 = vand.u32 %v388, 4294901760
    %390 = vmatmul.mubr.f32.gmra.mxu0 %v389
    %v391 = vpop.f32.mrf.mxu0
    %v392 = vadd.f32 0.0, %v391
    %v393 = vpop.f32.mrf.mxu0
    %394 = vmatprep.mubr.f32.mxu0 0.0
    %v395 = vand.u32 %v183, 4294901760
    %v396 = vsub.f32 %v183, %v395
    %v397 = vand.u32 %v396, 4294901760
    %v398 = vsub.f32 %v396, %v397
    %v399 = vand.u32 %v398, 4294901760
    %400 = vmatmul.mubr.f32.gmra.mxu0 %v399
    %v401 = vpop.f32.mrf.mxu0
    %v402 = vadd.f32 0.0, %v401
    %v403 = vpop.f32.mrf.mxu0
    %404 = vmatprep.mubr.f32.mxu0 0.0
    %v405 = vand.u32 %v186, 4294901760
    %v406 = vsub.f32 %v186, %v405
    %v407 = vand.u32 %v406, 4294901760
    %v408 = vsub.f32 %v406, %v407
    %v409 = vand.u32 %v408, 4294901760
    %410 = vmatmul.mubr.f32.gmra.mxu0 %v409
    %v411 = vpop.f32.mrf.mxu0
    %v412 = vadd.f32 0.0, %v411
    %v413 = vpop.f32.mrf.mxu0
    %414 = vdwg.mxu0
    %415 = vmatprep.subr.mxu0 0.0
    %416 = vmatpush1.msra.mxu0 0.0
    %417 = vmatprep.subr.mxu0 0.0
    %418 = vmatpush1.msra.mxu0 0.0
    %419 = vmatprep.subr.mxu0 0.0
    %420 = vmatpush1.msra.mxu0 0.0
    %421 = vmatprep.subr.mxu0 0.0
    %422 = vmatpush1.msra.mxu0 0.0
    %423 = vmatprep.subr.mxu0 0.0
    %424 = vmatpush1.msra.mxu0 0.0
    %425 = vmatprep.subr.mxu0 0.0
    %426 = vmatpush1.msra.mxu0 0.0
    %427 = vmatprep.subr.mxu0 0.0
    %428 = vmatpush1.msra.mxu0 0.0
    %429 = vmatprep.subr.mxu0 0.0
    %430 = vmatpush1.msra.mxu0 0.0
    %431 = vmatprep.subr.mxu0 0.0
    %432 = vmatpush1.msra.mxu0 0.0
    %433 = vmatprep.subr.mxu0 0.0
    %434 = vmatpush1.msra.mxu0 0.0
    %435 = vmatprep.subr.mxu0 0.0
    %436 = vmatpush1.msra.mxu0 0.0
    %437 = vmatprep.subr.mxu0 0.0
    %438 = vmatpush1.msra.mxu0 0.0
    %439 = vmatprep.subr.mxu0 0.0
    %440 = vmatpush1.msra.mxu0 0.0
    %441 = vmatprep.subr.mxu0 0.0
    %442 = vmatpush1.msra.mxu0 0.0
    %443 = vmatprep.subr.mxu0 0.0
    %v444 = vand.u32 %v106, 4294901760
    %v445 = vsub.f32 %v106, %v444
    %v446 = vand.u32 %v445, 4294901760
    %v447 = vsub.f32 %v445, %v446
    %v448 = vand.u32 %v447, 4294901760
    %449 = vmatpush1.msra.mxu0 %v448
    %450 = vmatprep.subr.mxu0 0.0
    %v451 = vand.u32 %v105, 4294901760
    %v452 = vsub.f32 %v105, %v451
    %v453 = vand.u32 %v452, 4294901760
    %v454 = vsub.f32 %v452, %v453
    %v455 = vand.u32 %v454, 4294901760
    %456 = vmatpush1.msra.mxu0 %v455
    %457 = vmatprep.subr.mxu0 0.0
    %458 = vmatpush2.msra.mxu0 0.0
    %459 = vmatprep.subr.mxu0 0.0
    %460 = vmatpush2.msra.mxu0 0.0
    %461 = vmatprep.subr.mxu0 0.0
    %462 = vmatpush2.msra.mxu0 0.0
    %463 = vmatprep.subr.mxu0 0.0
    %464 = vmatpush2.msra.mxu0 0.0
    %465 = vmatprep.subr.mxu0 0.0
    %466 = vmatpush2.msra.mxu0 0.0
    %467 = vmatprep.subr.mxu0 0.0
    %468 = vmatpush2.msra.mxu0 0.0
    %469 = vmatprep.subr.mxu0 0.0
    %470 = vmatpush2.msra.mxu0 0.0
    %471 = vmatprep.subr.mxu0 0.0
    %472 = vmatpush2.msra.mxu0 0.0
    %473 = vmatprep.subr.mxu0 0.0
    %474 = vmatpush2.msra.mxu0 0.0
    %475 = vmatprep.subr.mxu0 0.0
    %476 = vmatpush2.msra.mxu0 0.0
    %477 = vmatprep.subr.mxu0 0.0
    %478 = vmatpush2.msra.mxu0 0.0
    %479 = vmatprep.subr.mxu0 0.0
    %480 = vmatpush2.msra.mxu0 0.0
    %481 = vmatprep.subr.mxu0 0.0
    %482 = vmatpush2.msra.mxu0 0.0
    %483 = vmatprep.subr.mxu0 0.0
    %484 = vmatpush2.msra.mxu0 0.0
    %485 = vmatprep.subr.mxu0 0.0
    %486 = vmatpush2.msra.mxu0 0.0
    %487 = vmatprep.subr.mxu0 0.0
    %488 = vmatpush2.msra.mxu0 0.0
    %489 = vmatprep.mubr.f32.mxu0 0.0
    %v490 = vand.u32 %v141, 4294901760
    %491 = vmatmul.mubr.f32.gmra.mxu0 %v490
    %v492 = vpop.f32.mrf.mxu0
    %v493 = vadd.f32 %v262, %v492
    %v494 = vpop.f32.mrf.mxu0
    %495 = vmatprep.mubr.f32.mxu0 0.0
    %v496 = vand.u32 %v144, 4294901760
    %497 = vmatmul.mubr.f32.gmra.mxu0 %v496
    %v498 = vpop.f32.mrf.mxu0
    %v499 = vadd.f32 %v272, %v498
    %v500 = vpop.f32.mrf.mxu0
    %501 = vmatprep.mubr.f32.mxu0 0.0
    %v502 = vand.u32 %v147, 4294901760
    %503 = vmatmul.mubr.f32.gmra.mxu0 %v502
    %v504 = vpop.f32.mrf.mxu0
    %v505 = vadd.f32 %v282, %v504
    %v506 = vpop.f32.mrf.mxu0
    %507 = vmatprep.mubr.f32.mxu0 0.0
    %v508 = vand.u32 %v150, 4294901760
    %509 = vmatmul.mubr.f32.gmra.mxu0 %v508
    %v510 = vpop.f32.mrf.mxu0
    %v511 = vadd.f32 %v292, %v510
    %v512 = vpop.f32.mrf.mxu0
    %513 = vmatprep.mubr.f32.mxu0 0.0
    %v514 = vand.u32 %v153, 4294901760
    %515 = vmatmul.mubr.f32.gmra.mxu0 %v514
    %v516 = vpop.f32.mrf.mxu0
    %v517 = vadd.f32 %v302, %v516
    %v518 = vpop.f32.mrf.mxu0
    %519 = vmatprep.mubr.f32.mxu0 0.0
    %v520 = vand.u32 %v156, 4294901760
    %521 = vmatmul.mubr.f32.gmra.mxu0 %v520
    %v522 = vpop.f32.mrf.mxu0
    %v523 = vadd.f32 %v312, %v522
    %v524 = vpop.f32.mrf.mxu0
    %525 = vmatprep.mubr.f32.mxu0 0.0
    %v526 = vand.u32 %v159, 4294901760
    %527 = vmatmul.mubr.f32.gmra.mxu0 %v526
    %v528 = vpop.f32.mrf.mxu0
    %v529 = vadd.f32 %v322, %v528
    %v530 = vpop.f32.mrf.mxu0
    %531 = vmatprep.mubr.f32.mxu0 0.0
    %v532 = vand.u32 %v162, 4294901760
    %533 = vmatmul.mubr.f32.gmra.mxu0 %v532
    %v534 = vpop.f32.mrf.mxu0
    %v535 = vadd.f32 %v332, %v534
    %v536 = vpop.f32.mrf.mxu0
    %537 = vmatprep.mubr.f32.mxu0 0.0
    %v538 = vand.u32 %v165, 4294901760
    %539 = vmatmul.mubr.f32.gmra.mxu0 %v538
    %v540 = vpop.f32.mrf.mxu0
    %v541 = vadd.f32 %v342, %v540
    %v542 = vpop.f32.mrf.mxu0
    %543 = vmatprep.mubr.f32.mxu0 0.0
    %v544 = vand.u32 %v168, 4294901760
    %545 = vmatmul.mubr.f32.gmra.mxu0 %v544
    %v546 = vpop.f32.mrf.mxu0
    %v547 = vadd.f32 %v352, %v546
    %v548 = vpop.f32.mrf.mxu0
    %549 = vmatprep.mubr.f32.mxu0 0.0
    %v550 = vand.u32 %v171, 4294901760
    %551 = vmatmul.mubr.f32.gmra.mxu0 %v550
    %v552 = vpop.f32.mrf.mxu0
    %v553 = vadd.f32 %v362, %v552
    %v554 = vpop.f32.mrf.mxu0
    %555 = vmatprep.mubr.f32.mxu0 0.0
    %v556 = vand.u32 %v174, 4294901760
    %557 = vmatmul.mubr.f32.gmra.mxu0 %v556
    %v558 = vpop.f32.mrf.mxu0
    %v559 = vadd.f32 %v372, %v558
    %v560 = vpop.f32.mrf.mxu0
    %561 = vmatprep.mubr.f32.mxu0 0.0
    %v562 = vand.u32 %v177, 4294901760
    %563 = vmatmul.mubr.f32.gmra.mxu0 %v562
    %v564 = vpop.f32.mrf.mxu0
    %v565 = vadd.f32 %v382, %v564
    %v566 = vpop.f32.mrf.mxu0
    %567 = vmatprep.mubr.f32.mxu0 0.0
    %v568 = vand.u32 %v180, 4294901760
    %569 = vmatmul.mubr.f32.gmra.mxu0 %v568
    %v570 = vpop.f32.mrf.mxu0
    %v571 = vadd.f32 %v392, %v570
    %v572 = vpop.f32.mrf.mxu0
    %573 = vmatprep.mubr.f32.mxu0 0.0
    %v574 = vand.u32 %v183, 4294901760
    %575 = vmatmul.mubr.f32.gmra.mxu0 %v574
    %v576 = vpop.f32.mrf.mxu0
    %v577 = vadd.f32 %v402, %v576
    %v578 = vpop.f32.mrf.mxu0
    %579 = vmatprep.mubr.f32.mxu0 0.0
    %v580 = vand.u32 %v186, 4294901760
    %581 = vmatmul.mubr.f32.gmra.mxu0 %v580
    %v582 = vpop.f32.mrf.mxu0
    %v583 = vadd.f32 %v412, %v582
    %v584 = vpop.f32.mrf.mxu0
    %585 = vdwg.mxu0
    %586 = vmatprep.subr.mxu0 0.0
    %587 = vmatpush1.msra.mxu0 0.0
    %588 = vmatprep.subr.mxu0 0.0
    %589 = vmatpush1.msra.mxu0 0.0
    %590 = vmatprep.subr.mxu0 0.0
    %591 = vmatpush1.msra.mxu0 0.0
    %592 = vmatprep.subr.mxu0 0.0
    %593 = vmatpush1.msra.mxu0 0.0
    %594 = vmatprep.subr.mxu0 0.0
    %595 = vmatpush1.msra.mxu0 0.0
    %596 = vmatprep.subr.mxu0 0.0
    %597 = vmatpush1.msra.mxu0 0.0
    %598 = vmatprep.subr.mxu0 0.0
    %599 = vmatpush1.msra.mxu0 0.0
    %600 = vmatprep.subr.mxu0 0.0
    %601 = vmatpush1.msra.mxu0 0.0
    %602 = vmatprep.subr.mxu0 0.0
    %603 = vmatpush1.msra.mxu0 0.0
    %604 = vmatprep.subr.mxu0 0.0
    %605 = vmatpush1.msra.mxu0 0.0
    %606 = vmatprep.subr.mxu0 0.0
    %607 = vmatpush1.msra.mxu0 0.0
    %608 = vmatprep.subr.mxu0 0.0
    %609 = vmatpush1.msra.mxu0 0.0
    %610 = vmatprep.subr.mxu0 0.0
    %611 = vmatpush1.msra.mxu0 0.0
    %612 = vmatprep.subr.mxu0 0.0
    %613 = vmatpush1.msra.mxu0 0.0
    %614 = vmatprep.subr.mxu0 0.0
    %v615 = vand.u32 %v106, 4294901760
    %v616 = vsub.f32 %v106, %v615
    %617 = vmatpush1.msra.mxu0 %v616
    %618 = vmatprep.subr.mxu0 0.0
    %v619 = vand.u32 %v105, 4294901760
    %v620 = vsub.f32 %v105, %v619
    %621 = vmatpush1.msra.mxu0 %v620
    %622 = vmatprep.subr.mxu0 0.0
    %623 = vmatpush2.msra.mxu0 0.0
    %624 = vmatprep.subr.mxu0 0.0
    %625 = vmatpush2.msra.mxu0 0.0
    %626 = vmatprep.subr.mxu0 0.0
    %627 = vmatpush2.msra.mxu0 0.0
    %628 = vmatprep.subr.mxu0 0.0
    %629 = vmatpush2.msra.mxu0 0.0
    %630 = vmatprep.subr.mxu0 0.0
    %631 = vmatpush2.msra.mxu0 0.0
    %632 = vmatprep.subr.mxu0 0.0
    %633 = vmatpush2.msra.mxu0 0.0
    %634 = vmatprep.subr.mxu0 0.0
    %635 = vmatpush2.msra.mxu0 0.0
    %636 = vmatprep.subr.mxu0 0.0
    %637 = vmatpush2.msra.mxu0 0.0
    %638 = vmatprep.subr.mxu0 0.0
    %639 = vmatpush2.msra.mxu0 0.0
    %640 = vmatprep.subr.mxu0 0.0
    %641 = vmatpush2.msra.mxu0 0.0
    %642 = vmatprep.subr.mxu0 0.0
    %643 = vmatpush2.msra.mxu0 0.0
    %644 = vmatprep.subr.mxu0 0.0
    %645 = vmatpush2.msra.mxu0 0.0
    %646 = vmatprep.subr.mxu0 0.0
    %647 = vmatpush2.msra.mxu0 0.0
    %648 = vmatprep.subr.mxu0 0.0
    %649 = vmatpush2.msra.mxu0 0.0
    %650 = vmatprep.subr.mxu0 0.0
    %651 = vmatpush2.msra.mxu0 0.0
    %652 = vmatprep.subr.mxu0 0.0
    %653 = vmatpush2.msra.mxu0 0.0
    %654 = vmatprep.mubr.f32.mxu0 0.0
    %v655 = vand.u32 %v141, 4294901760
    %v656 = vsub.f32 %v141, %v655
    %657 = vmatmul.mubr.f32.gmra.mxu0 %v656
    %v658 = vpop.f32.mrf.mxu0
    %v659 = vadd.f32 %v493, %v658
    %v660 = vpop.f32.mrf.mxu0
    %661 = vmatprep.mubr.f32.mxu0 0.0
    %v662 = vand.u32 %v144, 4294901760
    %v663 = vsub.f32 %v144, %v662
    %664 = vmatmul.mubr.f32.gmra.mxu0 %v663
    %v665 = vpop.f32.mrf.mxu0
    %v666 = vadd.f32 %v499, %v665
    %v667 = vpop.f32.mrf.mxu0
    %668 = vmatprep.mubr.f32.mxu0 0.0
    %v669 = vand.u32 %v147, 4294901760
    %v670 = vsub.f32 %v147, %v669
    %671 = vmatmul.mubr.f32.gmra.mxu0 %v670
    %v672 = vpop.f32.mrf.mxu0
    %v673 = vadd.f32 %v505, %v672
    %v674 = vpop.f32.mrf.mxu0
    %675 = vmatprep.mubr.f32.mxu0 0.0
    %v676 = vand.u32 %v150, 4294901760
    %v677 = vsub.f32 %v150, %v676
    %678 = vmatmul.mubr.f32.gmra.mxu0 %v677
    %v679 = vpop.f32.mrf.mxu0
    %v680 = vadd.f32 %v511, %v679
    %v681 = vpop.f32.mrf.mxu0
    %682 = vmatprep.mubr.f32.mxu0 0.0
    %v683 = vand.u32 %v153, 4294901760
    %v684 = vsub.f32 %v153, %v683
    %685 = vmatmul.mubr.f32.gmra.mxu0 %v684
    %v686 = vpop.f32.mrf.mxu0
    %v687 = vadd.f32 %v517, %v686
    %v688 = vpop.f32.mrf.mxu0
    %689 = vmatprep.mubr.f32.mxu0 0.0
    %v690 = vand.u32 %v156, 4294901760
    %v691 = vsub.f32 %v156, %v690
    %692 = vmatmul.mubr.f32.gmra.mxu0 %v691
    %v693 = vpop.f32.mrf.mxu0
    %v694 = vadd.f32 %v523, %v693
    %v695 = vpop.f32.mrf.mxu0
    %696 = vmatprep.mubr.f32.mxu0 0.0
    %v697 = vand.u32 %v159, 4294901760
    %v698 = vsub.f32 %v159, %v697
    %699 = vmatmul.mubr.f32.gmra.mxu0 %v698
    %v700 = vpop.f32.mrf.mxu0
    %v701 = vadd.f32 %v529, %v700
    %v702 = vpop.f32.mrf.mxu0
    %703 = vmatprep.mubr.f32.mxu0 0.0
    %v704 = vand.u32 %v162, 4294901760
    %v705 = vsub.f32 %v162, %v704
    %706 = vmatmul.mubr.f32.gmra.mxu0 %v705
    %v707 = vpop.f32.mrf.mxu0
    %v708 = vadd.f32 %v535, %v707
    %v709 = vpop.f32.mrf.mxu0
    %710 = vmatprep.mubr.f32.mxu0 0.0
    %v711 = vand.u32 %v165, 4294901760
    %v712 = vsub.f32 %v165, %v711
    %713 = vmatmul.mubr.f32.gmra.mxu0 %v712
    %v714 = vpop.f32.mrf.mxu0
    %v715 = vadd.f32 %v541, %v714
    %v716 = vpop.f32.mrf.mxu0
    %717 = vmatprep.mubr.f32.mxu0 0.0
    %v718 = vand.u32 %v168, 4294901760
    %v719 = vsub.f32 %v168, %v718
    %720 = vmatmul.mubr.f32.gmra.mxu0 %v719
    %v721 = vpop.f32.mrf.mxu0
    %v722 = vadd.f32 %v547, %v721
    %v723 = vpop.f32.mrf.mxu0
    %724 = vmatprep.mubr.f32.mxu0 0.0
    %v725 = vand.u32 %v171, 4294901760
    %v726 = vsub.f32 %v171, %v725
    %727 = vmatmul.mubr.f32.gmra.mxu0 %v726
    %v728 = vpop.f32.mrf.mxu0
    %v729 = vadd.f32 %v553, %v728
    %v730 = vpop.f32.mrf.mxu0
    %731 = vmatprep.mubr.f32.mxu0 0.0
    %v732 = vand.u32 %v174, 4294901760
    %v733 = vsub.f32 %v174, %v732
    %734 = vmatmul.mubr.f32.gmra.mxu0 %v733
    %v735 = vpop.f32.mrf.mxu0
    %v736 = vadd.f32 %v559, %v735
    %v737 = vpop.f32.mrf.mxu0
    %738 = vmatprep.mubr.f32.mxu0 0.0
    %v739 = vand.u32 %v177, 4294901760
    %v740 = vsub.f32 %v177, %v739
    %741 = vmatmul.mubr.f32.gmra.mxu0 %v740
    %v742 = vpop.f32.mrf.mxu0
    %v743 = vadd.f32 %v565, %v742
    %v744 = vpop.f32.mrf.mxu0
    %745 = vmatprep.mubr.f32.mxu0 0.0
    %v746 = vand.u32 %v180, 4294901760
    %v747 = vsub.f32 %v180, %v746
    %748 = vmatmul.mubr.f32.gmra.mxu0 %v747
    %v749 = vpop.f32.mrf.mxu0
    %v750 = vadd.f32 %v571, %v749
    %v751 = vpop.f32.mrf.mxu0
    %752 = vmatprep.mubr.f32.mxu0 0.0
    %v753 = vand.u32 %v183, 4294901760
    %v754 = vsub.f32 %v183, %v753
    %755 = vmatmul.mubr.f32.gmra.mxu0 %v754
    %v756 = vpop.f32.mrf.mxu0
    %v757 = vadd.f32 %v577, %v756
    %v758 = vpop.f32.mrf.mxu0
    %759 = vmatprep.mubr.f32.mxu0 0.0
    %v760 = vand.u32 %v186, 4294901760
    %v761 = vsub.f32 %v186, %v760
    %762 = vmatmul.mubr.f32.gmra.mxu0 %v761
    %v763 = vpop.f32.mrf.mxu0
    %v764 = vadd.f32 %v583, %v763
    %v765 = vpop.f32.mrf.mxu0
    %766 = vdwg.mxu0
    %767 = vmatprep.subr.mxu0 0.0
    %768 = vmatpush1.msra.mxu0 0.0
    %769 = vmatprep.subr.mxu0 0.0
    %770 = vmatpush1.msra.mxu0 0.0
    %771 = vmatprep.subr.mxu0 0.0
    %772 = vmatpush1.msra.mxu0 0.0
    %773 = vmatprep.subr.mxu0 0.0
    %774 = vmatpush1.msra.mxu0 0.0
    %775 = vmatprep.subr.mxu0 0.0
    %776 = vmatpush1.msra.mxu0 0.0
    %777 = vmatprep.subr.mxu0 0.0
    %778 = vmatpush1.msra.mxu0 0.0
    %779 = vmatprep.subr.mxu0 0.0
    %780 = vmatpush1.msra.mxu0 0.0
    %781 = vmatprep.subr.mxu0 0.0
    %782 = vmatpush1.msra.mxu0 0.0
    %783 = vmatprep.subr.mxu0 0.0
    %784 = vmatpush1.msra.mxu0 0.0
    %785 = vmatprep.subr.mxu0 0.0
    %786 = vmatpush1.msra.mxu0 0.0
    %787 = vmatprep.subr.mxu0 0.0
    %788 = vmatpush1.msra.mxu0 0.0
    %789 = vmatprep.subr.mxu0 0.0
    %790 = vmatpush1.msra.mxu0 0.0
    %791 = vmatprep.subr.mxu0 0.0
    %792 = vmatpush1.msra.mxu0 0.0
    %793 = vmatprep.subr.mxu0 0.0
    %794 = vmatpush1.msra.mxu0 0.0
    %795 = vmatprep.subr.mxu0 0.0
    %v796 = vand.u32 %v106, 4294901760
    %797 = vmatpush1.msra.mxu0 %v796
    %798 = vmatprep.subr.mxu0 0.0
    %v799 = vand.u32 %v105, 4294901760
    %800 = vmatpush1.msra.mxu0 %v799
    %801 = vmatprep.subr.mxu0 0.0
    %802 = vmatpush2.msra.mxu0 0.0
    %803 = vmatprep.subr.mxu0 0.0
    %804 = vmatpush2.msra.mxu0 0.0
    %805 = vmatprep.subr.mxu0 0.0
    %806 = vmatpush2.msra.mxu0 0.0
    %807 = vmatprep.subr.mxu0 0.0
    %808 = vmatpush2.msra.mxu0 0.0
    %809 = vmatprep.subr.mxu0 0.0
    %810 = vmatpush2.msra.mxu0 0.0
    %811 = vmatprep.subr.mxu0 0.0
    %812 = vmatpush2.msra.mxu0 0.0
    %813 = vmatprep.subr.mxu0 0.0
    %814 = vmatpush2.msra.mxu0 0.0
    %815 = vmatprep.subr.mxu0 0.0
    %816 = vmatpush2.msra.mxu0 0.0
    %817 = vmatprep.subr.mxu0 0.0
    %818 = vmatpush2.msra.mxu0 0.0
    %819 = vmatprep.subr.mxu0 0.0
    %820 = vmatpush2.msra.mxu0 0.0
    %821 = vmatprep.subr.mxu0 0.0
    %822 = vmatpush2.msra.mxu0 0.0
    %823 = vmatprep.subr.mxu0 0.0
    %824 = vmatpush2.msra.mxu0 0.0
    %825 = vmatprep.subr.mxu0 0.0
    %826 = vmatpush2.msra.mxu0 0.0
    %827 = vmatprep.subr.mxu0 0.0
    %828 = vmatpush2.msra.mxu0 0.0
    %829 = vmatprep.subr.mxu0 0.0
    %830 = vmatpush2.msra.mxu0 0.0
    %831 = vmatprep.subr.mxu0 0.0
    %832 = vmatpush2.msra.mxu0 0.0
    %833 = vmatprep.mubr.f32.mxu0 0.0
    %v834 = vand.u32 %v141, 4294901760
    %v835 = vsub.f32 %v141, %v834
    %v836 = vand.u32 %v835, 4294901760
    %837 = vmatmul.mubr.f32.gmra.mxu0 %v836
    %v838 = vpop.f32.mrf.mxu0
    %v839 = vadd.f32 %v659, %v838
    %v840 = vpop.f32.mrf.mxu0
    %841 = vmatprep.mubr.f32.mxu0 0.0
    %v842 = vand.u32 %v144, 4294901760
    %v843 = vsub.f32 %v144, %v842
    %v844 = vand.u32 %v843, 4294901760
    %845 = vmatmul.mubr.f32.gmra.mxu0 %v844
    %v846 = vpop.f32.mrf.mxu0
    %v847 = vadd.f32 %v666, %v846
    %v848 = vpop.f32.mrf.mxu0
    %849 = vmatprep.mubr.f32.mxu0 0.0
    %v850 = vand.u32 %v147, 4294901760
    %v851 = vsub.f32 %v147, %v850
    %v852 = vand.u32 %v851, 4294901760
    %853 = vmatmul.mubr.f32.gmra.mxu0 %v852
    %v854 = vpop.f32.mrf.mxu0
    %v855 = vadd.f32 %v673, %v854
    %v856 = vpop.f32.mrf.mxu0
    %857 = vmatprep.mubr.f32.mxu0 0.0
    %v858 = vand.u32 %v150, 4294901760
    %v859 = vsub.f32 %v150, %v858
    %v860 = vand.u32 %v859, 4294901760
    %861 = vmatmul.mubr.f32.gmra.mxu0 %v860
    %v862 = vpop.f32.mrf.mxu0
    %v863 = vadd.f32 %v680, %v862
    %v864 = vpop.f32.mrf.mxu0
    %865 = vmatprep.mubr.f32.mxu0 0.0
    %v866 = vand.u32 %v153, 4294901760
    %v867 = vsub.f32 %v153, %v866
    %v868 = vand.u32 %v867, 4294901760
    %869 = vmatmul.mubr.f32.gmra.mxu0 %v868
    %v870 = vpop.f32.mrf.mxu0
    %v871 = vadd.f32 %v687, %v870
    %v872 = vpop.f32.mrf.mxu0
    %873 = vmatprep.mubr.f32.mxu0 0.0
    %v874 = vand.u32 %v156, 4294901760
    %v875 = vsub.f32 %v156, %v874
    %v876 = vand.u32 %v875, 4294901760
    %877 = vmatmul.mubr.f32.gmra.mxu0 %v876
    %v878 = vpop.f32.mrf.mxu0
    %v879 = vadd.f32 %v694, %v878
    %v880 = vpop.f32.mrf.mxu0
    %881 = vmatprep.mubr.f32.mxu0 0.0
    %v882 = vand.u32 %v159, 4294901760
    %v883 = vsub.f32 %v159, %v882
    %v884 = vand.u32 %v883, 4294901760
    %885 = vmatmul.mubr.f32.gmra.mxu0 %v884
    %v886 = vpop.f32.mrf.mxu0
    %v887 = vadd.f32 %v701, %v886
    %v888 = vpop.f32.mrf.mxu0
    %889 = vmatprep.mubr.f32.mxu0 0.0
    %v890 = vand.u32 %v162, 4294901760
    %v891 = vsub.f32 %v162, %v890
    %v892 = vand.u32 %v891, 4294901760
    %893 = vmatmul.mubr.f32.gmra.mxu0 %v892
    %v894 = vpop.f32.mrf.mxu0
    %v895 = vadd.f32 %v708, %v894
    %v896 = vpop.f32.mrf.mxu0
    %897 = vmatprep.mubr.f32.mxu0 0.0
    %v898 = vand.u32 %v165, 4294901760
    %v899 = vsub.f32 %v165, %v898
    %v900 = vand.u32 %v899, 4294901760
    %901 = vmatmul.mubr.f32.gmra.mxu0 %v900
    %v902 = vpop.f32.mrf.mxu0
    %v903 = vadd.f32 %v715, %v902
    %v904 = vpop.f32.mrf.mxu0
    %905 = vmatprep.mubr.f32.mxu0 0.0
    %v906 = vand.u32 %v168, 4294901760
    %v907 = vsub.f32 %v168, %v906
    %v908 = vand.u32 %v907, 4294901760
    %909 = vmatmul.mubr.f32.gmra.mxu0 %v908
    %v910 = vpop.f32.mrf.mxu0
    %v911 = vadd.f32 %v722, %v910
    %v912 = vpop.f32.mrf.mxu0
    %913 = vmatprep.mubr.f32.mxu0 0.0
    %v914 = vand.u32 %v171, 4294901760
    %v915 = vsub.f32 %v171, %v914
    %v916 = vand.u32 %v915, 4294901760
    %917 = vmatmul.mubr.f32.gmra.mxu0 %v916
    %v918 = vpop.f32.mrf.mxu0
    %v919 = vadd.f32 %v729, %v918
    %v920 = vpop.f32.mrf.mxu0
    %921 = vmatprep.mubr.f32.mxu0 0.0
    %v922 = vand.u32 %v174, 4294901760
    %v923 = vsub.f32 %v174, %v922
    %v924 = vand.u32 %v923, 4294901760
    %925 = vmatmul.mubr.f32.gmra.mxu0 %v924
    %v926 = vpop.f32.mrf.mxu0
    %v927 = vadd.f32 %v736, %v926
    %v928 = vpop.f32.mrf.mxu0
    %929 = vmatprep.mubr.f32.mxu0 0.0
    %v930 = vand.u32 %v177, 4294901760
    %v931 = vsub.f32 %v177, %v930
    %v932 = vand.u32 %v931, 4294901760
    %933 = vmatmul.mubr.f32.gmra.mxu0 %v932
    %v934 = vpop.f32.mrf.mxu0
    %v935 = vadd.f32 %v743, %v934
    %v936 = vpop.f32.mrf.mxu0
    %937 = vmatprep.mubr.f32.mxu0 0.0
    %v938 = vand.u32 %v180, 4294901760
    %v939 = vsub.f32 %v180, %v938
    %v940 = vand.u32 %v939, 4294901760
    %941 = vmatmul.mubr.f32.gmra.mxu0 %v940
    %v942 = vpop.f32.mrf.mxu0
    %v943 = vadd.f32 %v750, %v942
    %v944 = vpop.f32.mrf.mxu0
    %945 = vmatprep.mubr.f32.mxu0 0.0
    %v946 = vand.u32 %v183, 4294901760
    %v947 = vsub.f32 %v183, %v946
    %v948 = vand.u32 %v947, 4294901760
    %949 = vmatmul.mubr.f32.gmra.mxu0 %v948
    %v950 = vpop.f32.mrf.mxu0
    %v951 = vadd.f32 %v757, %v950
    %v952 = vpop.f32.mrf.mxu0
    %953 = vmatprep.mubr.f32.mxu0 0.0
    %v954 = vand.u32 %v186, 4294901760
    %v955 = vsub.f32 %v186, %v954
    %v956 = vand.u32 %v955, 4294901760
    %957 = vmatmul.mubr.f32.gmra.mxu0 %v956
    %v958 = vpop.f32.mrf.mxu0
    %v959 = vadd.f32 %v764, %v958
    %v960 = vpop.f32.mrf.mxu0
    %961 = vdwg.mxu0
    %962 = vmatprep.subr.mxu0 0.0
    %963 = vmatpush1.msra.mxu0 0.0
    %964 = vmatprep.subr.mxu0 0.0
    %965 = vmatpush1.msra.mxu0 0.0
    %966 = vmatprep.subr.mxu0 0.0
    %967 = vmatpush1.msra.mxu0 0.0
    %968 = vmatprep.subr.mxu0 0.0
    %969 = vmatpush1.msra.mxu0 0.0
    %970 = vmatprep.subr.mxu0 0.0
    %971 = vmatpush1.msra.mxu0 0.0
    %972 = vmatprep.subr.mxu0 0.0
    %973 = vmatpush1.msra.mxu0 0.0
    %974 = vmatprep.subr.mxu0 0.0
    %975 = vmatpush1.msra.mxu0 0.0
    %976 = vmatprep.subr.mxu0 0.0
    %977 = vmatpush1.msra.mxu0 0.0
    %978 = vmatprep.subr.mxu0 0.0
    %979 = vmatpush1.msra.mxu0 0.0
    %980 = vmatprep.subr.mxu0 0.0
    %981 = vmatpush1.msra.mxu0 0.0
    %982 = vmatprep.subr.mxu0 0.0
    %983 = vmatpush1.msra.mxu0 0.0
    %984 = vmatprep.subr.mxu0 0.0
    %985 = vmatpush1.msra.mxu0 0.0
    %986 = vmatprep.subr.mxu0 0.0
    %987 = vmatpush1.msra.mxu0 0.0
    %988 = vmatprep.subr.mxu0 0.0
    %989 = vmatpush1.msra.mxu0 0.0
    %990 = vmatprep.subr.mxu0 0.0
    %v991 = vand.u32 %v106, 4294901760
    %v992 = vsub.f32 %v106, %v991
    %v993 = vand.u32 %v992, 4294901760
    %994 = vmatpush1.msra.mxu0 %v993
    %995 = vmatprep.subr.mxu0 0.0
    %v996 = vand.u32 %v105, 4294901760
    %v997 = vsub.f32 %v105, %v996
    %v998 = vand.u32 %v997, 4294901760
    %999 = vmatpush1.msra.mxu0 %v998
    %1000 = vmatprep.subr.mxu0 0.0
    %1001 = vmatpush2.msra.mxu0 0.0
    %1002 = vmatprep.subr.mxu0 0.0
    %1003 = vmatpush2.msra.mxu0 0.0
    %1004 = vmatprep.subr.mxu0 0.0
    %1005 = vmatpush2.msra.mxu0 0.0
    %1006 = vmatprep.subr.mxu0 0.0
    %1007 = vmatpush2.msra.mxu0 0.0
    %1008 = vmatprep.subr.mxu0 0.0
    %1009 = vmatpush2.msra.mxu0 0.0
    %1010 = vmatprep.subr.mxu0 0.0
    %1011 = vmatpush2.msra.mxu0 0.0
    %1012 = vmatprep.subr.mxu0 0.0
    %1013 = vmatpush2.msra.mxu0 0.0
    %1014 = vmatprep.subr.mxu0 0.0
    %1015 = vmatpush2.msra.mxu0 0.0
    %1016 = vmatprep.subr.mxu0 0.0
    %1017 = vmatpush2.msra.mxu0 0.0
    %1018 = vmatprep.subr.mxu0 0.0
    %1019 = vmatpush2.msra.mxu0 0.0
    %1020 = vmatprep.subr.mxu0 0.0
    %1021 = vmatpush2.msra.mxu0 0.0
    %1022 = vmatprep.subr.mxu0 0.0
    %1023 = vmatpush2.msra.mxu0 0.0
    %1024 = vmatprep.subr.mxu0 0.0
    %1025 = vmatpush2.msra.mxu0 0.0
    %1026 = vmatprep.subr.mxu0 0.0
    %1027 = vmatpush2.msra.mxu0 0.0
    %1028 = vmatprep.subr.mxu0 0.0
    %1029 = vmatpush2.msra.mxu0 0.0
    %1030 = vmatprep.subr.mxu0 0.0
    %1031 = vmatpush2.msra.mxu0 0.0
    %1032 = vmatprep.mubr.f32.mxu0 0.0
    %v1033 = vand.u32 %v141, 4294901760
    %1034 = vmatmul.mubr.f32.gmra.mxu0 %v1033
    %v1035 = vpop.f32.mrf.mxu0
    %v1036 = vadd.f32 %v839, %v1035
    %v1037 = vpop.f32.mrf.mxu0
    %1038 = vmatprep.mubr.f32.mxu0 0.0
    %v1039 = vand.u32 %v144, 4294901760
    %1040 = vmatmul.mubr.f32.gmra.mxu0 %v1039
    %v1041 = vpop.f32.mrf.mxu0
    %v1042 = vadd.f32 %v847, %v1041
    %v1043 = vpop.f32.mrf.mxu0
    %1044 = vmatprep.mubr.f32.mxu0 0.0
    %v1045 = vand.u32 %v147, 4294901760
    %1046 = vmatmul.mubr.f32.gmra.mxu0 %v1045
    %v1047 = vpop.f32.mrf.mxu0
    %v1048 = vadd.f32 %v855, %v1047
    %v1049 = vpop.f32.mrf.mxu0
    %1050 = vmatprep.mubr.f32.mxu0 0.0
    %v1051 = vand.u32 %v150, 4294901760
    %1052 = vmatmul.mubr.f32.gmra.mxu0 %v1051
    %v1053 = vpop.f32.mrf.mxu0
    %v1054 = vadd.f32 %v863, %v1053
    %v1055 = vpop.f32.mrf.mxu0
    %1056 = vmatprep.mubr.f32.mxu0 0.0
    %v1057 = vand.u32 %v153, 4294901760
    %1058 = vmatmul.mubr.f32.gmra.mxu0 %v1057
    %v1059 = vpop.f32.mrf.mxu0
    %v1060 = vadd.f32 %v871, %v1059
    %v1061 = vpop.f32.mrf.mxu0
    %1062 = vmatprep.mubr.f32.mxu0 0.0
    %v1063 = vand.u32 %v156, 4294901760
    %1064 = vmatmul.mubr.f32.gmra.mxu0 %v1063
    %v1065 = vpop.f32.mrf.mxu0
    %v1066 = vadd.f32 %v879, %v1065
    %v1067 = vpop.f32.mrf.mxu0
    %1068 = vmatprep.mubr.f32.mxu0 0.0
    %v1069 = vand.u32 %v159, 4294901760
    %1070 = vmatmul.mubr.f32.gmra.mxu0 %v1069
    %v1071 = vpop.f32.mrf.mxu0
    %v1072 = vadd.f32 %v887, %v1071
    %v1073 = vpop.f32.mrf.mxu0
    %1074 = vmatprep.mubr.f32.mxu0 0.0
    %v1075 = vand.u32 %v162, 4294901760
    %1076 = vmatmul.mubr.f32.gmra.mxu0 %v1075
    %v1077 = vpop.f32.mrf.mxu0
    %v1078 = vadd.f32 %v895, %v1077
    %v1079 = vpop.f32.mrf.mxu0
    %1080 = vmatprep.mubr.f32.mxu0 0.0
    %v1081 = vand.u32 %v165, 4294901760
    %1082 = vmatmul.mubr.f32.gmra.mxu0 %v1081
    %v1083 = vpop.f32.mrf.mxu0
    %v1084 = vadd.f32 %v903, %v1083
    %v1085 = vpop.f32.mrf.mxu0
    %1086 = vmatprep.mubr.f32.mxu0 0.0
    %v1087 = vand.u32 %v168, 4294901760
    %1088 = vmatmul.mubr.f32.gmra.mxu0 %v1087
    %v1089 = vpop.f32.mrf.mxu0
    %v1090 = vadd.f32 %v911, %v1089
    %v1091 = vpop.f32.mrf.mxu0
    %1092 = vmatprep.mubr.f32.mxu0 0.0
    %v1093 = vand.u32 %v171, 4294901760
    %1094 = vmatmul.mubr.f32.gmra.mxu0 %v1093
    %v1095 = vpop.f32.mrf.mxu0
    %v1096 = vadd.f32 %v919, %v1095
    %v1097 = vpop.f32.mrf.mxu0
    %1098 = vmatprep.mubr.f32.mxu0 0.0
    %v1099 = vand.u32 %v174, 4294901760
    %1100 = vmatmul.mubr.f32.gmra.mxu0 %v1099
    %v1101 = vpop.f32.mrf.mxu0
    %v1102 = vadd.f32 %v927, %v1101
    %v1103 = vpop.f32.mrf.mxu0
    %1104 = vmatprep.mubr.f32.mxu0 0.0
    %v1105 = vand.u32 %v177, 4294901760
    %1106 = vmatmul.mubr.f32.gmra.mxu0 %v1105
    %v1107 = vpop.f32.mrf.mxu0
    %v1108 = vadd.f32 %v935, %v1107
    %v1109 = vpop.f32.mrf.mxu0
    %1110 = vmatprep.mubr.f32.mxu0 0.0
    %v1111 = vand.u32 %v180, 4294901760
    %1112 = vmatmul.mubr.f32.gmra.mxu0 %v1111
    %v1113 = vpop.f32.mrf.mxu0
    %v1114 = vadd.f32 %v943, %v1113
    %v1115 = vpop.f32.mrf.mxu0
    %1116 = vmatprep.mubr.f32.mxu0 0.0
    %v1117 = vand.u32 %v183, 4294901760
    %1118 = vmatmul.mubr.f32.gmra.mxu0 %v1117
    %v1119 = vpop.f32.mrf.mxu0
    %v1120 = vadd.f32 %v951, %v1119
    %v1121 = vpop.f32.mrf.mxu0
    %1122 = vmatprep.mubr.f32.mxu0 0.0
    %v1123 = vand.u32 %v186, 4294901760
    %1124 = vmatmul.mubr.f32.gmra.mxu0 %v1123
    %v1125 = vpop.f32.mrf.mxu0
    %v1126 = vadd.f32 %v959, %v1125
    %v1127 = vpop.f32.mrf.mxu0
    %1128 = vdwg.mxu0
    %1129 = vmatprep.subr.mxu0 0.0
    %1130 = vmatpush1.msra.mxu0 0.0
    %1131 = vmatprep.subr.mxu0 0.0
    %1132 = vmatpush1.msra.mxu0 0.0
    %1133 = vmatprep.subr.mxu0 0.0
    %1134 = vmatpush1.msra.mxu0 0.0
    %1135 = vmatprep.subr.mxu0 0.0
    %1136 = vmatpush1.msra.mxu0 0.0
    %1137 = vmatprep.subr.mxu0 0.0
    %1138 = vmatpush1.msra.mxu0 0.0
    %1139 = vmatprep.subr.mxu0 0.0
    %1140 = vmatpush1.msra.mxu0 0.0
    %1141 = vmatprep.subr.mxu0 0.0
    %1142 = vmatpush1.msra.mxu0 0.0
    %1143 = vmatprep.subr.mxu0 0.0
    %1144 = vmatpush1.msra.mxu0 0.0
    %1145 = vmatprep.subr.mxu0 0.0
    %1146 = vmatpush1.msra.mxu0 0.0
    %1147 = vmatprep.subr.mxu0 0.0
    %1148 = vmatpush1.msra.mxu0 0.0
    %1149 = vmatprep.subr.mxu0 0.0
    %1150 = vmatpush1.msra.mxu0 0.0
    %1151 = vmatprep.subr.mxu0 0.0
    %1152 = vmatpush1.msra.mxu0 0.0
    %1153 = vmatprep.subr.mxu0 0.0
    %1154 = vmatpush1.msra.mxu0 0.0
    %1155 = vmatprep.subr.mxu0 0.0
    %1156 = vmatpush1.msra.mxu0 0.0
    %1157 = vmatprep.subr.mxu0 0.0
    %v1158 = vand.u32 %v106, 4294901760
    %1159 = vmatpush1.msra.mxu0 %v1158
    %1160 = vmatprep.subr.mxu0 0.0
    %v1161 = vand.u32 %v105, 4294901760
    %1162 = vmatpush1.msra.mxu0 %v1161
    %1163 = vmatprep.subr.mxu0 0.0
    %1164 = vmatpush2.msra.mxu0 0.0
    %1165 = vmatprep.subr.mxu0 0.0
    %1166 = vmatpush2.msra.mxu0 0.0
    %1167 = vmatprep.subr.mxu0 0.0
    %1168 = vmatpush2.msra.mxu0 0.0
    %1169 = vmatprep.subr.mxu0 0.0
    %1170 = vmatpush2.msra.mxu0 0.0
    %1171 = vmatprep.subr.mxu0 0.0
    %1172 = vmatpush2.msra.mxu0 0.0
    %1173 = vmatprep.subr.mxu0 0.0
    %1174 = vmatpush2.msra.mxu0 0.0
    %1175 = vmatprep.subr.mxu0 0.0
    %1176 = vmatpush2.msra.mxu0 0.0
    %1177 = vmatprep.subr.mxu0 0.0
    %1178 = vmatpush2.msra.mxu0 0.0
    %1179 = vmatprep.subr.mxu0 0.0
    %1180 = vmatpush2.msra.mxu0 0.0
    %1181 = vmatprep.subr.mxu0 0.0
    %1182 = vmatpush2.msra.mxu0 0.0
    %1183 = vmatprep.subr.mxu0 0.0
    %1184 = vmatpush2.msra.mxu0 0.0
    %1185 = vmatprep.subr.mxu0 0.0
    %1186 = vmatpush2.msra.mxu0 0.0
    %1187 = vmatprep.subr.mxu0 0.0
    %1188 = vmatpush2.msra.mxu0 0.0
    %1189 = vmatprep.subr.mxu0 0.0
    %1190 = vmatpush2.msra.mxu0 0.0
    %1191 = vmatprep.subr.mxu0 0.0
    %1192 = vmatpush2.msra.mxu0 0.0
    %1193 = vmatprep.subr.mxu0 0.0
    %1194 = vmatpush2.msra.mxu0 0.0
    %1195 = vmatprep.mubr.f32.mxu0 0.0
    %v1196 = vand.u32 %v141, 4294901760
    %1197 = vmatmul.mubr.f32.gmra.mxu0 %v1196
    %v1198 = vpop.f32.mrf.mxu0
    %v1199 = vadd.f32 %v1036, %v1198
    %v1200 = vpop.f32.mrf.mxu0
    %1201 = vmatprep.mubr.f32.mxu0 0.0
    %v1202 = vand.u32 %v144, 4294901760
    %1203 = vmatmul.mubr.f32.gmra.mxu0 %v1202
    %v1204 = vpop.f32.mrf.mxu0
    %v1205 = vadd.f32 %v1042, %v1204
    %v1206 = vpop.f32.mrf.mxu0
    %1207 = vmatprep.mubr.f32.mxu0 0.0
    %v1208 = vand.u32 %v147, 4294901760
    %1209 = vmatmul.mubr.f32.gmra.mxu0 %v1208
    %v1210 = vpop.f32.mrf.mxu0
    %v1211 = vadd.f32 %v1048, %v1210
    %v1212 = vpop.f32.mrf.mxu0
    %1213 = vmatprep.mubr.f32.mxu0 0.0
    %v1214 = vand.u32 %v150, 4294901760
    %1215 = vmatmul.mubr.f32.gmra.mxu0 %v1214
    %v1216 = vpop.f32.mrf.mxu0
    %v1217 = vadd.f32 %v1054, %v1216
    %v1218 = vpop.f32.mrf.mxu0
    %1219 = vmatprep.mubr.f32.mxu0 0.0
    %v1220 = vand.u32 %v153, 4294901760
    %1221 = vmatmul.mubr.f32.gmra.mxu0 %v1220
    %v1222 = vpop.f32.mrf.mxu0
    %v1223 = vadd.f32 %v1060, %v1222
    %v1224 = vpop.f32.mrf.mxu0
    %1225 = vmatprep.mubr.f32.mxu0 0.0
    %v1226 = vand.u32 %v156, 4294901760
    %1227 = vmatmul.mubr.f32.gmra.mxu0 %v1226
    %v1228 = vpop.f32.mrf.mxu0
    %v1229 = vadd.f32 %v1066, %v1228
    %v1230 = vpop.f32.mrf.mxu0
    %1231 = vmatprep.mubr.f32.mxu0 0.0
    %v1232 = vand.u32 %v159, 4294901760
    %1233 = vmatmul.mubr.f32.gmra.mxu0 %v1232
    %v1234 = vpop.f32.mrf.mxu0
    %v1235 = vadd.f32 %v1072, %v1234
    %v1236 = vpop.f32.mrf.mxu0
    %1237 = vmatprep.mubr.f32.mxu0 0.0
    %v1238 = vand.u32 %v162, 4294901760
    %1239 = vmatmul.mubr.f32.gmra.mxu0 %v1238
    %v1240 = vpop.f32.mrf.mxu0
    %v1241 = vadd.f32 %v1078, %v1240
    %v1242 = vpop.f32.mrf.mxu0
    %1243 = vmatprep.mubr.f32.mxu0 0.0
    %v1244 = vand.u32 %v165, 4294901760
    %1245 = vmatmul.mubr.f32.gmra.mxu0 %v1244
    %v1246 = vpop.f32.mrf.mxu0
    %v1247 = vadd.f32 %v1084, %v1246
    %v1248 = vpop.f32.mrf.mxu0
    %1249 = vmatprep.mubr.f32.mxu0 0.0
    %v1250 = vand.u32 %v168, 4294901760
    %1251 = vmatmul.mubr.f32.gmra.mxu0 %v1250
    %v1252 = vpop.f32.mrf.mxu0
    %v1253 = vadd.f32 %v1090, %v1252
    %v1254 = vpop.f32.mrf.mxu0
    %1255 = vmatprep.mubr.f32.mxu0 0.0
    %v1256 = vand.u32 %v171, 4294901760
    %1257 = vmatmul.mubr.f32.gmra.mxu0 %v1256
    %v1258 = vpop.f32.mrf.mxu0
    %v1259 = vadd.f32 %v1096, %v1258
    %v1260 = vpop.f32.mrf.mxu0
    %1261 = vmatprep.mubr.f32.mxu0 0.0
    %v1262 = vand.u32 %v174, 4294901760
    %1263 = vmatmul.mubr.f32.gmra.mxu0 %v1262
    %v1264 = vpop.f32.mrf.mxu0
    %v1265 = vadd.f32 %v1102, %v1264
    %v1266 = vpop.f32.mrf.mxu0
    %1267 = vmatprep.mubr.f32.mxu0 0.0
    %v1268 = vand.u32 %v177, 4294901760
    %1269 = vmatmul.mubr.f32.gmra.mxu0 %v1268
    %v1270 = vpop.f32.mrf.mxu0
    %v1271 = vadd.f32 %v1108, %v1270
    %v1272 = vpop.f32.mrf.mxu0
    %1273 = vmatprep.mubr.f32.mxu0 0.0
    %v1274 = vand.u32 %v180, 4294901760
    %1275 = vmatmul.mubr.f32.gmra.mxu0 %v1274
    %v1276 = vpop.f32.mrf.mxu0
    %v1277 = vadd.f32 %v1114, %v1276
    %v1278 = vpop.f32.mrf.mxu0
    %1279 = vmatprep.mubr.f32.mxu0 0.0
    %v1280 = vand.u32 %v183, 4294901760
    %1281 = vmatmul.mubr.f32.gmra.mxu0 %v1280
    %v1282 = vpop.f32.mrf.mxu0
    %v1283 = vadd.f32 %v1120, %v1282
    %v1284 = vpop.f32.mrf.mxu0
    %1285 = vmatprep.mubr.f32.mxu0 0.0
    %v1286 = vand.u32 %v186, 4294901760
    %1287 = vmatmul.mubr.f32.gmra.mxu0 %v1286
    %v1288 = vpop.f32.mrf.mxu0
    %v1289 = vadd.f32 %v1126, %v1288
    %v1290 = vpop.f32.mrf.mxu0
    %1291 = vdwg.mxu0
    %v1292 = vld [vmem:[#allocation4] sm:$0xff]
    %v1293 = vld [vmem:[#allocation4 + $0x8] sm:$0xff]
    %v1294 = vld [vmem:[#allocation4 + $0x10] sm:$0xff]
    %v1295 = vld [vmem:[#allocation4 + $0x18] sm:$0xff]
    %v1296 = vld [vmem:[#allocation4 + $0x20] sm:$0xff]
    %v1297 = vld [vmem:[#allocation4 + $0x28] sm:$0xff]
    %v1298 = vld [vmem:[#allocation4 + $0x30] sm:$0xff]
    %v1299 = vld [vmem:[#allocation4 + $0x38] sm:$0xff]
    %v1300 = vld [vmem:[#allocation4 + $0x40] sm:$0xff]
    %v1301 = vld [vmem:[#allocation4 + $0x48] sm:$0xff]
    %v1302 = vld [vmem:[#allocation4 + $0x50] sm:$0xff]
    %v1303 = vld [vmem:[#allocation4 + $0x58] sm:$0xff]
    %v1304 = vld [vmem:[#allocation4 + $0x60] sm:$0xff]
    %v1305 = vld [vmem:[#allocation4 + $0x68] sm:$0xff]
    %v1306 = vld [vmem:[#allocation4 + $0x70] sm:$0xff]
    %v1307 = vld [vmem:[#allocation4 + $0x78] sm:$0xff]
    %v1308 = vld [vmem:[#allocation6] sm:$0x1]
    %v1310 = vlaneseq
    %v1311 = vshrl.u32 %v1310, 7
    %v1312 = vsub.s32 0, %v1311
    %v1313 = vrot.slane %v1308, %v1312
    %1315 = vmatprep.subr.mxu0 0.0
    %v1316 = vand.u32 %v1307, 4294901760
    %1317 = vmatpush1.msra.mxu0 %v1316
    %1318 = vmatprep.subr.mxu0 0.0
    %v1319 = vand.u32 %v1306, 4294901760
    %1320 = vmatpush1.msra.mxu0 %v1319
    %1321 = vmatprep.subr.mxu0 0.0
    %v1322 = vand.u32 %v1305, 4294901760
    %1323 = vmatpush1.msra.mxu0 %v1322
    %1324 = vmatprep.subr.mxu0 0.0
    %v1325 = vand.u32 %v1304, 4294901760
    %1326 = vmatpush1.msra.mxu0 %v1325
    %1327 = vmatprep.subr.mxu0 0.0
    %v1328 = vand.u32 %v1303, 4294901760
    %1329 = vmatpush1.msra.mxu0 %v1328
    %1330 = vmatprep.subr.mxu0 0.0
    %v1331 = vand.u32 %v1302, 4294901760
    %1332 = vmatpush1.msra.mxu0 %v1331
    %1333 = vmatprep.subr.mxu0 0.0
    %v1334 = vand.u32 %v1301, 4294901760
    %1335 = vmatpush1.msra.mxu0 %v1334
    %1336 = vmatprep.subr.mxu0 0.0
    %v1337 = vand.u32 %v1300, 4294901760
    %1338 = vmatpush1.msra.mxu0 %v1337
    %1339 = vmatprep.subr.mxu0 0.0
    %v1340 = vand.u32 %v1299, 4294901760
    %1341 = vmatpush1.msra.mxu0 %v1340
    %1342 = vmatprep.subr.mxu0 0.0
    %v1343 = vand.u32 %v1298, 4294901760
    %1344 = vmatpush1.msra.mxu0 %v1343
    %1345 = vmatprep.subr.mxu0 0.0
    %v1346 = vand.u32 %v1297, 4294901760
    %1347 = vmatpush1.msra.mxu0 %v1346
    %1348 = vmatprep.subr.mxu0 0.0
    %v1349 = vand.u32 %v1296, 4294901760
    %1350 = vmatpush1.msra.mxu0 %v1349
    %1351 = vmatprep.subr.mxu0 0.0
    %v1352 = vand.u32 %v1295, 4294901760
    %1353 = vmatpush1.msra.mxu0 %v1352
    %1354 = vmatprep.subr.mxu0 0.0
    %v1355 = vand.u32 %v1294, 4294901760
    %1356 = vmatpush1.msra.mxu0 %v1355
    %1357 = vmatprep.subr.mxu0 0.0
    %v1358 = vand.u32 %v1293, 4294901760
    %1359 = vmatpush1.msra.mxu0 %v1358
    %1360 = vmatprep.subr.mxu0 0.0
    %v1361 = vand.u32 %v1292, 4294901760
    %1362 = vmatpush1.msra.mxu0 %v1361
    %1363 = vmatprep.subr.mxu0 0.0
    %1364 = vmatpush2.msra.mxu0 0.0
    %1365 = vmatprep.subr.mxu0 0.0
    %1366 = vmatpush2.msra.mxu0 0.0
    %1367 = vmatprep.subr.mxu0 0.0
    %1368 = vmatpush2.msra.mxu0 0.0
    %1369 = vmatprep.subr.mxu0 0.0
    %1370 = vmatpush2.msra.mxu0 0.0
    %1371 = vmatprep.subr.mxu0 0.0
    %1372 = vmatpush2.msra.mxu0 0.0
    %1373 = vmatprep.subr.mxu0 0.0
    %1374 = vmatpush2.msra.mxu0 0.0
    %1375 = vmatprep.subr.mxu0 0.0
    %1376 = vmatpush2.msra.mxu0 0.0
    %1377 = vmatprep.subr.mxu0 0.0
    %1378 = vmatpush2.msra.mxu0 0.0
    %1379 = vmatprep.subr.mxu0 0.0
    %1380 = vmatpush2.msra.mxu0 0.0
    %1381 = vmatprep.subr.mxu0 0.0
    %1382 = vmatpush2.msra.mxu0 0.0
    %1383 = vmatprep.subr.mxu0 0.0
    %1384 = vmatpush2.msra.mxu0 0.0
    %1385 = vmatprep.subr.mxu0 0.0
    %1386 = vmatpush2.msra.mxu0 0.0
    %1387 = vmatprep.subr.mxu0 0.0
    %1388 = vmatpush2.msra.mxu0 0.0
    %1389 = vmatprep.subr.mxu0 0.0
    %1390 = vmatpush2.msra.mxu0 0.0
    %1391 = vmatprep.subr.mxu0 0.0
    %1392 = vmatpush2.msra.mxu0 0.0
    %1393 = vmatprep.subr.mxu0 0.0
    %1394 = vmatpush2.msra.mxu0 0.0
    %1395 = vmatprep.mubr.f32.mxu0 0.0
    %v1396 = vand.u32 %v1199, 4294901760
    %v1397 = vsub.f32 %v1199, %v1396
    %v1398 = vand.u32 %v1397, 4294901760
    %v1399 = vsub.f32 %v1397, %v1398
    %v1400 = vand.u32 %v1399, 4294901760
    %1401 = vmatmul.mubr.f32.gmra.mxu0 %v1400
    %v1402 = vpop.f32.mrf.mxu0
    %v1403 = vadd.f32 %v1313, %v1402
    %v1404 = vpop.f32.mrf.mxu0
    %1405 = vmatprep.mubr.f32.mxu0 0.0
    %v1406 = vand.u32 %v1205, 4294901760
    %v1407 = vsub.f32 %v1205, %v1406
    %v1408 = vand.u32 %v1407, 4294901760
    %v1409 = vsub.f32 %v1407, %v1408
    %v1410 = vand.u32 %v1409, 4294901760
    %1411 = vmatmul.mubr.f32.gmra.mxu0 %v1410
    %v1412 = vpop.f32.mrf.mxu0
    %v1413 = vadd.f32 %v1313, %v1412
    %v1414 = vpop.f32.mrf.mxu0
    %1415 = vmatprep.mubr.f32.mxu0 0.0
    %v1416 = vand.u32 %v1211, 4294901760
    %v1417 = vsub.f32 %v1211, %v1416
    %v1418 = vand.u32 %v1417, 4294901760
    %v1419 = vsub.f32 %v1417, %v1418
    %v1420 = vand.u32 %v1419, 4294901760
    %1421 = vmatmul.mubr.f32.gmra.mxu0 %v1420
    %v1422 = vpop.f32.mrf.mxu0
    %v1423 = vadd.f32 %v1313, %v1422
    %v1424 = vpop.f32.mrf.mxu0
    %1425 = vmatprep.mubr.f32.mxu0 0.0
    %v1426 = vand.u32 %v1217, 4294901760
    %v1427 = vsub.f32 %v1217, %v1426
    %v1428 = vand.u32 %v1427, 4294901760
    %v1429 = vsub.f32 %v1427, %v1428
    %v1430 = vand.u32 %v1429, 4294901760
    %1431 = vmatmul.mubr.f32.gmra.mxu0 %v1430
    %v1432 = vpop.f32.mrf.mxu0
    %v1433 = vadd.f32 %v1313, %v1432
    %v1434 = vpop.f32.mrf.mxu0
    %1435 = vmatprep.mubr.f32.mxu0 0.0
    %v1436 = vand.u32 %v1223, 4294901760
    %v1437 = vsub.f32 %v1223, %v1436
    %v1438 = vand.u32 %v1437, 4294901760
    %v1439 = vsub.f32 %v1437, %v1438
    %v1440 = vand.u32 %v1439, 4294901760
    %1441 = vmatmul.mubr.f32.gmra.mxu0 %v1440
    %v1442 = vpop.f32.mrf.mxu0
    %v1443 = vadd.f32 %v1313, %v1442
    %v1444 = vpop.f32.mrf.mxu0
    %1445 = vmatprep.mubr.f32.mxu0 0.0
    %v1446 = vand.u32 %v1229, 4294901760
    %v1447 = vsub.f32 %v1229, %v1446
    %v1448 = vand.u32 %v1447, 4294901760
    %v1449 = vsub.f32 %v1447, %v1448
    %v1450 = vand.u32 %v1449, 4294901760
    %1451 = vmatmul.mubr.f32.gmra.mxu0 %v1450
    %v1452 = vpop.f32.mrf.mxu0
    %v1453 = vadd.f32 %v1313, %v1452
    %v1454 = vpop.f32.mrf.mxu0
    %1455 = vmatprep.mubr.f32.mxu0 0.0
    %v1456 = vand.u32 %v1235, 4294901760
    %v1457 = vsub.f32 %v1235, %v1456
    %v1458 = vand.u32 %v1457, 4294901760
    %v1459 = vsub.f32 %v1457, %v1458
    %v1460 = vand.u32 %v1459, 4294901760
    %1461 = vmatmul.mubr.f32.gmra.mxu0 %v1460
    %v1462 = vpop.f32.mrf.mxu0
    %v1463 = vadd.f32 %v1313, %v1462
    %v1464 = vpop.f32.mrf.mxu0
    %1465 = vmatprep.mubr.f32.mxu0 0.0
    %v1466 = vand.u32 %v1241, 4294901760
    %v1467 = vsub.f32 %v1241, %v1466
    %v1468 = vand.u32 %v1467, 4294901760
    %v1469 = vsub.f32 %v1467, %v1468
    %v1470 = vand.u32 %v1469, 4294901760
    %1471 = vmatmul.mubr.f32.gmra.mxu0 %v1470
    %v1472 = vpop.f32.mrf.mxu0
    %v1473 = vadd.f32 %v1313, %v1472
    %v1474 = vpop.f32.mrf.mxu0
    %1475 = vmatprep.mubr.f32.mxu0 0.0
    %v1476 = vand.u32 %v1247, 4294901760
    %v1477 = vsub.f32 %v1247, %v1476
    %v1478 = vand.u32 %v1477, 4294901760
    %v1479 = vsub.f32 %v1477, %v1478
    %v1480 = vand.u32 %v1479, 4294901760
    %1481 = vmatmul.mubr.f32.gmra.mxu0 %v1480
    %v1482 = vpop.f32.mrf.mxu0
    %v1483 = vadd.f32 %v1313, %v1482
    %v1484 = vpop.f32.mrf.mxu0
    %1485 = vmatprep.mubr.f32.mxu0 0.0
    %v1486 = vand.u32 %v1253, 4294901760
    %v1487 = vsub.f32 %v1253, %v1486
    %v1488 = vand.u32 %v1487, 4294901760
    %v1489 = vsub.f32 %v1487, %v1488
    %v1490 = vand.u32 %v1489, 4294901760
    %1491 = vmatmul.mubr.f32.gmra.mxu0 %v1490
    %v1492 = vpop.f32.mrf.mxu0
    %v1493 = vadd.f32 %v1313, %v1492
    %v1494 = vpop.f32.mrf.mxu0
    %1495 = vmatprep.mubr.f32.mxu0 0.0
    %v1496 = vand.u32 %v1259, 4294901760
    %v1497 = vsub.f32 %v1259, %v1496
    %v1498 = vand.u32 %v1497, 4294901760
    %v1499 = vsub.f32 %v1497, %v1498
    %v1500 = vand.u32 %v1499, 4294901760
    %1501 = vmatmul.mubr.f32.gmra.mxu0 %v1500
    %v1502 = vpop.f32.mrf.mxu0
    %v1503 = vadd.f32 %v1313, %v1502
    %v1504 = vpop.f32.mrf.mxu0
    %1505 = vmatprep.mubr.f32.mxu0 0.0
    %v1506 = vand.u32 %v1265, 4294901760
    %v1507 = vsub.f32 %v1265, %v1506
    %v1508 = vand.u32 %v1507, 4294901760
    %v1509 = vsub.f32 %v1507, %v1508
    %v1510 = vand.u32 %v1509, 4294901760
    %1511 = vmatmul.mubr.f32.gmra.mxu0 %v1510
    %v1512 = vpop.f32.mrf.mxu0
    %v1513 = vadd.f32 %v1313, %v1512
    %v1514 = vpop.f32.mrf.mxu0
    %1515 = vmatprep.mubr.f32.mxu0 0.0
    %v1516 = vand.u32 %v1271, 4294901760
    %v1517 = vsub.f32 %v1271, %v1516
    %v1518 = vand.u32 %v1517, 4294901760
    %v1519 = vsub.f32 %v1517, %v1518
    %v1520 = vand.u32 %v1519, 4294901760
    %1521 = vmatmul.mubr.f32.gmra.mxu0 %v1520
    %v1522 = vpop.f32.mrf.mxu0
    %v1523 = vadd.f32 %v1313, %v1522
    %v1524 = vpop.f32.mrf.mxu0
    %1525 = vmatprep.mubr.f32.mxu0 0.0
    %v1526 = vand.u32 %v1277, 4294901760
    %v1527 = vsub.f32 %v1277, %v1526
    %v1528 = vand.u32 %v1527, 4294901760
    %v1529 = vsub.f32 %v1527, %v1528
    %v1530 = vand.u32 %v1529, 4294901760
    %1531 = vmatmul.mubr.f32.gmra.mxu0 %v1530
    %v1532 = vpop.f32.mrf.mxu0
    %v1533 = vadd.f32 %v1313, %v1532
    %v1534 = vpop.f32.mrf.mxu0
    %1535 = vmatprep.mubr.f32.mxu0 0.0
    %v1536 = vand.u32 %v1283, 4294901760
    %v1537 = vsub.f32 %v1283, %v1536
    %v1538 = vand.u32 %v1537, 4294901760
    %v1539 = vsub.f32 %v1537, %v1538
    %v1540 = vand.u32 %v1539, 4294901760
    %1541 = vmatmul.mubr.f32.gmra.mxu0 %v1540
    %v1542 = vpop.f32.mrf.mxu0
    %v1543 = vadd.f32 %v1313, %v1542
    %v1544 = vpop.f32.mrf.mxu0
    %1545 = vmatprep.mubr.f32.mxu0 0.0
    %v1546 = vand.u32 %v1289, 4294901760
    %v1547 = vsub.f32 %v1289, %v1546
    %v1548 = vand.u32 %v1547, 4294901760
    %v1549 = vsub.f32 %v1547, %v1548
    %v1550 = vand.u32 %v1549, 4294901760
    %1551 = vmatmul.mubr.f32.gmra.mxu0 %v1550
    %v1552 = vpop.f32.mrf.mxu0
    %v1553 = vadd.f32 %v1313, %v1552
    %v1554 = vpop.f32.mrf.mxu0
    %1555 = vdwg.mxu0
    %1556 = vmatprep.subr.mxu0 0.0
    %v1557 = vand.u32 %v1307, 4294901760
    %v1558 = vsub.f32 %v1307, %v1557
    %v1559 = vand.u32 %v1558, 4294901760
    %v1560 = vsub.f32 %v1558, %v1559
    %v1561 = vand.u32 %v1560, 4294901760
    %1562 = vmatpush1.msra.mxu0 %v1561
    %1563 = vmatprep.subr.mxu0 0.0
    %v1564 = vand.u32 %v1306, 4294901760
    %v1565 = vsub.f32 %v1306, %v1564
    %v1566 = vand.u32 %v1565, 4294901760
    %v1567 = vsub.f32 %v1565, %v1566
    %v1568 = vand.u32 %v1567, 4294901760
    %1569 = vmatpush1.msra.mxu0 %v1568
    %1570 = vmatprep.subr.mxu0 0.0
    %v1571 = vand.u32 %v1305, 4294901760
    %v1572 = vsub.f32 %v1305, %v1571
    %v1573 = vand.u32 %v1572, 4294901760
    %v1574 = vsub.f32 %v1572, %v1573
    %v1575 = vand.u32 %v1574, 4294901760
    %1576 = vmatpush1.msra.mxu0 %v1575
    %1577 = vmatprep.subr.mxu0 0.0
    %v1578 = vand.u32 %v1304, 4294901760
    %v1579 = vsub.f32 %v1304, %v1578
    %v1580 = vand.u32 %v1579, 4294901760
    %v1581 = vsub.f32 %v1579, %v1580
    %v1582 = vand.u32 %v1581, 4294901760
    %1583 = vmatpush1.msra.mxu0 %v1582
    %1584 = vmatprep.subr.mxu0 0.0
    %v1585 = vand.u32 %v1303, 4294901760
    %v1586 = vsub.f32 %v1303, %v1585
    %v1587 = vand.u32 %v1586, 4294901760
    %v1588 = vsub.f32 %v1586, %v1587
    %v1589 = vand.u32 %v1588, 4294901760
    %1590 = vmatpush1.msra.mxu0 %v1589
    %1591 = vmatprep.subr.mxu0 0.0
    %v1592 = vand.u32 %v1302, 4294901760
    %v1593 = vsub.f32 %v1302, %v1592
    %v1594 = vand.u32 %v1593, 4294901760
    %v1595 = vsub.f32 %v1593, %v1594
    %v1596 = vand.u32 %v1595, 4294901760
    %1597 = vmatpush1.msra.mxu0 %v1596
    %1598 = vmatprep.subr.mxu0 0.0
    %v1599 = vand.u32 %v1301, 4294901760
    %v1600 = vsub.f32 %v1301, %v1599
    %v1601 = vand.u32 %v1600, 4294901760
    %v1602 = vsub.f32 %v1600, %v1601
    %v1603 = vand.u32 %v1602, 4294901760
    %1604 = vmatpush1.msra.mxu0 %v1603
    %1605 = vmatprep.subr.mxu0 0.0
    %v1606 = vand.u32 %v1300, 4294901760
    %v1607 = vsub.f32 %v1300, %v1606
    %v1608 = vand.u32 %v1607, 4294901760
    %v1609 = vsub.f32 %v1607, %v1608
    %v1610 = vand.u32 %v1609, 4294901760
    %1611 = vmatpush1.msra.mxu0 %v1610
    %1612 = vmatprep.subr.mxu0 0.0
    %v1613 = vand.u32 %v1299, 4294901760
    %v1614 = vsub.f32 %v1299, %v1613
    %v1615 = vand.u32 %v1614, 4294901760
    %v1616 = vsub.f32 %v1614, %v1615
    %v1617 = vand.u32 %v1616, 4294901760
    %1618 = vmatpush1.msra.mxu0 %v1617
    %1619 = vmatprep.subr.mxu0 0.0
    %v1620 = vand.u32 %v1298, 4294901760
    %v1621 = vsub.f32 %v1298, %v1620
    %v1622 = vand.u32 %v1621, 4294901760
    %v1623 = vsub.f32 %v1621, %v1622
    %v1624 = vand.u32 %v1623, 4294901760
    %1625 = vmatpush1.msra.mxu0 %v1624
    %1626 = vmatprep.subr.mxu0 0.0
    %v1627 = vand.u32 %v1297, 4294901760
    %v1628 = vsub.f32 %v1297, %v1627
    %v1629 = vand.u32 %v1628, 4294901760
    %v1630 = vsub.f32 %v1628, %v1629
    %v1631 = vand.u32 %v1630, 4294901760
    %1632 = vmatpush1.msra.mxu0 %v1631
    %1633 = vmatprep.subr.mxu0 0.0
    %v1634 = vand.u32 %v1296, 4294901760
    %v1635 = vsub.f32 %v1296, %v1634
    %v1636 = vand.u32 %v1635, 4294901760
    %v1637 = vsub.f32 %v1635, %v1636
    %v1638 = vand.u32 %v1637, 4294901760
    %1639 = vmatpush1.msra.mxu0 %v1638
    %1640 = vmatprep.subr.mxu0 0.0
    %v1641 = vand.u32 %v1295, 4294901760
    %v1642 = vsub.f32 %v1295, %v1641
    %v1643 = vand.u32 %v1642, 4294901760
    %v1644 = vsub.f32 %v1642, %v1643
    %v1645 = vand.u32 %v1644, 4294901760
    %1646 = vmatpush1.msra.mxu0 %v1645
    %1647 = vmatprep.subr.mxu0 0.0
    %v1648 = vand.u32 %v1294, 4294901760
    %v1649 = vsub.f32 %v1294, %v1648
    %v1650 = vand.u32 %v1649, 4294901760
    %v1651 = vsub.f32 %v1649, %v1650
    %v1652 = vand.u32 %v1651, 4294901760
    %1653 = vmatpush1.msra.mxu0 %v1652
    %1654 = vmatprep.subr.mxu0 0.0
    %v1655 = vand.u32 %v1293, 4294901760
    %v1656 = vsub.f32 %v1293, %v1655
    %v1657 = vand.u32 %v1656, 4294901760
    %v1658 = vsub.f32 %v1656, %v1657
    %v1659 = vand.u32 %v1658, 4294901760
    %1660 = vmatpush1.msra.mxu0 %v1659
    %1661 = vmatprep.subr.mxu0 0.0
    %v1662 = vand.u32 %v1292, 4294901760
    %v1663 = vsub.f32 %v1292, %v1662
    %v1664 = vand.u32 %v1663, 4294901760
    %v1665 = vsub.f32 %v1663, %v1664
    %v1666 = vand.u32 %v1665, 4294901760
    %1667 = vmatpush1.msra.mxu0 %v1666
    %1668 = vmatprep.subr.mxu0 0.0
    %1669 = vmatpush2.msra.mxu0 0.0
    %1670 = vmatprep.subr.mxu0 0.0
    %1671 = vmatpush2.msra.mxu0 0.0
    %1672 = vmatprep.subr.mxu0 0.0
    %1673 = vmatpush2.msra.mxu0 0.0
    %1674 = vmatprep.subr.mxu0 0.0
    %1675 = vmatpush2.msra.mxu0 0.0
    %1676 = vmatprep.subr.mxu0 0.0
    %1677 = vmatpush2.msra.mxu0 0.0
    %1678 = vmatprep.subr.mxu0 0.0
    %1679 = vmatpush2.msra.mxu0 0.0
    %1680 = vmatprep.subr.mxu0 0.0
    %1681 = vmatpush2.msra.mxu0 0.0
    %1682 = vmatprep.subr.mxu0 0.0
    %1683 = vmatpush2.msra.mxu0 0.0
    %1684 = vmatprep.subr.mxu0 0.0
    %1685 = vmatpush2.msra.mxu0 0.0
    %1686 = vmatprep.subr.mxu0 0.0
    %1687 = vmatpush2.msra.mxu0 0.0
    %1688 = vmatprep.subr.mxu0 0.0
    %1689 = vmatpush2.msra.mxu0 0.0
    %1690 = vmatprep.subr.mxu0 0.0
    %1691 = vmatpush2.msra.mxu0 0.0
    %1692 = vmatprep.subr.mxu0 0.0
    %1693 = vmatpush2.msra.mxu0 0.0
    %1694 = vmatprep.subr.mxu0 0.0
    %1695 = vmatpush2.msra.mxu0 0.0
    %1696 = vmatprep.subr.mxu0 0.0
    %1697 = vmatpush2.msra.mxu0 0.0
    %1698 = vmatprep.subr.mxu0 0.0
    %1699 = vmatpush2.msra.mxu0 0.0
    %1700 = vmatprep.mubr.f32.mxu0 0.0
    %v1701 = vand.u32 %v1199, 4294901760
    %1702 = vmatmul.mubr.f32.gmra.mxu0 %v1701
    %v1703 = vpop.f32.mrf.mxu0
    %v1704 = vadd.f32 %v1403, %v1703
    %v1705 = vpop.f32.mrf.mxu0
    %1706 = vmatprep.mubr.f32.mxu0 0.0
    %v1707 = vand.u32 %v1205, 4294901760
    %1708 = vmatmul.mubr.f32.gmra.mxu0 %v1707
    %v1709 = vpop.f32.mrf.mxu0
    %v1710 = vadd.f32 %v1413, %v1709
    %v1711 = vpop.f32.mrf.mxu0
    %1712 = vmatprep.mubr.f32.mxu0 0.0
    %v1713 = vand.u32 %v1211, 4294901760
    %1714 = vmatmul.mubr.f32.gmra.mxu0 %v1713
    %v1715 = vpop.f32.mrf.mxu0
    %v1716 = vadd.f32 %v1423, %v1715
    %v1717 = vpop.f32.mrf.mxu0
    %1718 = vmatprep.mubr.f32.mxu0 0.0
    %v1719 = vand.u32 %v1217, 4294901760
    %1720 = vmatmul.mubr.f32.gmra.mxu0 %v1719
    %v1721 = vpop.f32.mrf.mxu0
    %v1722 = vadd.f32 %v1433, %v1721
    %v1723 = vpop.f32.mrf.mxu0
    %1724 = vmatprep.mubr.f32.mxu0 0.0
    %v1725 = vand.u32 %v1223, 4294901760
    %1726 = vmatmul.mubr.f32.gmra.mxu0 %v1725
    %v1727 = vpop.f32.mrf.mxu0
    %v1728 = vadd.f32 %v1443, %v1727
    %v1729 = vpop.f32.mrf.mxu0
    %1730 = vmatprep.mubr.f32.mxu0 0.0
    %v1731 = vand.u32 %v1229, 4294901760
    %1732 = vmatmul.mubr.f32.gmra.mxu0 %v1731
    %v1733 = vpop.f32.mrf.mxu0
    %v1734 = vadd.f32 %v1453, %v1733
    %v1735 = vpop.f32.mrf.mxu0
    %1736 = vmatprep.mubr.f32.mxu0 0.0
    %v1737 = vand.u32 %v1235, 4294901760
    %1738 = vmatmul.mubr.f32.gmra.mxu0 %v1737
    %v1739 = vpop.f32.mrf.mxu0
    %v1740 = vadd.f32 %v1463, %v1739
    %v1741 = vpop.f32.mrf.mxu0
    %1742 = vmatprep.mubr.f32.mxu0 0.0
    %v1743 = vand.u32 %v1241, 4294901760
    %1744 = vmatmul.mubr.f32.gmra.mxu0 %v1743
    %v1745 = vpop.f32.mrf.mxu0
    %v1746 = vadd.f32 %v1473, %v1745
    %v1747 = vpop.f32.mrf.mxu0
    %1748 = vmatprep.mubr.f32.mxu0 0.0
    %v1749 = vand.u32 %v1247, 4294901760
    %1750 = vmatmul.mubr.f32.gmra.mxu0 %v1749
    %v1751 = vpop.f32.mrf.mxu0
    %v1752 = vadd.f32 %v1483, %v1751
    %v1753 = vpop.f32.mrf.mxu0
    %1754 = vmatprep.mubr.f32.mxu0 0.0
    %v1755 = vand.u32 %v1253, 4294901760
    %1756 = vmatmul.mubr.f32.gmra.mxu0 %v1755
    %v1757 = vpop.f32.mrf.mxu0
    %v1758 = vadd.f32 %v1493, %v1757
    %v1759 = vpop.f32.mrf.mxu0
    %1760 = vmatprep.mubr.f32.mxu0 0.0
    %v1761 = vand.u32 %v1259, 4294901760
    %1762 = vmatmul.mubr.f32.gmra.mxu0 %v1761
    %v1763 = vpop.f32.mrf.mxu0
    %v1764 = vadd.f32 %v1503, %v1763
    %v1765 = vpop.f32.mrf.mxu0
    %1766 = vmatprep.mubr.f32.mxu0 0.0
    %v1767 = vand.u32 %v1265, 4294901760
    %1768 = vmatmul.mubr.f32.gmra.mxu0 %v1767
    %v1769 = vpop.f32.mrf.mxu0
    %v1770 = vadd.f32 %v1513, %v1769
    %v1771 = vpop.f32.mrf.mxu0
    %1772 = vmatprep.mubr.f32.mxu0 0.0
    %v1773 = vand.u32 %v1271, 4294901760
    %1774 = vmatmul.mubr.f32.gmra.mxu0 %v1773
    %v1775 = vpop.f32.mrf.mxu0
    %v1776 = vadd.f32 %v1523, %v1775
    %v1777 = vpop.f32.mrf.mxu0
    %1778 = vmatprep.mubr.f32.mxu0 0.0
    %v1779 = vand.u32 %v1277, 4294901760
    %1780 = vmatmul.mubr.f32.gmra.mxu0 %v1779
    %v1781 = vpop.f32.mrf.mxu0
    %v1782 = vadd.f32 %v1533, %v1781
    %v1783 = vpop.f32.mrf.mxu0
    %1784 = vmatprep.mubr.f32.mxu0 0.0
    %v1785 = vand.u32 %v1283, 4294901760
    %1786 = vmatmul.mubr.f32.gmra.mxu0 %v1785
    %v1787 = vpop.f32.mrf.mxu0
    %v1788 = vadd.f32 %v1543, %v1787
    %v1789 = vpop.f32.mrf.mxu0
    %1790 = vmatprep.mubr.f32.mxu0 0.0
    %v1791 = vand.u32 %v1289, 4294901760
    %1792 = vmatmul.mubr.f32.gmra.mxu0 %v1791
    %v1793 = vpop.f32.mrf.mxu0
    %v1794 = vadd.f32 %v1553, %v1793
    %v1795 = vpop.f32.mrf.mxu0
    %1796 = vdwg.mxu0
    %1797 = vmatprep.subr.mxu0 0.0
    %v1798 = vand.u32 %v1307, 4294901760
    %v1799 = vsub.f32 %v1307, %v1798
    %1800 = vmatpush1.msra.mxu0 %v1799
    %1801 = vmatprep.subr.mxu0 0.0
    %v1802 = vand.u32 %v1306, 4294901760
    %v1803 = vsub.f32 %v1306, %v1802
    %1804 = vmatpush1.msra.mxu0 %v1803
    %1805 = vmatprep.subr.mxu0 0.0
    %v1806 = vand.u32 %v1305, 4294901760
    %v1807 = vsub.f32 %v1305, %v1806
    %1808 = vmatpush1.msra.mxu0 %v1807
    %1809 = vmatprep.subr.mxu0 0.0
    %v1810 = vand.u32 %v1304, 4294901760
    %v1811 = vsub.f32 %v1304, %v1810
    %1812 = vmatpush1.msra.mxu0 %v1811
    %1813 = vmatprep.subr.mxu0 0.0
    %v1814 = vand.u32 %v1303, 4294901760
    %v1815 = vsub.f32 %v1303, %v1814
    %1816 = vmatpush1.msra.mxu0 %v1815
    %1817 = vmatprep.subr.mxu0 0.0
    %v1818 = vand.u32 %v1302, 4294901760
    %v1819 = vsub.f32 %v1302, %v1818
    %1820 = vmatpush1.msra.mxu0 %v1819
    %1821 = vmatprep.subr.mxu0 0.0
    %v1822 = vand.u32 %v1301, 4294901760
    %v1823 = vsub.f32 %v1301, %v1822
    %1824 = vmatpush1.msra.mxu0 %v1823
    %1825 = vmatprep.subr.mxu0 0.0
    %v1826 = vand.u32 %v1300, 4294901760
    %v1827 = vsub.f32 %v1300, %v1826
    %1828 = vmatpush1.msra.mxu0 %v1827
    %1829 = vmatprep.subr.mxu0 0.0
    %v1830 = vand.u32 %v1299, 4294901760
    %v1831 = vsub.f32 %v1299, %v1830
    %1832 = vmatpush1.msra.mxu0 %v1831
    %1833 = vmatprep.subr.mxu0 0.0
    %v1834 = vand.u32 %v1298, 4294901760
    %v1835 = vsub.f32 %v1298, %v1834
    %1836 = vmatpush1.msra.mxu0 %v1835
    %1837 = vmatprep.subr.mxu0 0.0
    %v1838 = vand.u32 %v1297, 4294901760
    %v1839 = vsub.f32 %v1297, %v1838
    %1840 = vmatpush1.msra.mxu0 %v1839
    %1841 = vmatprep.subr.mxu0 0.0
    %v1842 = vand.u32 %v1296, 4294901760
    %v1843 = vsub.f32 %v1296, %v1842
    %1844 = vmatpush1.msra.mxu0 %v1843
    %1845 = vmatprep.subr.mxu0 0.0
    %v1846 = vand.u32 %v1295, 4294901760
    %v1847 = vsub.f32 %v1295, %v1846
    %1848 = vmatpush1.msra.mxu0 %v1847
    %1849 = vmatprep.subr.mxu0 0.0
    %v1850 = vand.u32 %v1294, 4294901760
    %v1851 = vsub.f32 %v1294, %v1850
    %1852 = vmatpush1.msra.mxu0 %v1851
    %1853 = vmatprep.subr.mxu0 0.0
    %v1854 = vand.u32 %v1293, 4294901760
    %v1855 = vsub.f32 %v1293, %v1854
    %1856 = vmatpush1.msra.mxu0 %v1855
    %1857 = vmatprep.subr.mxu0 0.0
    %v1858 = vand.u32 %v1292, 4294901760
    %v1859 = vsub.f32 %v1292, %v1858
    %1860 = vmatpush1.msra.mxu0 %v1859
    %1861 = vmatprep.subr.mxu0 0.0
    %1862 = vmatpush2.msra.mxu0 0.0
    %1863 = vmatprep.subr.mxu0 0.0
    %1864 = vmatpush2.msra.mxu0 0.0
    %1865 = vmatprep.subr.mxu0 0.0
    %1866 = vmatpush2.msra.mxu0 0.0
    %1867 = vmatprep.subr.mxu0 0.0
    %1868 = vmatpush2.msra.mxu0 0.0
    %1869 = vmatprep.subr.mxu0 0.0
    %1870 = vmatpush2.msra.mxu0 0.0
    %1871 = vmatprep.subr.mxu0 0.0
    %1872 = vmatpush2.msra.mxu0 0.0
    %1873 = vmatprep.subr.mxu0 0.0
    %1874 = vmatpush2.msra.mxu0 0.0
    %1875 = vmatprep.subr.mxu0 0.0
    %1876 = vmatpush2.msra.mxu0 0.0
    %1877 = vmatprep.subr.mxu0 0.0
    %1878 = vmatpush2.msra.mxu0 0.0
    %1879 = vmatprep.subr.mxu0 0.0
    %1880 = vmatpush2.msra.mxu0 0.0
    %1881 = vmatprep.subr.mxu0 0.0
    %1882 = vmatpush2.msra.mxu0 0.0
    %1883 = vmatprep.subr.mxu0 0.0
    %1884 = vmatpush2.msra.mxu0 0.0
    %1885 = vmatprep.subr.mxu0 0.0
    %1886 = vmatpush2.msra.mxu0 0.0
    %1887 = vmatprep.subr.mxu0 0.0
    %1888 = vmatpush2.msra.mxu0 0.0
    %1889 = vmatprep.subr.mxu0 0.0
    %1890 = vmatpush2.msra.mxu0 0.0
    %1891 = vmatprep.subr.mxu0 0.0
    %1892 = vmatpush2.msra.mxu0 0.0
    %1893 = vmatprep.mubr.f32.mxu0 0.0
    %v1894 = vand.u32 %v1199, 4294901760
    %v1895 = vsub.f32 %v1199, %v1894
    %1896 = vmatmul.mubr.f32.gmra.mxu0 %v1895
    %v1897 = vpop.f32.mrf.mxu0
    %v1898 = vadd.f32 %v1704, %v1897
    %v1899 = vpop.f32.mrf.mxu0
    %1900 = vmatprep.mubr.f32.mxu0 0.0
    %v1901 = vand.u32 %v1205, 4294901760
    %v1902 = vsub.f32 %v1205, %v1901
    %1903 = vmatmul.mubr.f32.gmra.mxu0 %v1902
    %v1904 = vpop.f32.mrf.mxu0
    %v1905 = vadd.f32 %v1710, %v1904
    %v1906 = vpop.f32.mrf.mxu0
    %1907 = vmatprep.mubr.f32.mxu0 0.0
    %v1908 = vand.u32 %v1211, 4294901760
    %v1909 = vsub.f32 %v1211, %v1908
    %1910 = vmatmul.mubr.f32.gmra.mxu0 %v1909
    %v1911 = vpop.f32.mrf.mxu0
    %v1912 = vadd.f32 %v1716, %v1911
    %v1913 = vpop.f32.mrf.mxu0
    %1914 = vmatprep.mubr.f32.mxu0 0.0
    %v1915 = vand.u32 %v1217, 4294901760
    %v1916 = vsub.f32 %v1217, %v1915
    %1917 = vmatmul.mubr.f32.gmra.mxu0 %v1916
    %v1918 = vpop.f32.mrf.mxu0
    %v1919 = vadd.f32 %v1722, %v1918
    %v1920 = vpop.f32.mrf.mxu0
    %1921 = vmatprep.mubr.f32.mxu0 0.0
    %v1922 = vand.u32 %v1223, 4294901760
    %v1923 = vsub.f32 %v1223, %v1922
    %1924 = vmatmul.mubr.f32.gmra.mxu0 %v1923
    %v1925 = vpop.f32.mrf.mxu0
    %v1926 = vadd.f32 %v1728, %v1925
    %v1927 = vpop.f32.mrf.mxu0
    %1928 = vmatprep.mubr.f32.mxu0 0.0
    %v1929 = vand.u32 %v1229, 4294901760
    %v1930 = vsub.f32 %v1229, %v1929
    %1931 = vmatmul.mubr.f32.gmra.mxu0 %v1930
    %v1932 = vpop.f32.mrf.mxu0
    %v1933 = vadd.f32 %v1734, %v1932
    %v1934 = vpop.f32.mrf.mxu0
    %1935 = vmatprep.mubr.f32.mxu0 0.0
    %v1936 = vand.u32 %v1235, 4294901760
    %v1937 = vsub.f32 %v1235, %v1936
    %1938 = vmatmul.mubr.f32.gmra.mxu0 %v1937
    %v1939 = vpop.f32.mrf.mxu0
    %v1940 = vadd.f32 %v1740, %v1939
    %v1941 = vpop.f32.mrf.mxu0
    %1942 = vmatprep.mubr.f32.mxu0 0.0
    %v1943 = vand.u32 %v1241, 4294901760
    %v1944 = vsub.f32 %v1241, %v1943
    %1945 = vmatmul.mubr.f32.gmra.mxu0 %v1944
    %v1946 = vpop.f32.mrf.mxu0
    %v1947 = vadd.f32 %v1746, %v1946
    %v1948 = vpop.f32.mrf.mxu0
    %1949 = vmatprep.mubr.f32.mxu0 0.0
    %v1950 = vand.u32 %v1247, 4294901760
    %v1951 = vsub.f32 %v1247, %v1950
    %1952 = vmatmul.mubr.f32.gmra.mxu0 %v1951
    %v1953 = vpop.f32.mrf.mxu0
    %v1954 = vadd.f32 %v1752, %v1953
    %v1955 = vpop.f32.mrf.mxu0
    %1956 = vmatprep.mubr.f32.mxu0 0.0
    %v1957 = vand.u32 %v1253, 4294901760
    %v1958 = vsub.f32 %v1253, %v1957
    %1959 = vmatmul.mubr.f32.gmra.mxu0 %v1958
    %v1960 = vpop.f32.mrf.mxu0
    %v1961 = vadd.f32 %v1758, %v1960
    %v1962 = vpop.f32.mrf.mxu0
    %1963 = vmatprep.mubr.f32.mxu0 0.0
    %v1964 = vand.u32 %v1259, 4294901760
    %v1965 = vsub.f32 %v1259, %v1964
    %1966 = vmatmul.mubr.f32.gmra.mxu0 %v1965
    %v1967 = vpop.f32.mrf.mxu0
    %v1968 = vadd.f32 %v1764, %v1967
    %v1969 = vpop.f32.mrf.mxu0
    %1970 = vmatprep.mubr.f32.mxu0 0.0
    %v1971 = vand.u32 %v1265, 4294901760
    %v1972 = vsub.f32 %v1265, %v1971
    %1973 = vmatmul.mubr.f32.gmra.mxu0 %v1972
    %v1974 = vpop.f32.mrf.mxu0
    %v1975 = vadd.f32 %v1770, %v1974
    %v1976 = vpop.f32.mrf.mxu0
    %1977 = vmatprep.mubr.f32.mxu0 0.0
    %v1978 = vand.u32 %v1271, 4294901760
    %v1979 = vsub.f32 %v1271, %v1978
    %1980 = vmatmul.mubr.f32.gmra.mxu0 %v1979
    %v1981 = vpop.f32.mrf.mxu0
    %v1982 = vadd.f32 %v1776, %v1981
    %v1983 = vpop.f32.mrf.mxu0
    %1984 = vmatprep.mubr.f32.mxu0 0.0
    %v1985 = vand.u32 %v1277, 4294901760
    %v1986 = vsub.f32 %v1277, %v1985
    %1987 = vmatmul.mubr.f32.gmra.mxu0 %v1986
    %v1988 = vpop.f32.mrf.mxu0
    %v1989 = vadd.f32 %v1782, %v1988
    %v1990 = vpop.f32.mrf.mxu0
    %1991 = vmatprep.mubr.f32.mxu0 0.0
    %v1992 = vand.u32 %v1283, 4294901760
    %v1993 = vsub.f32 %v1283, %v1992
    %1994 = vmatmul.mubr.f32.gmra.mxu0 %v1993
    %v1995 = vpop.f32.mrf.mxu0
    %v1996 = vadd.f32 %v1788, %v1995
    %v1997 = vpop.f32.mrf.mxu0
    %1998 = vmatprep.mubr.f32.mxu0 0.0
    %v1999 = vand.u32 %v1289, 4294901760
    %v2000 = vsub.f32 %v1289, %v1999
    %2001 = vmatmul.mubr.f32.gmra.mxu0 %v2000
    %v2002 = vpop.f32.mrf.mxu0
    %v2003 = vadd.f32 %v1794, %v2002
    %v2004 = vpop.f32.mrf.mxu0
    %2005 = vdwg.mxu0
    %2006 = vmatprep.subr.mxu0 0.0
    %v2007 = vand.u32 %v1307, 4294901760
    %2008 = vmatpush1.msra.mxu0 %v2007
    %2009 = vmatprep.subr.mxu0 0.0
    %v2010 = vand.u32 %v1306, 4294901760
    %2011 = vmatpush1.msra.mxu0 %v2010
    %2012 = vmatprep.subr.mxu0 0.0
    %v2013 = vand.u32 %v1305, 4294901760
    %2014 = vmatpush1.msra.mxu0 %v2013
    %2015 = vmatprep.subr.mxu0 0.0
    %v2016 = vand.u32 %v1304, 4294901760
    %2017 = vmatpush1.msra.mxu0 %v2016
    %2018 = vmatprep.subr.mxu0 0.0
    %v2019 = vand.u32 %v1303, 4294901760
    %2020 = vmatpush1.msra.mxu0 %v2019
    %2021 = vmatprep.subr.mxu0 0.0
    %v2022 = vand.u32 %v1302, 4294901760
    %2023 = vmatpush1.msra.mxu0 %v2022
    %2024 = vmatprep.subr.mxu0 0.0
    %v2025 = vand.u32 %v1301, 4294901760
    %2026 = vmatpush1.msra.mxu0 %v2025
    %2027 = vmatprep.subr.mxu0 0.0
    %v2028 = vand.u32 %v1300, 4294901760
    %2029 = vmatpush1.msra.mxu0 %v2028
    %2030 = vmatprep.subr.mxu0 0.0
    %v2031 = vand.u32 %v1299, 4294901760
    %2032 = vmatpush1.msra.mxu0 %v2031
    %2033 = vmatprep.subr.mxu0 0.0
    %v2034 = vand.u32 %v1298, 4294901760
    %2035 = vmatpush1.msra.mxu0 %v2034
    %2036 = vmatprep.subr.mxu0 0.0
    %v2037 = vand.u32 %v1297, 4294901760
    %2038 = vmatpush1.msra.mxu0 %v2037
    %2039 = vmatprep.subr.mxu0 0.0
    %v2040 = vand.u32 %v1296, 4294901760
    %2041 = vmatpush1.msra.mxu0 %v2040
    %2042 = vmatprep.subr.mxu0 0.0
    %v2043 = vand.u32 %v1295, 4294901760
    %2044 = vmatpush1.msra.mxu0 %v2043
    %2045 = vmatprep.subr.mxu0 0.0
    %v2046 = vand.u32 %v1294, 4294901760
    %2047 = vmatpush1.msra.mxu0 %v2046
    %2048 = vmatprep.subr.mxu0 0.0
    %v2049 = vand.u32 %v1293, 4294901760
    %2050 = vmatpush1.msra.mxu0 %v2049
    %2051 = vmatprep.subr.mxu0 0.0
    %v2052 = vand.u32 %v1292, 4294901760
    %2053 = vmatpush1.msra.mxu0 %v2052
    %2054 = vmatprep.subr.mxu0 0.0
    %2055 = vmatpush2.msra.mxu0 0.0
    %2056 = vmatprep.subr.mxu0 0.0
    %2057 = vmatpush2.msra.mxu0 0.0
    %2058 = vmatprep.subr.mxu0 0.0
    %2059 = vmatpush2.msra.mxu0 0.0
    %2060 = vmatprep.subr.mxu0 0.0
    %2061 = vmatpush2.msra.mxu0 0.0
    %2062 = vmatprep.subr.mxu0 0.0
    %2063 = vmatpush2.msra.mxu0 0.0
    %2064 = vmatprep.subr.mxu0 0.0
    %2065 = vmatpush2.msra.mxu0 0.0
    %2066 = vmatprep.subr.mxu0 0.0
    %2067 = vmatpush2.msra.mxu0 0.0
    %2068 = vmatprep.subr.mxu0 0.0
    %2069 = vmatpush2.msra.mxu0 0.0
    %2070 = vmatprep.subr.mxu0 0.0
    %2071 = vmatpush2.msra.mxu0 0.0
    %2072 = vmatprep.subr.mxu0 0.0
    %2073 = vmatpush2.msra.mxu0 0.0
    %2074 = vmatprep.subr.mxu0 0.0
    %2075 = vmatpush2.msra.mxu0 0.0
    %2076 = vmatprep.subr.mxu0 0.0
    %2077 = vmatpush2.msra.mxu0 0.0
    %2078 = vmatprep.subr.mxu0 0.0
    %2079 = vmatpush2.msra.mxu0 0.0
    %2080 = vmatprep.subr.mxu0 0.0
    %2081 = vmatpush2.msra.mxu0 0.0
    %2082 = vmatprep.subr.mxu0 0.0
    %2083 = vmatpush2.msra.mxu0 0.0
    %2084 = vmatprep.subr.mxu0 0.0
    %2085 = vmatpush2.msra.mxu0 0.0
    %2086 = vmatprep.mubr.f32.mxu0 0.0
    %v2087 = vand.u32 %v1199, 4294901760
    %v2088 = vsub.f32 %v1199, %v2087
    %v2089 = vand.u32 %v2088, 4294901760
    %2090 = vmatmul.mubr.f32.gmra.mxu0 %v2089
    %v2091 = vpop.f32.mrf.mxu0
    %v2092 = vadd.f32 %v1898, %v2091
    %v2093 = vpop.f32.mrf.mxu0
    %2094 = vmatprep.mubr.f32.mxu0 0.0
    %v2095 = vand.u32 %v1205, 4294901760
    %v2096 = vsub.f32 %v1205, %v2095
    %v2097 = vand.u32 %v2096, 4294901760
    %2098 = vmatmul.mubr.f32.gmra.mxu0 %v2097
    %v2099 = vpop.f32.mrf.mxu0
    %v2100 = vadd.f32 %v1905, %v2099
    %v2101 = vpop.f32.mrf.mxu0
    %2102 = vmatprep.mubr.f32.mxu0 0.0
    %v2103 = vand.u32 %v1211, 4294901760
    %v2104 = vsub.f32 %v1211, %v2103
    %v2105 = vand.u32 %v2104, 4294901760
    %2106 = vmatmul.mubr.f32.gmra.mxu0 %v2105
    %v2107 = vpop.f32.mrf.mxu0
    %v2108 = vadd.f32 %v1912, %v2107
    %v2109 = vpop.f32.mrf.mxu0
    %2110 = vmatprep.mubr.f32.mxu0 0.0
    %v2111 = vand.u32 %v1217, 4294901760
    %v2112 = vsub.f32 %v1217, %v2111
    %v2113 = vand.u32 %v2112, 4294901760
    %2114 = vmatmul.mubr.f32.gmra.mxu0 %v2113
    %v2115 = vpop.f32.mrf.mxu0
    %v2116 = vadd.f32 %v1919, %v2115
    %v2117 = vpop.f32.mrf.mxu0
    %2118 = vmatprep.mubr.f32.mxu0 0.0
    %v2119 = vand.u32 %v1223, 4294901760
    %v2120 = vsub.f32 %v1223, %v2119
    %v2121 = vand.u32 %v2120, 4294901760
    %2122 = vmatmul.mubr.f32.gmra.mxu0 %v2121
    %v2123 = vpop.f32.mrf.mxu0
    %v2124 = vadd.f32 %v1926, %v2123
    %v2125 = vpop.f32.mrf.mxu0
    %2126 = vmatprep.mubr.f32.mxu0 0.0
    %v2127 = vand.u32 %v1229, 4294901760
    %v2128 = vsub.f32 %v1229, %v2127
    %v2129 = vand.u32 %v2128, 4294901760
    %2130 = vmatmul.mubr.f32.gmra.mxu0 %v2129
    %v2131 = vpop.f32.mrf.mxu0
    %v2132 = vadd.f32 %v1933, %v2131
    %v2133 = vpop.f32.mrf.mxu0
    %2134 = vmatprep.mubr.f32.mxu0 0.0
    %v2135 = vand.u32 %v1235, 4294901760
    %v2136 = vsub.f32 %v1235, %v2135
    %v2137 = vand.u32 %v2136, 4294901760
    %2138 = vmatmul.mubr.f32.gmra.mxu0 %v2137
    %v2139 = vpop.f32.mrf.mxu0
    %v2140 = vadd.f32 %v1940, %v2139
    %v2141 = vpop.f32.mrf.mxu0
    %2142 = vmatprep.mubr.f32.mxu0 0.0
    %v2143 = vand.u32 %v1241, 4294901760
    %v2144 = vsub.f32 %v1241, %v2143
    %v2145 = vand.u32 %v2144, 4294901760
    %2146 = vmatmul.mubr.f32.gmra.mxu0 %v2145
    %v2147 = vpop.f32.mrf.mxu0
    %v2148 = vadd.f32 %v1947, %v2147
    %v2149 = vpop.f32.mrf.mxu0
    %2150 = vmatprep.mubr.f32.mxu0 0.0
    %v2151 = vand.u32 %v1247, 4294901760
    %v2152 = vsub.f32 %v1247, %v2151
    %v2153 = vand.u32 %v2152, 4294901760
    %2154 = vmatmul.mubr.f32.gmra.mxu0 %v2153
    %v2155 = vpop.f32.mrf.mxu0
    %v2156 = vadd.f32 %v1954, %v2155
    %v2157 = vpop.f32.mrf.mxu0
    %2158 = vmatprep.mubr.f32.mxu0 0.0
    %v2159 = vand.u32 %v1253, 4294901760
    %v2160 = vsub.f32 %v1253, %v2159
    %v2161 = vand.u32 %v2160, 4294901760
    %2162 = vmatmul.mubr.f32.gmra.mxu0 %v2161
    %v2163 = vpop.f32.mrf.mxu0
    %v2164 = vadd.f32 %v1961, %v2163
    %v2165 = vpop.f32.mrf.mxu0
    %2166 = vmatprep.mubr.f32.mxu0 0.0
    %v2167 = vand.u32 %v1259, 4294901760
    %v2168 = vsub.f32 %v1259, %v2167
    %v2169 = vand.u32 %v2168, 4294901760
    %2170 = vmatmul.mubr.f32.gmra.mxu0 %v2169
    %v2171 = vpop.f32.mrf.mxu0
    %v2172 = vadd.f32 %v1968, %v2171
    %v2173 = vpop.f32.mrf.mxu0
    %2174 = vmatprep.mubr.f32.mxu0 0.0
    %v2175 = vand.u32 %v1265, 4294901760
    %v2176 = vsub.f32 %v1265, %v2175
    %v2177 = vand.u32 %v2176, 4294901760
    %2178 = vmatmul.mubr.f32.gmra.mxu0 %v2177
    %v2179 = vpop.f32.mrf.mxu0
    %v2180 = vadd.f32 %v1975, %v2179
    %v2181 = vpop.f32.mrf.mxu0
    %2182 = vmatprep.mubr.f32.mxu0 0.0
    %v2183 = vand.u32 %v1271, 4294901760
    %v2184 = vsub.f32 %v1271, %v2183
    %v2185 = vand.u32 %v2184, 4294901760
    %2186 = vmatmul.mubr.f32.gmra.mxu0 %v2185
    %v2187 = vpop.f32.mrf.mxu0
    %v2188 = vadd.f32 %v1982, %v2187
    %v2189 = vpop.f32.mrf.mxu0
    %2190 = vmatprep.mubr.f32.mxu0 0.0
    %v2191 = vand.u32 %v1277, 4294901760
    %v2192 = vsub.f32 %v1277, %v2191
    %v2193 = vand.u32 %v2192, 4294901760
    %2194 = vmatmul.mubr.f32.gmra.mxu0 %v2193
    %v2195 = vpop.f32.mrf.mxu0
    %v2196 = vadd.f32 %v1989, %v2195
    %v2197 = vpop.f32.mrf.mxu0
    %2198 = vmatprep.mubr.f32.mxu0 0.0
    %v2199 = vand.u32 %v1283, 4294901760
    %v2200 = vsub.f32 %v1283, %v2199
    %v2201 = vand.u32 %v2200, 4294901760
    %2202 = vmatmul.mubr.f32.gmra.mxu0 %v2201
    %v2203 = vpop.f32.mrf.mxu0
    %v2204 = vadd.f32 %v1996, %v2203
    %v2205 = vpop.f32.mrf.mxu0
    %2206 = vmatprep.mubr.f32.mxu0 0.0
    %v2207 = vand.u32 %v1289, 4294901760
    %v2208 = vsub.f32 %v1289, %v2207
    %v2209 = vand.u32 %v2208, 4294901760
    %2210 = vmatmul.mubr.f32.gmra.mxu0 %v2209
    %v2211 = vpop.f32.mrf.mxu0
    %v2212 = vadd.f32 %v2003, %v2211
    %v2213 = vpop.f32.mrf.mxu0
    %2214 = vdwg.mxu0
    %2215 = vmatprep.subr.mxu0 0.0
    %v2216 = vand.u32 %v1307, 4294901760
    %v2217 = vsub.f32 %v1307, %v2216
    %v2218 = vand.u32 %v2217, 4294901760
    %2219 = vmatpush1.msra.mxu0 %v2218
    %2220 = vmatprep.subr.mxu0 0.0
    %v2221 = vand.u32 %v1306, 4294901760
    %v2222 = vsub.f32 %v1306, %v2221
    %v2223 = vand.u32 %v2222, 4294901760
    %2224 = vmatpush1.msra.mxu0 %v2223
    %2225 = vmatprep.subr.mxu0 0.0
    %v2226 = vand.u32 %v1305, 4294901760
    %v2227 = vsub.f32 %v1305, %v2226
    %v2228 = vand.u32 %v2227, 4294901760
    %2229 = vmatpush1.msra.mxu0 %v2228
    %2230 = vmatprep.subr.mxu0 0.0
    %v2231 = vand.u32 %v1304, 4294901760
    %v2232 = vsub.f32 %v1304, %v2231
    %v2233 = vand.u32 %v2232, 4294901760
    %2234 = vmatpush1.msra.mxu0 %v2233
    %2235 = vmatprep.subr.mxu0 0.0
    %v2236 = vand.u32 %v1303, 4294901760
    %v2237 = vsub.f32 %v1303, %v2236
    %v2238 = vand.u32 %v2237, 4294901760
    %2239 = vmatpush1.msra.mxu0 %v2238
    %2240 = vmatprep.subr.mxu0 0.0
    %v2241 = vand.u32 %v1302, 4294901760
    %v2242 = vsub.f32 %v1302, %v2241
    %v2243 = vand.u32 %v2242, 4294901760
    %2244 = vmatpush1.msra.mxu0 %v2243
    %2245 = vmatprep.subr.mxu0 0.0
    %v2246 = vand.u32 %v1301, 4294901760
    %v2247 = vsub.f32 %v1301, %v2246
    %v2248 = vand.u32 %v2247, 4294901760
    %2249 = vmatpush1.msra.mxu0 %v2248
    %2250 = vmatprep.subr.mxu0 0.0
    %v2251 = vand.u32 %v1300, 4294901760
    %v2252 = vsub.f32 %v1300, %v2251
    %v2253 = vand.u32 %v2252, 4294901760
    %2254 = vmatpush1.msra.mxu0 %v2253
    %2255 = vmatprep.subr.mxu0 0.0
    %v2256 = vand.u32 %v1299, 4294901760
    %v2257 = vsub.f32 %v1299, %v2256
    %v2258 = vand.u32 %v2257, 4294901760
    %2259 = vmatpush1.msra.mxu0 %v2258
    %2260 = vmatprep.subr.mxu0 0.0
    %v2261 = vand.u32 %v1298, 4294901760
    %v2262 = vsub.f32 %v1298, %v2261
    %v2263 = vand.u32 %v2262, 4294901760
    %2264 = vmatpush1.msra.mxu0 %v2263
    %2265 = vmatprep.subr.mxu0 0.0
    %v2266 = vand.u32 %v1297, 4294901760
    %v2267 = vsub.f32 %v1297, %v2266
    %v2268 = vand.u32 %v2267, 4294901760
    %2269 = vmatpush1.msra.mxu0 %v2268
    %2270 = vmatprep.subr.mxu0 0.0
    %v2271 = vand.u32 %v1296, 4294901760
    %v2272 = vsub.f32 %v1296, %v2271
    %v2273 = vand.u32 %v2272, 4294901760
    %2274 = vmatpush1.msra.mxu0 %v2273
    %2275 = vmatprep.subr.mxu0 0.0
    %v2276 = vand.u32 %v1295, 4294901760
    %v2277 = vsub.f32 %v1295, %v2276
    %v2278 = vand.u32 %v2277, 4294901760
    %2279 = vmatpush1.msra.mxu0 %v2278
    %2280 = vmatprep.subr.mxu0 0.0
    %v2281 = vand.u32 %v1294, 4294901760
    %v2282 = vsub.f32 %v1294, %v2281
    %v2283 = vand.u32 %v2282, 4294901760
    %2284 = vmatpush1.msra.mxu0 %v2283
    %2285 = vmatprep.subr.mxu0 0.0
    %v2286 = vand.u32 %v1293, 4294901760
    %v2287 = vsub.f32 %v1293, %v2286
    %v2288 = vand.u32 %v2287, 4294901760
    %2289 = vmatpush1.msra.mxu0 %v2288
    %2290 = vmatprep.subr.mxu0 0.0
    %v2291 = vand.u32 %v1292, 4294901760
    %v2292 = vsub.f32 %v1292, %v2291
    %v2293 = vand.u32 %v2292, 4294901760
    %2294 = vmatpush1.msra.mxu0 %v2293
    %2295 = vmatprep.subr.mxu0 0.0
    %2296 = vmatpush2.msra.mxu0 0.0
    %2297 = vmatprep.subr.mxu0 0.0
    %2298 = vmatpush2.msra.mxu0 0.0
    %2299 = vmatprep.subr.mxu0 0.0
    %2300 = vmatpush2.msra.mxu0 0.0
    %2301 = vmatprep.subr.mxu0 0.0
    %2302 = vmatpush2.msra.mxu0 0.0
    %2303 = vmatprep.subr.mxu0 0.0
    %2304 = vmatpush2.msra.mxu0 0.0
    %2305 = vmatprep.subr.mxu0 0.0
    %2306 = vmatpush2.msra.mxu0 0.0
    %2307 = vmatprep.subr.mxu0 0.0
    %2308 = vmatpush2.msra.mxu0 0.0
    %2309 = vmatprep.subr.mxu0 0.0
    %2310 = vmatpush2.msra.mxu0 0.0
    %2311 = vmatprep.subr.mxu0 0.0
    %2312 = vmatpush2.msra.mxu0 0.0
    %2313 = vmatprep.subr.mxu0 0.0
    %2314 = vmatpush2.msra.mxu0 0.0
    %2315 = vmatprep.subr.mxu0 0.0
    %2316 = vmatpush2.msra.mxu0 0.0
    %2317 = vmatprep.subr.mxu0 0.0
    %2318 = vmatpush2.msra.mxu0 0.0
    %2319 = vmatprep.subr.mxu0 0.0
    %2320 = vmatpush2.msra.mxu0 0.0
    %2321 = vmatprep.subr.mxu0 0.0
    %2322 = vmatpush2.msra.mxu0 0.0
    %2323 = vmatprep.subr.mxu0 0.0
    %2324 = vmatpush2.msra.mxu0 0.0
    %2325 = vmatprep.subr.mxu0 0.0
    %2326 = vmatpush2.msra.mxu0 0.0
    %2327 = vmatprep.mubr.f32.mxu0 0.0
    %v2328 = vand.u32 %v1199, 4294901760
    %2329 = vmatmul.mubr.f32.gmra.mxu0 %v2328
    %v2330 = vpop.f32.mrf.mxu0
    %v2331 = vadd.f32 %v2092, %v2330
    %v2332 = vpop.f32.mrf.mxu0
    %2333 = vmatprep.mubr.f32.mxu0 0.0
    %v2334 = vand.u32 %v1205, 4294901760
    %2335 = vmatmul.mubr.f32.gmra.mxu0 %v2334
    %v2336 = vpop.f32.mrf.mxu0
    %v2337 = vadd.f32 %v2100, %v2336
    %v2338 = vpop.f32.mrf.mxu0
    %2339 = vmatprep.mubr.f32.mxu0 0.0
    %v2340 = vand.u32 %v1211, 4294901760
    %2341 = vmatmul.mubr.f32.gmra.mxu0 %v2340
    %v2342 = vpop.f32.mrf.mxu0
    %v2343 = vadd.f32 %v2108, %v2342
    %v2344 = vpop.f32.mrf.mxu0
    %2345 = vmatprep.mubr.f32.mxu0 0.0
    %v2346 = vand.u32 %v1217, 4294901760
    %2347 = vmatmul.mubr.f32.gmra.mxu0 %v2346
    %v2348 = vpop.f32.mrf.mxu0
    %v2349 = vadd.f32 %v2116, %v2348
    %v2350 = vpop.f32.mrf.mxu0
    %2351 = vmatprep.mubr.f32.mxu0 0.0
    %v2352 = vand.u32 %v1223, 4294901760
    %2353 = vmatmul.mubr.f32.gmra.mxu0 %v2352
    %v2354 = vpop.f32.mrf.mxu0
    %v2355 = vadd.f32 %v2124, %v2354
    %v2356 = vpop.f32.mrf.mxu0
    %2357 = vmatprep.mubr.f32.mxu0 0.0
    %v2358 = vand.u32 %v1229, 4294901760
    %2359 = vmatmul.mubr.f32.gmra.mxu0 %v2358
    %v2360 = vpop.f32.mrf.mxu0
    %v2361 = vadd.f32 %v2132, %v2360
    %v2362 = vpop.f32.mrf.mxu0
    %2363 = vmatprep.mubr.f32.mxu0 0.0
    %v2364 = vand.u32 %v1235, 4294901760
    %2365 = vmatmul.mubr.f32.gmra.mxu0 %v2364
    %v2366 = vpop.f32.mrf.mxu0
    %v2367 = vadd.f32 %v2140, %v2366
    %v2368 = vpop.f32.mrf.mxu0
    %2369 = vmatprep.mubr.f32.mxu0 0.0
    %v2370 = vand.u32 %v1241, 4294901760
    %2371 = vmatmul.mubr.f32.gmra.mxu0 %v2370
    %v2372 = vpop.f32.mrf.mxu0
    %v2373 = vadd.f32 %v2148, %v2372
    %v2374 = vpop.f32.mrf.mxu0
    %2375 = vmatprep.mubr.f32.mxu0 0.0
    %v2376 = vand.u32 %v1247, 4294901760
    %2377 = vmatmul.mubr.f32.gmra.mxu0 %v2376
    %v2378 = vpop.f32.mrf.mxu0
    %v2379 = vadd.f32 %v2156, %v2378
    %v2380 = vpop.f32.mrf.mxu0
    %2381 = vmatprep.mubr.f32.mxu0 0.0
    %v2382 = vand.u32 %v1253, 4294901760
    %2383 = vmatmul.mubr.f32.gmra.mxu0 %v2382
    %v2384 = vpop.f32.mrf.mxu0
    %v2385 = vadd.f32 %v2164, %v2384
    %v2386 = vpop.f32.mrf.mxu0
    %2387 = vmatprep.mubr.f32.mxu0 0.0
    %v2388 = vand.u32 %v1259, 4294901760
    %2389 = vmatmul.mubr.f32.gmra.mxu0 %v2388
    %v2390 = vpop.f32.mrf.mxu0
    %v2391 = vadd.f32 %v2172, %v2390
    %v2392 = vpop.f32.mrf.mxu0
    %2393 = vmatprep.mubr.f32.mxu0 0.0
    %v2394 = vand.u32 %v1265, 4294901760
    %2395 = vmatmul.mubr.f32.gmra.mxu0 %v2394
    %v2396 = vpop.f32.mrf.mxu0
    %v2397 = vadd.f32 %v2180, %v2396
    %v2398 = vpop.f32.mrf.mxu0
    %2399 = vmatprep.mubr.f32.mxu0 0.0
    %v2400 = vand.u32 %v1271, 4294901760
    %2401 = vmatmul.mubr.f32.gmra.mxu0 %v2400
    %v2402 = vpop.f32.mrf.mxu0
    %v2403 = vadd.f32 %v2188, %v2402
    %v2404 = vpop.f32.mrf.mxu0
    %2405 = vmatprep.mubr.f32.mxu0 0.0
    %v2406 = vand.u32 %v1277, 4294901760
    %2407 = vmatmul.mubr.f32.gmra.mxu0 %v2406
    %v2408 = vpop.f32.mrf.mxu0
    %v2409 = vadd.f32 %v2196, %v2408
    %v2410 = vpop.f32.mrf.mxu0
    %2411 = vmatprep.mubr.f32.mxu0 0.0
    %v2412 = vand.u32 %v1283, 4294901760
    %2413 = vmatmul.mubr.f32.gmra.mxu0 %v2412
    %v2414 = vpop.f32.mrf.mxu0
    %v2415 = vadd.f32 %v2204, %v2414
    %v2416 = vpop.f32.mrf.mxu0
    %2417 = vmatprep.mubr.f32.mxu0 0.0
    %v2418 = vand.u32 %v1289, 4294901760
    %2419 = vmatmul.mubr.f32.gmra.mxu0 %v2418
    %v2420 = vpop.f32.mrf.mxu0
    %v2421 = vadd.f32 %v2212, %v2420
    %v2422 = vpop.f32.mrf.mxu0
    %2423 = vdwg.mxu0
    %2424 = vmatprep.subr.mxu0 0.0
    %v2425 = vand.u32 %v1307, 4294901760
    %2426 = vmatpush1.msra.mxu0 %v2425
    %2427 = vmatprep.subr.mxu0 0.0
    %v2428 = vand.u32 %v1306, 4294901760
    %2429 = vmatpush1.msra.mxu0 %v2428
    %2430 = vmatprep.subr.mxu0 0.0
    %v2431 = vand.u32 %v1305, 4294901760
    %2432 = vmatpush1.msra.mxu0 %v2431
    %2433 = vmatprep.subr.mxu0 0.0
    %v2434 = vand.u32 %v1304, 4294901760
    %2435 = vmatpush1.msra.mxu0 %v2434
    %2436 = vmatprep.subr.mxu0 0.0
    %v2437 = vand.u32 %v1303, 4294901760
    %2438 = vmatpush1.msra.mxu0 %v2437
    %2439 = vmatprep.subr.mxu0 0.0
    %v2440 = vand.u32 %v1302, 4294901760
    %2441 = vmatpush1.msra.mxu0 %v2440
    %2442 = vmatprep.subr.mxu0 0.0
    %v2443 = vand.u32 %v1301, 4294901760
    %2444 = vmatpush1.msra.mxu0 %v2443
    %2445 = vmatprep.subr.mxu0 0.0
    %v2446 = vand.u32 %v1300, 4294901760
    %2447 = vmatpush1.msra.mxu0 %v2446
    %2448 = vmatprep.subr.mxu0 0.0
    %v2449 = vand.u32 %v1299, 4294901760
    %2450 = vmatpush1.msra.mxu0 %v2449
    %2451 = vmatprep.subr.mxu0 0.0
    %v2452 = vand.u32 %v1298, 4294901760
    %2453 = vmatpush1.msra.mxu0 %v2452
    %2454 = vmatprep.subr.mxu0 0.0
    %v2455 = vand.u32 %v1297, 4294901760
    %2456 = vmatpush1.msra.mxu0 %v2455
    %2457 = vmatprep.subr.mxu0 0.0
    %v2458 = vand.u32 %v1296, 4294901760
    %2459 = vmatpush1.msra.mxu0 %v2458
    %2460 = vmatprep.subr.mxu0 0.0
    %v2461 = vand.u32 %v1295, 4294901760
    %2462 = vmatpush1.msra.mxu0 %v2461
    %2463 = vmatprep.subr.mxu0 0.0
    %v2464 = vand.u32 %v1294, 4294901760
    %2465 = vmatpush1.msra.mxu0 %v2464
    %2466 = vmatprep.subr.mxu0 0.0
    %v2467 = vand.u32 %v1293, 4294901760
    %2468 = vmatpush1.msra.mxu0 %v2467
    %2469 = vmatprep.subr.mxu0 0.0
    %v2470 = vand.u32 %v1292, 4294901760
    %2471 = vmatpush1.msra.mxu0 %v2470
    %2472 = vmatprep.subr.mxu0 0.0
    %2473 = vmatpush2.msra.mxu0 0.0
    %2474 = vmatprep.subr.mxu0 0.0
    %2475 = vmatpush2.msra.mxu0 0.0
    %2476 = vmatprep.subr.mxu0 0.0
    %2477 = vmatpush2.msra.mxu0 0.0
    %2478 = vmatprep.subr.mxu0 0.0
    %2479 = vmatpush2.msra.mxu0 0.0
    %2480 = vmatprep.subr.mxu0 0.0
    %2481 = vmatpush2.msra.mxu0 0.0
    %2482 = vmatprep.subr.mxu0 0.0
    %2483 = vmatpush2.msra.mxu0 0.0
    %2484 = vmatprep.subr.mxu0 0.0
    %2485 = vmatpush2.msra.mxu0 0.0
    %2486 = vmatprep.subr.mxu0 0.0
    %2487 = vmatpush2.msra.mxu0 0.0
    %2488 = vmatprep.subr.mxu0 0.0
    %2489 = vmatpush2.msra.mxu0 0.0
    %2490 = vmatprep.subr.mxu0 0.0
    %2491 = vmatpush2.msra.mxu0 0.0
    %2492 = vmatprep.subr.mxu0 0.0
    %2493 = vmatpush2.msra.mxu0 0.0
    %2494 = vmatprep.subr.mxu0 0.0
    %2495 = vmatpush2.msra.mxu0 0.0
    %2496 = vmatprep.subr.mxu0 0.0
    %2497 = vmatpush2.msra.mxu0 0.0
    %2498 = vmatprep.subr.mxu0 0.0
    %2499 = vmatpush2.msra.mxu0 0.0
    %2500 = vmatprep.subr.mxu0 0.0
    %2501 = vmatpush2.msra.mxu0 0.0
    %2502 = vmatprep.subr.mxu0 0.0
    %2503 = vmatpush2.msra.mxu0 0.0
    %2504 = vmatprep.mubr.f32.mxu0 0.0
    %v2505 = vand.u32 %v1199, 4294901760
    %2506 = vmatmul.mubr.f32.gmra.mxu0 %v2505
    %v2507 = vpop.f32.mrf.mxu0
    %v2508 = vadd.f32 %v2331, %v2507
    %v2509 = vpop.f32.mrf.mxu0
    %2510 = vmatprep.mubr.f32.mxu0 0.0
    %v2511 = vand.u32 %v1205, 4294901760
    %2512 = vmatmul.mubr.f32.gmra.mxu0 %v2511
    %v2513 = vpop.f32.mrf.mxu0
    %v2514 = vadd.f32 %v2337, %v2513
    %v2515 = vpop.f32.mrf.mxu0
    %2516 = vmatprep.mubr.f32.mxu0 0.0
    %v2517 = vand.u32 %v1211, 4294901760
    %2518 = vmatmul.mubr.f32.gmra.mxu0 %v2517
    %v2519 = vpop.f32.mrf.mxu0
    %v2520 = vadd.f32 %v2343, %v2519
    %v2521 = vpop.f32.mrf.mxu0
    %2522 = vmatprep.mubr.f32.mxu0 0.0
    %v2523 = vand.u32 %v1217, 4294901760
    %2524 = vmatmul.mubr.f32.gmra.mxu0 %v2523
    %v2525 = vpop.f32.mrf.mxu0
    %v2526 = vadd.f32 %v2349, %v2525
    %v2527 = vpop.f32.mrf.mxu0
    %2528 = vmatprep.mubr.f32.mxu0 0.0
    %v2529 = vand.u32 %v1223, 4294901760
    %2530 = vmatmul.mubr.f32.gmra.mxu0 %v2529
    %v2531 = vpop.f32.mrf.mxu0
    %v2532 = vadd.f32 %v2355, %v2531
    %v2533 = vpop.f32.mrf.mxu0
    %2534 = vmatprep.mubr.f32.mxu0 0.0
    %v2535 = vand.u32 %v1229, 4294901760
    %2536 = vmatmul.mubr.f32.gmra.mxu0 %v2535
    %v2537 = vpop.f32.mrf.mxu0
    %v2538 = vadd.f32 %v2361, %v2537
    %v2539 = vpop.f32.mrf.mxu0
    %2540 = vmatprep.mubr.f32.mxu0 0.0
    %v2541 = vand.u32 %v1235, 4294901760
    %2542 = vmatmul.mubr.f32.gmra.mxu0 %v2541
    %v2543 = vpop.f32.mrf.mxu0
    %v2544 = vadd.f32 %v2367, %v2543
    %v2545 = vpop.f32.mrf.mxu0
    %2546 = vmatprep.mubr.f32.mxu0 0.0
    %v2547 = vand.u32 %v1241, 4294901760
    %2548 = vmatmul.mubr.f32.gmra.mxu0 %v2547
    %v2549 = vpop.f32.mrf.mxu0
    %v2550 = vadd.f32 %v2373, %v2549
    %v2551 = vpop.f32.mrf.mxu0
    %2552 = vmatprep.mubr.f32.mxu0 0.0
    %v2553 = vand.u32 %v1247, 4294901760
    %2554 = vmatmul.mubr.f32.gmra.mxu0 %v2553
    %v2555 = vpop.f32.mrf.mxu0
    %v2556 = vadd.f32 %v2379, %v2555
    %v2557 = vpop.f32.mrf.mxu0
    %2558 = vmatprep.mubr.f32.mxu0 0.0
    %v2559 = vand.u32 %v1253, 4294901760
    %2560 = vmatmul.mubr.f32.gmra.mxu0 %v2559
    %v2561 = vpop.f32.mrf.mxu0
    %v2562 = vadd.f32 %v2385, %v2561
    %v2563 = vpop.f32.mrf.mxu0
    %2564 = vmatprep.mubr.f32.mxu0 0.0
    %v2565 = vand.u32 %v1259, 4294901760
    %2566 = vmatmul.mubr.f32.gmra.mxu0 %v2565
    %v2567 = vpop.f32.mrf.mxu0
    %v2568 = vadd.f32 %v2391, %v2567
    %v2569 = vpop.f32.mrf.mxu0
    %2570 = vmatprep.mubr.f32.mxu0 0.0
    %v2571 = vand.u32 %v1265, 4294901760
    %2572 = vmatmul.mubr.f32.gmra.mxu0 %v2571
    %v2573 = vpop.f32.mrf.mxu0
    %v2574 = vadd.f32 %v2397, %v2573
    %v2575 = vpop.f32.mrf.mxu0
    %2576 = vmatprep.mubr.f32.mxu0 0.0
    %v2577 = vand.u32 %v1271, 4294901760
    %2578 = vmatmul.mubr.f32.gmra.mxu0 %v2577
    %v2579 = vpop.f32.mrf.mxu0
    %v2580 = vadd.f32 %v2403, %v2579
    %v2581 = vpop.f32.mrf.mxu0
    %2582 = vmatprep.mubr.f32.mxu0 0.0
    %v2583 = vand.u32 %v1277, 4294901760
    %2584 = vmatmul.mubr.f32.gmra.mxu0 %v2583
    %v2585 = vpop.f32.mrf.mxu0
    %v2586 = vadd.f32 %v2409, %v2585
    %v2587 = vpop.f32.mrf.mxu0
    %2588 = vmatprep.mubr.f32.mxu0 0.0
    %v2589 = vand.u32 %v1283, 4294901760
    %2590 = vmatmul.mubr.f32.gmra.mxu0 %v2589
    %v2591 = vpop.f32.mrf.mxu0
    %v2592 = vadd.f32 %v2415, %v2591
    %v2593 = vpop.f32.mrf.mxu0
    %2594 = vmatprep.mubr.f32.mxu0 0.0
    %v2595 = vand.u32 %v1289, 4294901760
    %2596 = vmatmul.mubr.f32.gmra.mxu0 %v2595
    %v2597 = vpop.f32.mrf.mxu0
    %v2598 = vadd.f32 %v2421, %v2597
    %v2599 = vpop.f32.mrf.mxu0
    %2600 = vdwg.mxu0
    %v2601 = vtanh.pop %v2508
    %v2602 = vtanh.pop %v2514
    %v2603 = vtanh.pop %v2520
    %v2604 = vtanh.pop %v2526
    %v2605 = vtanh.pop %v2532
    %v2606 = vtanh.pop %v2538
    %v2607 = vtanh.pop %v2544
    %v2608 = vtanh.pop %v2550
    %v2609 = vtanh.pop %v2556
    %v2610 = vtanh.pop %v2562
    %v2611 = vtanh.pop %v2568
    %v2612 = vtanh.pop %v2574
    %v2613 = vtanh.pop %v2580
    %v2614 = vtanh.pop %v2586
    %v2615 = vtanh.pop %v2592
    %v2616 = vtanh.pop %v2598
    %v2617 = vld [vmem:[#allocation7] sm:$0xff]
    %v2618 = vld [vmem:[#allocation7 + $0x8] sm:$0xff]
    %v2619 = vld [vmem:[#allocation7 + $0x10] sm:$0xff]
    %v2620 = vld [vmem:[#allocation7 + $0x18] sm:$0xff]
    %v2621 = vld [vmem:[#allocation7 + $0x20] sm:$0xff]
    %v2622 = vld [vmem:[#allocation7 + $0x28] sm:$0xff]
    %v2623 = vld [vmem:[#allocation7 + $0x30] sm:$0xff]
    %v2624 = vld [vmem:[#allocation7 + $0x38] sm:$0xff]
    %v2625 = vld [vmem:[#allocation7 + $0x40] sm:$0xff]
    %v2626 = vld [vmem:[#allocation7 + $0x48] sm:$0xff]
    %v2627 = vld [vmem:[#allocation7 + $0x50] sm:$0xff]
    %v2628 = vld [vmem:[#allocation7 + $0x58] sm:$0xff]
    %v2629 = vld [vmem:[#allocation7 + $0x60] sm:$0xff]
    %v2630 = vld [vmem:[#allocation7 + $0x68] sm:$0xff]
    %v2631 = vld [vmem:[#allocation7 + $0x70] sm:$0xff]
    %v2632 = vld [vmem:[#allocation7 + $0x78] sm:$0xff]
    %v2633 = vld [vmem:[%s5] sm:$0x1]
    %v2635 = vlaneseq
    %v2636 = vshrl.u32 %v2635, 7
    %v2637 = vsub.s32 0, %v2636
    %v2638 = vrot.slane %v2633, %v2637
    %2640 = vmatprep.subr.mxu0 0.0
    %v2641 = vand.u32 %v2632, 4294901760
    %2642 = vmatpush1.msra.mxu0 %v2641
    %2643 = vmatprep.subr.mxu0 0.0
    %v2644 = vand.u32 %v2631, 4294901760
    %2645 = vmatpush1.msra.mxu0 %v2644
    %2646 = vmatprep.subr.mxu0 0.0
    %v2647 = vand.u32 %v2630, 4294901760
    %2648 = vmatpush1.msra.mxu0 %v2647
    %2649 = vmatprep.subr.mxu0 0.0
    %v2650 = vand.u32 %v2629, 4294901760
    %2651 = vmatpush1.msra.mxu0 %v2650
    %2652 = vmatprep.subr.mxu0 0.0
    %v2653 = vand.u32 %v2628, 4294901760
    %2654 = vmatpush1.msra.mxu0 %v2653
    %2655 = vmatprep.subr.mxu0 0.0
    %v2656 = vand.u32 %v2627, 4294901760
    %2657 = vmatpush1.msra.mxu0 %v2656
    %2658 = vmatprep.subr.mxu0 0.0
    %v2659 = vand.u32 %v2626, 4294901760
    %2660 = vmatpush1.msra.mxu0 %v2659
    %2661 = vmatprep.subr.mxu0 0.0
    %v2662 = vand.u32 %v2625, 4294901760
    %2663 = vmatpush1.msra.mxu0 %v2662
    %2664 = vmatprep.subr.mxu0 0.0
    %v2665 = vand.u32 %v2624, 4294901760
    %2666 = vmatpush1.msra.mxu0 %v2665
    %2667 = vmatprep.subr.mxu0 0.0
    %v2668 = vand.u32 %v2623, 4294901760
    %2669 = vmatpush1.msra.mxu0 %v2668
    %2670 = vmatprep.subr.mxu0 0.0
    %v2671 = vand.u32 %v2622, 4294901760
    %2672 = vmatpush1.msra.mxu0 %v2671
    %2673 = vmatprep.subr.mxu0 0.0
    %v2674 = vand.u32 %v2621, 4294901760
    %2675 = vmatpush1.msra.mxu0 %v2674
    %2676 = vmatprep.subr.mxu0 0.0
    %v2677 = vand.u32 %v2620, 4294901760
    %2678 = vmatpush1.msra.mxu0 %v2677
    %2679 = vmatprep.subr.mxu0 0.0
    %v2680 = vand.u32 %v2619, 4294901760
    %2681 = vmatpush1.msra.mxu0 %v2680
    %2682 = vmatprep.subr.mxu0 0.0
    %v2683 = vand.u32 %v2618, 4294901760
    %2684 = vmatpush1.msra.mxu0 %v2683
    %2685 = vmatprep.subr.mxu0 0.0
    %v2686 = vand.u32 %v2617, 4294901760
    %2687 = vmatpush1.msra.mxu0 %v2686
    %2688 = vmatprep.subr.mxu0 0.0
    %2689 = vmatpush2.msra.mxu0 0.0
    %2690 = vmatprep.subr.mxu0 0.0
    %2691 = vmatpush2.msra.mxu0 0.0
    %2692 = vmatprep.subr.mxu0 0.0
    %2693 = vmatpush2.msra.mxu0 0.0
    %2694 = vmatprep.subr.mxu0 0.0
    %2695 = vmatpush2.msra.mxu0 0.0
    %2696 = vmatprep.subr.mxu0 0.0
    %2697 = vmatpush2.msra.mxu0 0.0
    %2698 = vmatprep.subr.mxu0 0.0
    %2699 = vmatpush2.msra.mxu0 0.0
    %2700 = vmatprep.subr.mxu0 0.0
    %2701 = vmatpush2.msra.mxu0 0.0
    %2702 = vmatprep.subr.mxu0 0.0
    %2703 = vmatpush2.msra.mxu0 0.0
    %2704 = vmatprep.subr.mxu0 0.0
    %2705 = vmatpush2.msra.mxu0 0.0
    %2706 = vmatprep.subr.mxu0 0.0
    %2707 = vmatpush2.msra.mxu0 0.0
    %2708 = vmatprep.subr.mxu0 0.0
    %2709 = vmatpush2.msra.mxu0 0.0
    %2710 = vmatprep.subr.mxu0 0.0
    %2711 = vmatpush2.msra.mxu0 0.0
    %2712 = vmatprep.subr.mxu0 0.0
    %2713 = vmatpush2.msra.mxu0 0.0
    %2714 = vmatprep.subr.mxu0 0.0
    %2715 = vmatpush2.msra.mxu0 0.0
    %2716 = vmatprep.subr.mxu0 0.0
    %2717 = vmatpush2.msra.mxu0 0.0
    %2718 = vmatprep.subr.mxu0 0.0
    %2719 = vmatpush2.msra.mxu0 0.0
    %2720 = vmatprep.mubr.f32.mxu0 0.0
    %v2721 = vand.u32 %v2601, 4294901760
    %v2722 = vsub.f32 %v2601, %v2721
    %v2723 = vand.u32 %v2722, 4294901760
    %v2724 = vsub.f32 %v2722, %v2723
    %v2725 = vand.u32 %v2724, 4294901760
    %2726 = vmatmul.mubr.f32.gmra.mxu0 %v2725
    %v2727 = vpop.f32.mrf.mxu0
    %v2728 = vadd.f32 %v2638, %v2727
    %v2729 = vpop.f32.mrf.mxu0
    %2730 = vmatprep.mubr.f32.mxu0 0.0
    %v2731 = vand.u32 %v2602, 4294901760
    %v2732 = vsub.f32 %v2602, %v2731
    %v2733 = vand.u32 %v2732, 4294901760
    %v2734 = vsub.f32 %v2732, %v2733
    %v2735 = vand.u32 %v2734, 4294901760
    %2736 = vmatmul.mubr.f32.gmra.mxu0 %v2735
    %v2737 = vpop.f32.mrf.mxu0
    %v2738 = vadd.f32 %v2638, %v2737
    %v2739 = vpop.f32.mrf.mxu0
    %2740 = vmatprep.mubr.f32.mxu0 0.0
    %v2741 = vand.u32 %v2603, 4294901760
    %v2742 = vsub.f32 %v2603, %v2741
    %v2743 = vand.u32 %v2742, 4294901760
    %v2744 = vsub.f32 %v2742, %v2743
    %v2745 = vand.u32 %v2744, 4294901760
    %2746 = vmatmul.mubr.f32.gmra.mxu0 %v2745
    %v2747 = vpop.f32.mrf.mxu0
    %v2748 = vadd.f32 %v2638, %v2747
    %v2749 = vpop.f32.mrf.mxu0
    %2750 = vmatprep.mubr.f32.mxu0 0.0
    %v2751 = vand.u32 %v2604, 4294901760
    %v2752 = vsub.f32 %v2604, %v2751
    %v2753 = vand.u32 %v2752, 4294901760
    %v2754 = vsub.f32 %v2752, %v2753
    %v2755 = vand.u32 %v2754, 4294901760
    %2756 = vmatmul.mubr.f32.gmra.mxu0 %v2755
    %v2757 = vpop.f32.mrf.mxu0
    %v2758 = vadd.f32 %v2638, %v2757
    %v2759 = vpop.f32.mrf.mxu0
    %2760 = vmatprep.mubr.f32.mxu0 0.0
    %v2761 = vand.u32 %v2605, 4294901760
    %v2762 = vsub.f32 %v2605, %v2761
    %v2763 = vand.u32 %v2762, 4294901760
    %v2764 = vsub.f32 %v2762, %v2763
    %v2765 = vand.u32 %v2764, 4294901760
    %2766 = vmatmul.mubr.f32.gmra.mxu0 %v2765
    %v2767 = vpop.f32.mrf.mxu0
    %v2768 = vadd.f32 %v2638, %v2767
    %v2769 = vpop.f32.mrf.mxu0
    %2770 = vmatprep.mubr.f32.mxu0 0.0
    %v2771 = vand.u32 %v2606, 4294901760
    %v2772 = vsub.f32 %v2606, %v2771
    %v2773 = vand.u32 %v2772, 4294901760
    %v2774 = vsub.f32 %v2772, %v2773
    %v2775 = vand.u32 %v2774, 4294901760
    %2776 = vmatmul.mubr.f32.gmra.mxu0 %v2775
    %v2777 = vpop.f32.mrf.mxu0
    %v2778 = vadd.f32 %v2638, %v2777
    %v2779 = vpop.f32.mrf.mxu0
    %2780 = vmatprep.mubr.f32.mxu0 0.0
    %v2781 = vand.u32 %v2607, 4294901760
    %v2782 = vsub.f32 %v2607, %v2781
    %v2783 = vand.u32 %v2782, 4294901760
    %v2784 = vsub.f32 %v2782, %v2783
    %v2785 = vand.u32 %v2784, 4294901760
    %2786 = vmatmul.mubr.f32.gmra.mxu0 %v2785
    %v2787 = vpop.f32.mrf.mxu0
    %v2788 = vadd.f32 %v2638, %v2787
    %v2789 = vpop.f32.mrf.mxu0
    %2790 = vmatprep.mubr.f32.mxu0 0.0
    %v2791 = vand.u32 %v2608, 4294901760
    %v2792 = vsub.f32 %v2608, %v2791
    %v2793 = vand.u32 %v2792, 4294901760
    %v2794 = vsub.f32 %v2792, %v2793
    %v2795 = vand.u32 %v2794, 4294901760
    %2796 = vmatmul.mubr.f32.gmra.mxu0 %v2795
    %v2797 = vpop.f32.mrf.mxu0
    %v2798 = vadd.f32 %v2638, %v2797
    %v2799 = vpop.f32.mrf.mxu0
    %2800 = vmatprep.mubr.f32.mxu0 0.0
    %v2801 = vand.u32 %v2609, 4294901760
    %v2802 = vsub.f32 %v2609, %v2801
    %v2803 = vand.u32 %v2802, 4294901760
    %v2804 = vsub.f32 %v2802, %v2803
    %v2805 = vand.u32 %v2804, 4294901760
    %2806 = vmatmul.mubr.f32.gmra.mxu0 %v2805
    %v2807 = vpop.f32.mrf.mxu0
    %v2808 = vadd.f32 %v2638, %v2807
    %v2809 = vpop.f32.mrf.mxu0
    %2810 = vmatprep.mubr.f32.mxu0 0.0
    %v2811 = vand.u32 %v2610, 4294901760
    %v2812 = vsub.f32 %v2610, %v2811
    %v2813 = vand.u32 %v2812, 4294901760
    %v2814 = vsub.f32 %v2812, %v2813
    %v2815 = vand.u32 %v2814, 4294901760
    %2816 = vmatmul.mubr.f32.gmra.mxu0 %v2815
    %v2817 = vpop.f32.mrf.mxu0
    %v2818 = vadd.f32 %v2638, %v2817
    %v2819 = vpop.f32.mrf.mxu0
    %2820 = vmatprep.mubr.f32.mxu0 0.0
    %v2821 = vand.u32 %v2611, 4294901760
    %v2822 = vsub.f32 %v2611, %v2821
    %v2823 = vand.u32 %v2822, 4294901760
    %v2824 = vsub.f32 %v2822, %v2823
    %v2825 = vand.u32 %v2824, 4294901760
    %2826 = vmatmul.mubr.f32.gmra.mxu0 %v2825
    %v2827 = vpop.f32.mrf.mxu0
    %v2828 = vadd.f32 %v2638, %v2827
    %v2829 = vpop.f32.mrf.mxu0
    %2830 = vmatprep.mubr.f32.mxu0 0.0
    %v2831 = vand.u32 %v2612, 4294901760
    %v2832 = vsub.f32 %v2612, %v2831
    %v2833 = vand.u32 %v2832, 4294901760
    %v2834 = vsub.f32 %v2832, %v2833
    %v2835 = vand.u32 %v2834, 4294901760
    %2836 = vmatmul.mubr.f32.gmra.mxu0 %v2835
    %v2837 = vpop.f32.mrf.mxu0
    %v2838 = vadd.f32 %v2638, %v2837
    %v2839 = vpop.f32.mrf.mxu0
    %2840 = vmatprep.mubr.f32.mxu0 0.0
    %v2841 = vand.u32 %v2613, 4294901760
    %v2842 = vsub.f32 %v2613, %v2841
    %v2843 = vand.u32 %v2842, 4294901760
    %v2844 = vsub.f32 %v2842, %v2843
    %v2845 = vand.u32 %v2844, 4294901760
    %2846 = vmatmul.mubr.f32.gmra.mxu0 %v2845
    %v2847 = vpop.f32.mrf.mxu0
    %v2848 = vadd.f32 %v2638, %v2847
    %v2849 = vpop.f32.mrf.mxu0
    %2850 = vmatprep.mubr.f32.mxu0 0.0
    %v2851 = vand.u32 %v2614, 4294901760
    %v2852 = vsub.f32 %v2614, %v2851
    %v2853 = vand.u32 %v2852, 4294901760
    %v2854 = vsub.f32 %v2852, %v2853
    %v2855 = vand.u32 %v2854, 4294901760
    %2856 = vmatmul.mubr.f32.gmra.mxu0 %v2855
    %v2857 = vpop.f32.mrf.mxu0
    %v2858 = vadd.f32 %v2638, %v2857
    %v2859 = vpop.f32.mrf.mxu0
    %2860 = vmatprep.mubr.f32.mxu0 0.0
    %v2861 = vand.u32 %v2615, 4294901760
    %v2862 = vsub.f32 %v2615, %v2861
    %v2863 = vand.u32 %v2862, 4294901760
    %v2864 = vsub.f32 %v2862, %v2863
    %v2865 = vand.u32 %v2864, 4294901760
    %2866 = vmatmul.mubr.f32.gmra.mxu0 %v2865
    %v2867 = vpop.f32.mrf.mxu0
    %v2868 = vadd.f32 %v2638, %v2867
    %v2869 = vpop.f32.mrf.mxu0
    %2870 = vmatprep.mubr.f32.mxu0 0.0
    %v2871 = vand.u32 %v2616, 4294901760
    %v2872 = vsub.f32 %v2616, %v2871
    %v2873 = vand.u32 %v2872, 4294901760
    %v2874 = vsub.f32 %v2872, %v2873
    %v2875 = vand.u32 %v2874, 4294901760
    %2876 = vmatmul.mubr.f32.gmra.mxu0 %v2875
    %v2877 = vpop.f32.mrf.mxu0
    %v2878 = vadd.f32 %v2638, %v2877
    %v2879 = vpop.f32.mrf.mxu0
    %2880 = vdwg.mxu0
    %2881 = vmatprep.subr.mxu0 0.0
    %v2882 = vand.u32 %v2632, 4294901760
    %v2883 = vsub.f32 %v2632, %v2882
    %v2884 = vand.u32 %v2883, 4294901760
    %v2885 = vsub.f32 %v2883, %v2884
    %v2886 = vand.u32 %v2885, 4294901760
    %2887 = vmatpush1.msra.mxu0 %v2886
    %2888 = vmatprep.subr.mxu0 0.0
    %v2889 = vand.u32 %v2631, 4294901760
    %v2890 = vsub.f32 %v2631, %v2889
    %v2891 = vand.u32 %v2890, 4294901760
    %v2892 = vsub.f32 %v2890, %v2891
    %v2893 = vand.u32 %v2892, 4294901760
    %2894 = vmatpush1.msra.mxu0 %v2893
    %2895 = vmatprep.subr.mxu0 0.0
    %v2896 = vand.u32 %v2630, 4294901760
    %v2897 = vsub.f32 %v2630, %v2896
    %v2898 = vand.u32 %v2897, 4294901760
    %v2899 = vsub.f32 %v2897, %v2898
    %v2900 = vand.u32 %v2899, 4294901760
    %2901 = vmatpush1.msra.mxu0 %v2900
    %2902 = vmatprep.subr.mxu0 0.0
    %v2903 = vand.u32 %v2629, 4294901760
    %v2904 = vsub.f32 %v2629, %v2903
    %v2905 = vand.u32 %v2904, 4294901760
    %v2906 = vsub.f32 %v2904, %v2905
    %v2907 = vand.u32 %v2906, 4294901760
    %2908 = vmatpush1.msra.mxu0 %v2907
    %2909 = vmatprep.subr.mxu0 0.0
    %v2910 = vand.u32 %v2628, 4294901760
    %v2911 = vsub.f32 %v2628, %v2910
    %v2912 = vand.u32 %v2911, 4294901760
    %v2913 = vsub.f32 %v2911, %v2912
    %v2914 = vand.u32 %v2913, 4294901760
    %2915 = vmatpush1.msra.mxu0 %v2914
    %2916 = vmatprep.subr.mxu0 0.0
    %v2917 = vand.u32 %v2627, 4294901760
    %v2918 = vsub.f32 %v2627, %v2917
    %v2919 = vand.u32 %v2918, 4294901760
    %v2920 = vsub.f32 %v2918, %v2919
    %v2921 = vand.u32 %v2920, 4294901760
    %2922 = vmatpush1.msra.mxu0 %v2921
    %2923 = vmatprep.subr.mxu0 0.0
    %v2924 = vand.u32 %v2626, 4294901760
    %v2925 = vsub.f32 %v2626, %v2924
    %v2926 = vand.u32 %v2925, 4294901760
    %v2927 = vsub.f32 %v2925, %v2926
    %v2928 = vand.u32 %v2927, 4294901760
    %2929 = vmatpush1.msra.mxu0 %v2928
    %2930 = vmatprep.subr.mxu0 0.0
    %v2931 = vand.u32 %v2625, 4294901760
    %v2932 = vsub.f32 %v2625, %v2931
    %v2933 = vand.u32 %v2932, 4294901760
    %v2934 = vsub.f32 %v2932, %v2933
    %v2935 = vand.u32 %v2934, 4294901760
    %2936 = vmatpush1.msra.mxu0 %v2935
    %2937 = vmatprep.subr.mxu0 0.0
    %v2938 = vand.u32 %v2624, 4294901760
    %v2939 = vsub.f32 %v2624, %v2938
    %v2940 = vand.u32 %v2939, 4294901760
    %v2941 = vsub.f32 %v2939, %v2940
    %v2942 = vand.u32 %v2941, 4294901760
    %2943 = vmatpush1.msra.mxu0 %v2942
    %2944 = vmatprep.subr.mxu0 0.0
    %v2945 = vand.u32 %v2623, 4294901760
    %v2946 = vsub.f32 %v2623, %v2945
    %v2947 = vand.u32 %v2946, 4294901760
    %v2948 = vsub.f32 %v2946, %v2947
    %v2949 = vand.u32 %v2948, 4294901760
    %2950 = vmatpush1.msra.mxu0 %v2949
    %2951 = vmatprep.subr.mxu0 0.0
    %v2952 = vand.u32 %v2622, 4294901760
    %v2953 = vsub.f32 %v2622, %v2952
    %v2954 = vand.u32 %v2953, 4294901760
    %v2955 = vsub.f32 %v2953, %v2954
    %v2956 = vand.u32 %v2955, 4294901760
    %2957 = vmatpush1.msra.mxu0 %v2956
    %2958 = vmatprep.subr.mxu0 0.0
    %v2959 = vand.u32 %v2621, 4294901760
    %v2960 = vsub.f32 %v2621, %v2959
    %v2961 = vand.u32 %v2960, 4294901760
    %v2962 = vsub.f32 %v2960, %v2961
    %v2963 = vand.u32 %v2962, 4294901760
    %2964 = vmatpush1.msra.mxu0 %v2963
    %2965 = vmatprep.subr.mxu0 0.0
    %v2966 = vand.u32 %v2620, 4294901760
    %v2967 = vsub.f32 %v2620, %v2966
    %v2968 = vand.u32 %v2967, 4294901760
    %v2969 = vsub.f32 %v2967, %v2968
    %v2970 = vand.u32 %v2969, 4294901760
    %2971 = vmatpush1.msra.mxu0 %v2970
    %2972 = vmatprep.subr.mxu0 0.0
    %v2973 = vand.u32 %v2619, 4294901760
    %v2974 = vsub.f32 %v2619, %v2973
    %v2975 = vand.u32 %v2974, 4294901760
    %v2976 = vsub.f32 %v2974, %v2975
    %v2977 = vand.u32 %v2976, 4294901760
    %2978 = vmatpush1.msra.mxu0 %v2977
    %2979 = vmatprep.subr.mxu0 0.0
    %v2980 = vand.u32 %v2618, 4294901760
    %v2981 = vsub.f32 %v2618, %v2980
    %v2982 = vand.u32 %v2981, 4294901760
    %v2983 = vsub.f32 %v2981, %v2982
    %v2984 = vand.u32 %v2983, 4294901760
    %2985 = vmatpush1.msra.mxu0 %v2984
    %2986 = vmatprep.subr.mxu0 0.0
    %v2987 = vand.u32 %v2617, 4294901760
    %v2988 = vsub.f32 %v2617, %v2987
    %v2989 = vand.u32 %v2988, 4294901760
    %v2990 = vsub.f32 %v2988, %v2989
    %v2991 = vand.u32 %v2990, 4294901760
    %2992 = vmatpush1.msra.mxu0 %v2991
    %2993 = vmatprep.subr.mxu0 0.0
    %2994 = vmatpush2.msra.mxu0 0.0
    %2995 = vmatprep.subr.mxu0 0.0
    %2996 = vmatpush2.msra.mxu0 0.0
    %2997 = vmatprep.subr.mxu0 0.0
    %2998 = vmatpush2.msra.mxu0 0.0
    %2999 = vmatprep.subr.mxu0 0.0
    %3000 = vmatpush2.msra.mxu0 0.0
    %3001 = vmatprep.subr.mxu0 0.0
    %3002 = vmatpush2.msra.mxu0 0.0
    %3003 = vmatprep.subr.mxu0 0.0
    %3004 = vmatpush2.msra.mxu0 0.0
    %3005 = vmatprep.subr.mxu0 0.0
    %3006 = vmatpush2.msra.mxu0 0.0
    %3007 = vmatprep.subr.mxu0 0.0
    %3008 = vmatpush2.msra.mxu0 0.0
    %3009 = vmatprep.subr.mxu0 0.0
    %3010 = vmatpush2.msra.mxu0 0.0
    %3011 = vmatprep.subr.mxu0 0.0
    %3012 = vmatpush2.msra.mxu0 0.0
    %3013 = vmatprep.subr.mxu0 0.0
    %3014 = vmatpush2.msra.mxu0 0.0
    %3015 = vmatprep.subr.mxu0 0.0
    %3016 = vmatpush2.msra.mxu0 0.0
    %3017 = vmatprep.subr.mxu0 0.0
    %3018 = vmatpush2.msra.mxu0 0.0
    %3019 = vmatprep.subr.mxu0 0.0
    %3020 = vmatpush2.msra.mxu0 0.0
    %3021 = vmatprep.subr.mxu0 0.0
    %3022 = vmatpush2.msra.mxu0 0.0
    %3023 = vmatprep.subr.mxu0 0.0
    %3024 = vmatpush2.msra.mxu0 0.0
    %3025 = vmatprep.mubr.f32.mxu0 0.0
    %v3026 = vand.u32 %v2601, 4294901760
    %3027 = vmatmul.mubr.f32.gmra.mxu0 %v3026
    %v3028 = vpop.f32.mrf.mxu0
    %v3029 = vadd.f32 %v2728, %v3028
    %v3030 = vpop.f32.mrf.mxu0
    %3031 = vmatprep.mubr.f32.mxu0 0.0
    %v3032 = vand.u32 %v2602, 4294901760
    %3033 = vmatmul.mubr.f32.gmra.mxu0 %v3032
    %v3034 = vpop.f32.mrf.mxu0
    %v3035 = vadd.f32 %v2738, %v3034
    %v3036 = vpop.f32.mrf.mxu0
    %3037 = vmatprep.mubr.f32.mxu0 0.0
    %v3038 = vand.u32 %v2603, 4294901760
    %3039 = vmatmul.mubr.f32.gmra.mxu0 %v3038
    %v3040 = vpop.f32.mrf.mxu0
    %v3041 = vadd.f32 %v2748, %v3040
    %v3042 = vpop.f32.mrf.mxu0
    %3043 = vmatprep.mubr.f32.mxu0 0.0
    %v3044 = vand.u32 %v2604, 4294901760
    %3045 = vmatmul.mubr.f32.gmra.mxu0 %v3044
    %v3046 = vpop.f32.mrf.mxu0
    %v3047 = vadd.f32 %v2758, %v3046
    %v3048 = vpop.f32.mrf.mxu0
    %3049 = vmatprep.mubr.f32.mxu0 0.0
    %v3050 = vand.u32 %v2605, 4294901760
    %3051 = vmatmul.mubr.f32.gmra.mxu0 %v3050
    %v3052 = vpop.f32.mrf.mxu0
    %v3053 = vadd.f32 %v2768, %v3052
    %v3054 = vpop.f32.mrf.mxu0
    %3055 = vmatprep.mubr.f32.mxu0 0.0
    %v3056 = vand.u32 %v2606, 4294901760
    %3057 = vmatmul.mubr.f32.gmra.mxu0 %v3056
    %v3058 = vpop.f32.mrf.mxu0
    %v3059 = vadd.f32 %v2778, %v3058
    %v3060 = vpop.f32.mrf.mxu0
    %3061 = vmatprep.mubr.f32.mxu0 0.0
    %v3062 = vand.u32 %v2607, 4294901760
    %3063 = vmatmul.mubr.f32.gmra.mxu0 %v3062
    %v3064 = vpop.f32.mrf.mxu0
    %v3065 = vadd.f32 %v2788, %v3064
    %v3066 = vpop.f32.mrf.mxu0
    %3067 = vmatprep.mubr.f32.mxu0 0.0
    %v3068 = vand.u32 %v2608, 4294901760
    %3069 = vmatmul.mubr.f32.gmra.mxu0 %v3068
    %v3070 = vpop.f32.mrf.mxu0
    %v3071 = vadd.f32 %v2798, %v3070
    %v3072 = vpop.f32.mrf.mxu0
    %3073 = vmatprep.mubr.f32.mxu0 0.0
    %v3074 = vand.u32 %v2609, 4294901760
    %3075 = vmatmul.mubr.f32.gmra.mxu0 %v3074
    %v3076 = vpop.f32.mrf.mxu0
    %v3077 = vadd.f32 %v2808, %v3076
    %v3078 = vpop.f32.mrf.mxu0
    %3079 = vmatprep.mubr.f32.mxu0 0.0
    %v3080 = vand.u32 %v2610, 4294901760
    %3081 = vmatmul.mubr.f32.gmra.mxu0 %v3080
    %v3082 = vpop.f32.mrf.mxu0
    %v3083 = vadd.f32 %v2818, %v3082
    %v3084 = vpop.f32.mrf.mxu0
    %3085 = vmatprep.mubr.f32.mxu0 0.0
    %v3086 = vand.u32 %v2611, 4294901760
    %3087 = vmatmul.mubr.f32.gmra.mxu0 %v3086
    %v3088 = vpop.f32.mrf.mxu0
    %v3089 = vadd.f32 %v2828, %v3088
    %v3090 = vpop.f32.mrf.mxu0
    %3091 = vmatprep.mubr.f32.mxu0 0.0
    %v3092 = vand.u32 %v2612, 4294901760
    %3093 = vmatmul.mubr.f32.gmra.mxu0 %v3092
    %v3094 = vpop.f32.mrf.mxu0
    %v3095 = vadd.f32 %v2838, %v3094
    %v3096 = vpop.f32.mrf.mxu0
    %3097 = vmatprep.mubr.f32.mxu0 0.0
    %v3098 = vand.u32 %v2613, 4294901760
    %3099 = vmatmul.mubr.f32.gmra.mxu0 %v3098
    %v3100 = vpop.f32.mrf.mxu0
    %v3101 = vadd.f32 %v2848, %v3100
    %v3102 = vpop.f32.mrf.mxu0
    %3103 = vmatprep.mubr.f32.mxu0 0.0
    %v3104 = vand.u32 %v2614, 4294901760
    %3105 = vmatmul.mubr.f32.gmra.mxu0 %v3104
    %v3106 = vpop.f32.mrf.mxu0
    %v3107 = vadd.f32 %v2858, %v3106
    %v3108 = vpop.f32.mrf.mxu0
    %3109 = vmatprep.mubr.f32.mxu0 0.0
    %v3110 = vand.u32 %v2615, 4294901760
    %3111 = vmatmul.mubr.f32.gmra.mxu0 %v3110
    %v3112 = vpop.f32.mrf.mxu0
    %v3113 = vadd.f32 %v2868, %v3112
    %v3114 = vpop.f32.mrf.mxu0
    %3115 = vmatprep.mubr.f32.mxu0 0.0
    %v3116 = vand.u32 %v2616, 4294901760
    %3117 = vmatmul.mubr.f32.gmra.mxu0 %v3116
    %v3118 = vpop.f32.mrf.mxu0
    %v3119 = vadd.f32 %v2878, %v3118
    %v3120 = vpop.f32.mrf.mxu0
    %3121 = vdwg.mxu0
    %3122 = vmatprep.subr.mxu0 0.0
    %v3123 = vand.u32 %v2632, 4294901760
    %v3124 = vsub.f32 %v2632, %v3123
    %3125 = vmatpush1.msra.mxu0 %v3124
    %3126 = vmatprep.subr.mxu0 0.0
    %v3127 = vand.u32 %v2631, 4294901760
    %v3128 = vsub.f32 %v2631, %v3127
    %3129 = vmatpush1.msra.mxu0 %v3128
    %3130 = vmatprep.subr.mxu0 0.0
    %v3131 = vand.u32 %v2630, 4294901760
    %v3132 = vsub.f32 %v2630, %v3131
    %3133 = vmatpush1.msra.mxu0 %v3132
    %3134 = vmatprep.subr.mxu0 0.0
    %v3135 = vand.u32 %v2629, 4294901760
    %v3136 = vsub.f32 %v2629, %v3135
    %3137 = vmatpush1.msra.mxu0 %v3136
    %3138 = vmatprep.subr.mxu0 0.0
    %v3139 = vand.u32 %v2628, 4294901760
    %v3140 = vsub.f32 %v2628, %v3139
    %3141 = vmatpush1.msra.mxu0 %v3140
    %3142 = vmatprep.subr.mxu0 0.0
    %v3143 = vand.u32 %v2627, 4294901760
    %v3144 = vsub.f32 %v2627, %v3143
    %3145 = vmatpush1.msra.mxu0 %v3144
    %3146 = vmatprep.subr.mxu0 0.0
    %v3147 = vand.u32 %v2626, 4294901760
    %v3148 = vsub.f32 %v2626, %v3147
    %3149 = vmatpush1.msra.mxu0 %v3148
    %3150 = vmatprep.subr.mxu0 0.0
    %v3151 = vand.u32 %v2625, 4294901760
    %v3152 = vsub.f32 %v2625, %v3151
    %3153 = vmatpush1.msra.mxu0 %v3152
    %3154 = vmatprep.subr.mxu0 0.0
    %v3155 = vand.u32 %v2624, 4294901760
    %v3156 = vsub.f32 %v2624, %v3155
    %3157 = vmatpush1.msra.mxu0 %v3156
    %3158 = vmatprep.subr.mxu0 0.0
    %v3159 = vand.u32 %v2623, 4294901760
    %v3160 = vsub.f32 %v2623, %v3159
    %3161 = vmatpush1.msra.mxu0 %v3160
    %3162 = vmatprep.subr.mxu0 0.0
    %v3163 = vand.u32 %v2622, 4294901760
    %v3164 = vsub.f32 %v2622, %v3163
    %3165 = vmatpush1.msra.mxu0 %v3164
    %3166 = vmatprep.subr.mxu0 0.0
    %v3167 = vand.u32 %v2621, 4294901760
    %v3168 = vsub.f32 %v2621, %v3167
    %3169 = vmatpush1.msra.mxu0 %v3168
    %3170 = vmatprep.subr.mxu0 0.0
    %v3171 = vand.u32 %v2620, 4294901760
    %v3172 = vsub.f32 %v2620, %v3171
    %3173 = vmatpush1.msra.mxu0 %v3172
    %3174 = vmatprep.subr.mxu0 0.0
    %v3175 = vand.u32 %v2619, 4294901760
    %v3176 = vsub.f32 %v2619, %v3175
    %3177 = vmatpush1.msra.mxu0 %v3176
    %3178 = vmatprep.subr.mxu0 0.0
    %v3179 = vand.u32 %v2618, 4294901760
    %v3180 = vsub.f32 %v2618, %v3179
    %3181 = vmatpush1.msra.mxu0 %v3180
    %3182 = vmatprep.subr.mxu0 0.0
    %v3183 = vand.u32 %v2617, 4294901760
    %v3184 = vsub.f32 %v2617, %v3183
    %3185 = vmatpush1.msra.mxu0 %v3184
    %3186 = vmatprep.subr.mxu0 0.0
    %3187 = vmatpush2.msra.mxu0 0.0
    %3188 = vmatprep.subr.mxu0 0.0
    %3189 = vmatpush2.msra.mxu0 0.0
    %3190 = vmatprep.subr.mxu0 0.0
    %3191 = vmatpush2.msra.mxu0 0.0
    %3192 = vmatprep.subr.mxu0 0.0
    %3193 = vmatpush2.msra.mxu0 0.0
    %3194 = vmatprep.subr.mxu0 0.0
    %3195 = vmatpush2.msra.mxu0 0.0
    %3196 = vmatprep.subr.mxu0 0.0
    %3197 = vmatpush2.msra.mxu0 0.0
    %3198 = vmatprep.subr.mxu0 0.0
    %3199 = vmatpush2.msra.mxu0 0.0
    %3200 = vmatprep.subr.mxu0 0.0
    %3201 = vmatpush2.msra.mxu0 0.0
    %3202 = vmatprep.subr.mxu0 0.0
    %3203 = vmatpush2.msra.mxu0 0.0
    %3204 = vmatprep.subr.mxu0 0.0
    %3205 = vmatpush2.msra.mxu0 0.0
    %3206 = vmatprep.subr.mxu0 0.0
    %3207 = vmatpush2.msra.mxu0 0.0
    %3208 = vmatprep.subr.mxu0 0.0
    %3209 = vmatpush2.msra.mxu0 0.0
    %3210 = vmatprep.subr.mxu0 0.0
    %3211 = vmatpush2.msra.mxu0 0.0
    %3212 = vmatprep.subr.mxu0 0.0
    %3213 = vmatpush2.msra.mxu0 0.0
    %3214 = vmatprep.subr.mxu0 0.0
    %3215 = vmatpush2.msra.mxu0 0.0
    %3216 = vmatprep.subr.mxu0 0.0
    %3217 = vmatpush2.msra.mxu0 0.0
    %3218 = vmatprep.mubr.f32.mxu0 0.0
    %v3219 = vand.u32 %v2601, 4294901760
    %v3220 = vsub.f32 %v2601, %v3219
    %3221 = vmatmul.mubr.f32.gmra.mxu0 %v3220
    %v3222 = vpop.f32.mrf.mxu0
    %v3223 = vadd.f32 %v3029, %v3222
    %v3224 = vpop.f32.mrf.mxu0
    %3225 = vmatprep.mubr.f32.mxu0 0.0
    %v3226 = vand.u32 %v2602, 4294901760
    %v3227 = vsub.f32 %v2602, %v3226
    %3228 = vmatmul.mubr.f32.gmra.mxu0 %v3227
    %v3229 = vpop.f32.mrf.mxu0
    %v3230 = vadd.f32 %v3035, %v3229
    %v3231 = vpop.f32.mrf.mxu0
    %3232 = vmatprep.mubr.f32.mxu0 0.0
    %v3233 = vand.u32 %v2603, 4294901760
    %v3234 = vsub.f32 %v2603, %v3233
    %3235 = vmatmul.mubr.f32.gmra.mxu0 %v3234
    %v3236 = vpop.f32.mrf.mxu0
    %v3237 = vadd.f32 %v3041, %v3236
    %v3238 = vpop.f32.mrf.mxu0
    %3239 = vmatprep.mubr.f32.mxu0 0.0
    %v3240 = vand.u32 %v2604, 4294901760
    %v3241 = vsub.f32 %v2604, %v3240
    %3242 = vmatmul.mubr.f32.gmra.mxu0 %v3241
    %v3243 = vpop.f32.mrf.mxu0
    %v3244 = vadd.f32 %v3047, %v3243
    %v3245 = vpop.f32.mrf.mxu0
    %3246 = vmatprep.mubr.f32.mxu0 0.0
    %v3247 = vand.u32 %v2605, 4294901760
    %v3248 = vsub.f32 %v2605, %v3247
    %3249 = vmatmul.mubr.f32.gmra.mxu0 %v3248
    %v3250 = vpop.f32.mrf.mxu0
    %v3251 = vadd.f32 %v3053, %v3250
    %v3252 = vpop.f32.mrf.mxu0
    %3253 = vmatprep.mubr.f32.mxu0 0.0
    %v3254 = vand.u32 %v2606, 4294901760
    %v3255 = vsub.f32 %v2606, %v3254
    %3256 = vmatmul.mubr.f32.gmra.mxu0 %v3255
    %v3257 = vpop.f32.mrf.mxu0
    %v3258 = vadd.f32 %v3059, %v3257
    %v3259 = vpop.f32.mrf.mxu0
    %3260 = vmatprep.mubr.f32.mxu0 0.0
    %v3261 = vand.u32 %v2607, 4294901760
    %v3262 = vsub.f32 %v2607, %v3261
    %3263 = vmatmul.mubr.f32.gmra.mxu0 %v3262
    %v3264 = vpop.f32.mrf.mxu0
    %v3265 = vadd.f32 %v3065, %v3264
    %v3266 = vpop.f32.mrf.mxu0
    %3267 = vmatprep.mubr.f32.mxu0 0.0
    %v3268 = vand.u32 %v2608, 4294901760
    %v3269 = vsub.f32 %v2608, %v3268
    %3270 = vmatmul.mubr.f32.gmra.mxu0 %v3269
    %v3271 = vpop.f32.mrf.mxu0
    %v3272 = vadd.f32 %v3071, %v3271
    %v3273 = vpop.f32.mrf.mxu0
    %3274 = vmatprep.mubr.f32.mxu0 0.0
    %v3275 = vand.u32 %v2609, 4294901760
    %v3276 = vsub.f32 %v2609, %v3275
    %3277 = vmatmul.mubr.f32.gmra.mxu0 %v3276
    %v3278 = vpop.f32.mrf.mxu0
    %v3279 = vadd.f32 %v3077, %v3278
    %v3280 = vpop.f32.mrf.mxu0
    %3281 = vmatprep.mubr.f32.mxu0 0.0
    %v3282 = vand.u32 %v2610, 4294901760
    %v3283 = vsub.f32 %v2610, %v3282
    %3284 = vmatmul.mubr.f32.gmra.mxu0 %v3283
    %v3285 = vpop.f32.mrf.mxu0
    %v3286 = vadd.f32 %v3083, %v3285
    %v3287 = vpop.f32.mrf.mxu0
    %3288 = vmatprep.mubr.f32.mxu0 0.0
    %v3289 = vand.u32 %v2611, 4294901760
    %v3290 = vsub.f32 %v2611, %v3289
    %3291 = vmatmul.mubr.f32.gmra.mxu0 %v3290
    %v3292 = vpop.f32.mrf.mxu0
    %v3293 = vadd.f32 %v3089, %v3292
    %v3294 = vpop.f32.mrf.mxu0
    %3295 = vmatprep.mubr.f32.mxu0 0.0
    %v3296 = vand.u32 %v2612, 4294901760
    %v3297 = vsub.f32 %v2612, %v3296
    %3298 = vmatmul.mubr.f32.gmra.mxu0 %v3297
    %v3299 = vpop.f32.mrf.mxu0
    %v3300 = vadd.f32 %v3095, %v3299
    %v3301 = vpop.f32.mrf.mxu0
    %3302 = vmatprep.mubr.f32.mxu0 0.0
    %v3303 = vand.u32 %v2613, 4294901760
    %v3304 = vsub.f32 %v2613, %v3303
    %3305 = vmatmul.mubr.f32.gmra.mxu0 %v3304
    %v3306 = vpop.f32.mrf.mxu0
    %v3307 = vadd.f32 %v3101, %v3306
    %v3308 = vpop.f32.mrf.mxu0
    %3309 = vmatprep.mubr.f32.mxu0 0.0
    %v3310 = vand.u32 %v2614, 4294901760
    %v3311 = vsub.f32 %v2614, %v3310
    %3312 = vmatmul.mubr.f32.gmra.mxu0 %v3311
    %v3313 = vpop.f32.mrf.mxu0
    %v3314 = vadd.f32 %v3107, %v3313
    %v3315 = vpop.f32.mrf.mxu0
    %3316 = vmatprep.mubr.f32.mxu0 0.0
    %v3317 = vand.u32 %v2615, 4294901760
    %v3318 = vsub.f32 %v2615, %v3317
    %3319 = vmatmul.mubr.f32.gmra.mxu0 %v3318
    %v3320 = vpop.f32.mrf.mxu0
    %v3321 = vadd.f32 %v3113, %v3320
    %v3322 = vpop.f32.mrf.mxu0
    %3323 = vmatprep.mubr.f32.mxu0 0.0
    %v3324 = vand.u32 %v2616, 4294901760
    %v3325 = vsub.f32 %v2616, %v3324
    %3326 = vmatmul.mubr.f32.gmra.mxu0 %v3325
    %v3327 = vpop.f32.mrf.mxu0
    %v3328 = vadd.f32 %v3119, %v3327
    %v3329 = vpop.f32.mrf.mxu0
    %3330 = vdwg.mxu0
    %3331 = vmatprep.subr.mxu0 0.0
    %v3332 = vand.u32 %v2632, 4294901760
    %3333 = vmatpush1.msra.mxu0 %v3332
    %3334 = vmatprep.subr.mxu0 0.0
    %v3335 = vand.u32 %v2631, 4294901760
    %3336 = vmatpush1.msra.mxu0 %v3335
    %3337 = vmatprep.subr.mxu0 0.0
    %v3338 = vand.u32 %v2630, 4294901760
    %3339 = vmatpush1.msra.mxu0 %v3338
    %3340 = vmatprep.subr.mxu0 0.0
    %v3341 = vand.u32 %v2629, 4294901760
    %3342 = vmatpush1.msra.mxu0 %v3341
    %3343 = vmatprep.subr.mxu0 0.0
    %v3344 = vand.u32 %v2628, 4294901760
    %3345 = vmatpush1.msra.mxu0 %v3344
    %3346 = vmatprep.subr.mxu0 0.0
    %v3347 = vand.u32 %v2627, 4294901760
    %3348 = vmatpush1.msra.mxu0 %v3347
    %3349 = vmatprep.subr.mxu0 0.0
    %v3350 = vand.u32 %v2626, 4294901760
    %3351 = vmatpush1.msra.mxu0 %v3350
    %3352 = vmatprep.subr.mxu0 0.0
    %v3353 = vand.u32 %v2625, 4294901760
    %3354 = vmatpush1.msra.mxu0 %v3353
    %3355 = vmatprep.subr.mxu0 0.0
    %v3356 = vand.u32 %v2624, 4294901760
    %3357 = vmatpush1.msra.mxu0 %v3356
    %3358 = vmatprep.subr.mxu0 0.0
    %v3359 = vand.u32 %v2623, 4294901760
    %3360 = vmatpush1.msra.mxu0 %v3359
    %3361 = vmatprep.subr.mxu0 0.0
    %v3362 = vand.u32 %v2622, 4294901760
    %3363 = vmatpush1.msra.mxu0 %v3362
    %3364 = vmatprep.subr.mxu0 0.0
    %v3365 = vand.u32 %v2621, 4294901760
    %3366 = vmatpush1.msra.mxu0 %v3365
    %3367 = vmatprep.subr.mxu0 0.0
    %v3368 = vand.u32 %v2620, 4294901760
    %3369 = vmatpush1.msra.mxu0 %v3368
    %3370 = vmatprep.subr.mxu0 0.0
    %v3371 = vand.u32 %v2619, 4294901760
    %3372 = vmatpush1.msra.mxu0 %v3371
    %3373 = vmatprep.subr.mxu0 0.0
    %v3374 = vand.u32 %v2618, 4294901760
    %3375 = vmatpush1.msra.mxu0 %v3374
    %3376 = vmatprep.subr.mxu0 0.0
    %v3377 = vand.u32 %v2617, 4294901760
    %3378 = vmatpush1.msra.mxu0 %v3377
    %3379 = vmatprep.subr.mxu0 0.0
    %3380 = vmatpush2.msra.mxu0 0.0
    %3381 = vmatprep.subr.mxu0 0.0
    %3382 = vmatpush2.msra.mxu0 0.0
    %3383 = vmatprep.subr.mxu0 0.0
    %3384 = vmatpush2.msra.mxu0 0.0
    %3385 = vmatprep.subr.mxu0 0.0
    %3386 = vmatpush2.msra.mxu0 0.0
    %3387 = vmatprep.subr.mxu0 0.0
    %3388 = vmatpush2.msra.mxu0 0.0
    %3389 = vmatprep.subr.mxu0 0.0
    %3390 = vmatpush2.msra.mxu0 0.0
    %3391 = vmatprep.subr.mxu0 0.0
    %3392 = vmatpush2.msra.mxu0 0.0
    %3393 = vmatprep.subr.mxu0 0.0
    %3394 = vmatpush2.msra.mxu0 0.0
    %3395 = vmatprep.subr.mxu0 0.0
    %3396 = vmatpush2.msra.mxu0 0.0
    %3397 = vmatprep.subr.mxu0 0.0
    %3398 = vmatpush2.msra.mxu0 0.0
    %3399 = vmatprep.subr.mxu0 0.0
    %3400 = vmatpush2.msra.mxu0 0.0
    %3401 = vmatprep.subr.mxu0 0.0
    %3402 = vmatpush2.msra.mxu0 0.0
    %3403 = vmatprep.subr.mxu0 0.0
    %3404 = vmatpush2.msra.mxu0 0.0
    %3405 = vmatprep.subr.mxu0 0.0
    %3406 = vmatpush2.msra.mxu0 0.0
    %3407 = vmatprep.subr.mxu0 0.0
    %3408 = vmatpush2.msra.mxu0 0.0
    %3409 = vmatprep.subr.mxu0 0.0
    %3410 = vmatpush2.msra.mxu0 0.0
    %3411 = vmatprep.mubr.f32.mxu0 0.0
    %v3412 = vand.u32 %v2601, 4294901760
    %v3413 = vsub.f32 %v2601, %v3412
    %v3414 = vand.u32 %v3413, 4294901760
    %3415 = vmatmul.mubr.f32.gmra.mxu0 %v3414
    %v3416 = vpop.f32.mrf.mxu0
    %v3417 = vadd.f32 %v3223, %v3416
    %v3418 = vpop.f32.mrf.mxu0
    %3419 = vmatprep.mubr.f32.mxu0 0.0
    %v3420 = vand.u32 %v2602, 4294901760
    %v3421 = vsub.f32 %v2602, %v3420
    %v3422 = vand.u32 %v3421, 4294901760
    %3423 = vmatmul.mubr.f32.gmra.mxu0 %v3422
    %v3424 = vpop.f32.mrf.mxu0
    %v3425 = vadd.f32 %v3230, %v3424
    %v3426 = vpop.f32.mrf.mxu0
    %3427 = vmatprep.mubr.f32.mxu0 0.0
    %v3428 = vand.u32 %v2603, 4294901760
    %v3429 = vsub.f32 %v2603, %v3428
    %v3430 = vand.u32 %v3429, 4294901760
    %3431 = vmatmul.mubr.f32.gmra.mxu0 %v3430
    %v3432 = vpop.f32.mrf.mxu0
    %v3433 = vadd.f32 %v3237, %v3432
    %v3434 = vpop.f32.mrf.mxu0
    %3435 = vmatprep.mubr.f32.mxu0 0.0
    %v3436 = vand.u32 %v2604, 4294901760
    %v3437 = vsub.f32 %v2604, %v3436
    %v3438 = vand.u32 %v3437, 4294901760
    %3439 = vmatmul.mubr.f32.gmra.mxu0 %v3438
    %v3440 = vpop.f32.mrf.mxu0
    %v3441 = vadd.f32 %v3244, %v3440
    %v3442 = vpop.f32.mrf.mxu0
    %3443 = vmatprep.mubr.f32.mxu0 0.0
    %v3444 = vand.u32 %v2605, 4294901760
    %v3445 = vsub.f32 %v2605, %v3444
    %v3446 = vand.u32 %v3445, 4294901760
    %3447 = vmatmul.mubr.f32.gmra.mxu0 %v3446
    %v3448 = vpop.f32.mrf.mxu0
    %v3449 = vadd.f32 %v3251, %v3448
    %v3450 = vpop.f32.mrf.mxu0
    %3451 = vmatprep.mubr.f32.mxu0 0.0
    %v3452 = vand.u32 %v2606, 4294901760
    %v3453 = vsub.f32 %v2606, %v3452
    %v3454 = vand.u32 %v3453, 4294901760
    %3455 = vmatmul.mubr.f32.gmra.mxu0 %v3454
    %v3456 = vpop.f32.mrf.mxu0
    %v3457 = vadd.f32 %v3258, %v3456
    %v3458 = vpop.f32.mrf.mxu0
    %3459 = vmatprep.mubr.f32.mxu0 0.0
    %v3460 = vand.u32 %v2607, 4294901760
    %v3461 = vsub.f32 %v2607, %v3460
    %v3462 = vand.u32 %v3461, 4294901760
    %3463 = vmatmul.mubr.f32.gmra.mxu0 %v3462
    %v3464 = vpop.f32.mrf.mxu0
    %v3465 = vadd.f32 %v3265, %v3464
    %v3466 = vpop.f32.mrf.mxu0
    %3467 = vmatprep.mubr.f32.mxu0 0.0
    %v3468 = vand.u32 %v2608, 4294901760
    %v3469 = vsub.f32 %v2608, %v3468
    %v3470 = vand.u32 %v3469, 4294901760
    %3471 = vmatmul.mubr.f32.gmra.mxu0 %v3470
    %v3472 = vpop.f32.mrf.mxu0
    %v3473 = vadd.f32 %v3272, %v3472
    %v3474 = vpop.f32.mrf.mxu0
    %3475 = vmatprep.mubr.f32.mxu0 0.0
    %v3476 = vand.u32 %v2609, 4294901760
    %v3477 = vsub.f32 %v2609, %v3476
    %v3478 = vand.u32 %v3477, 4294901760
    %3479 = vmatmul.mubr.f32.gmra.mxu0 %v3478
    %v3480 = vpop.f32.mrf.mxu0
    %v3481 = vadd.f32 %v3279, %v3480
    %v3482 = vpop.f32.mrf.mxu0
    %3483 = vmatprep.mubr.f32.mxu0 0.0
    %v3484 = vand.u32 %v2610, 4294901760
    %v3485 = vsub.f32 %v2610, %v3484
    %v3486 = vand.u32 %v3485, 4294901760
    %3487 = vmatmul.mubr.f32.gmra.mxu0 %v3486
    %v3488 = vpop.f32.mrf.mxu0
    %v3489 = vadd.f32 %v3286, %v3488
    %v3490 = vpop.f32.mrf.mxu0
    %3491 = vmatprep.mubr.f32.mxu0 0.0
    %v3492 = vand.u32 %v2611, 4294901760
    %v3493 = vsub.f32 %v2611, %v3492
    %v3494 = vand.u32 %v3493, 4294901760
    %3495 = vmatmul.mubr.f32.gmra.mxu0 %v3494
    %v3496 = vpop.f32.mrf.mxu0
    %v3497 = vadd.f32 %v3293, %v3496
    %v3498 = vpop.f32.mrf.mxu0
    %3499 = vmatprep.mubr.f32.mxu0 0.0
    %v3500 = vand.u32 %v2612, 4294901760
    %v3501 = vsub.f32 %v2612, %v3500
    %v3502 = vand.u32 %v3501, 4294901760
    %3503 = vmatmul.mubr.f32.gmra.mxu0 %v3502
    %v3504 = vpop.f32.mrf.mxu0
    %v3505 = vadd.f32 %v3300, %v3504
    %v3506 = vpop.f32.mrf.mxu0
    %3507 = vmatprep.mubr.f32.mxu0 0.0
    %v3508 = vand.u32 %v2613, 4294901760
    %v3509 = vsub.f32 %v2613, %v3508
    %v3510 = vand.u32 %v3509, 4294901760
    %3511 = vmatmul.mubr.f32.gmra.mxu0 %v3510
    %v3512 = vpop.f32.mrf.mxu0
    %v3513 = vadd.f32 %v3307, %v3512
    %v3514 = vpop.f32.mrf.mxu0
    %3515 = vmatprep.mubr.f32.mxu0 0.0
    %v3516 = vand.u32 %v2614, 4294901760
    %v3517 = vsub.f32 %v2614, %v3516
    %v3518 = vand.u32 %v3517, 4294901760
    %3519 = vmatmul.mubr.f32.gmra.mxu0 %v3518
    %v3520 = vpop.f32.mrf.mxu0
    %v3521 = vadd.f32 %v3314, %v3520
    %v3522 = vpop.f32.mrf.mxu0
    %3523 = vmatprep.mubr.f32.mxu0 0.0
    %v3524 = vand.u32 %v2615, 4294901760
    %v3525 = vsub.f32 %v2615, %v3524
    %v3526 = vand.u32 %v3525, 4294901760
    %3527 = vmatmul.mubr.f32.gmra.mxu0 %v3526
    %v3528 = vpop.f32.mrf.mxu0
    %v3529 = vadd.f32 %v3321, %v3528
    %v3530 = vpop.f32.mrf.mxu0
    %3531 = vmatprep.mubr.f32.mxu0 0.0
    %v3532 = vand.u32 %v2616, 4294901760
    %v3533 = vsub.f32 %v2616, %v3532
    %v3534 = vand.u32 %v3533, 4294901760
    %3535 = vmatmul.mubr.f32.gmra.mxu0 %v3534
    %v3536 = vpop.f32.mrf.mxu0
    %v3537 = vadd.f32 %v3328, %v3536
    %v3538 = vpop.f32.mrf.mxu0
    %3539 = vdwg.mxu0
    %3540 = vmatprep.subr.mxu0 0.0
    %v3541 = vand.u32 %v2632, 4294901760
    %v3542 = vsub.f32 %v2632, %v3541
    %v3543 = vand.u32 %v3542, 4294901760
    %3544 = vmatpush1.msra.mxu0 %v3543
    %3545 = vmatprep.subr.mxu0 0.0
    %v3546 = vand.u32 %v2631, 4294901760
    %v3547 = vsub.f32 %v2631, %v3546
    %v3548 = vand.u32 %v3547, 4294901760
    %3549 = vmatpush1.msra.mxu0 %v3548
    %3550 = vmatprep.subr.mxu0 0.0
    %v3551 = vand.u32 %v2630, 4294901760
    %v3552 = vsub.f32 %v2630, %v3551
    %v3553 = vand.u32 %v3552, 4294901760
    %3554 = vmatpush1.msra.mxu0 %v3553
    %3555 = vmatprep.subr.mxu0 0.0
    %v3556 = vand.u32 %v2629, 4294901760
    %v3557 = vsub.f32 %v2629, %v3556
    %v3558 = vand.u32 %v3557, 4294901760
    %3559 = vmatpush1.msra.mxu0 %v3558
    %3560 = vmatprep.subr.mxu0 0.0
    %v3561 = vand.u32 %v2628, 4294901760
    %v3562 = vsub.f32 %v2628, %v3561
    %v3563 = vand.u32 %v3562, 4294901760
    %3564 = vmatpush1.msra.mxu0 %v3563
    %3565 = vmatprep.subr.mxu0 0.0
    %v3566 = vand.u32 %v2627, 4294901760
    %v3567 = vsub.f32 %v2627, %v3566
    %v3568 = vand.u32 %v3567, 4294901760
    %3569 = vmatpush1.msra.mxu0 %v3568
    %3570 = vmatprep.subr.mxu0 0.0
    %v3571 = vand.u32 %v2626, 4294901760
    %v3572 = vsub.f32 %v2626, %v3571
    %v3573 = vand.u32 %v3572, 4294901760
    %3574 = vmatpush1.msra.mxu0 %v3573
    %3575 = vmatprep.subr.mxu0 0.0
    %v3576 = vand.u32 %v2625, 4294901760
    %v3577 = vsub.f32 %v2625, %v3576
    %v3578 = vand.u32 %v3577, 4294901760
    %3579 = vmatpush1.msra.mxu0 %v3578
    %3580 = vmatprep.subr.mxu0 0.0
    %v3581 = vand.u32 %v2624, 4294901760
    %v3582 = vsub.f32 %v2624, %v3581
    %v3583 = vand.u32 %v3582, 4294901760
    %3584 = vmatpush1.msra.mxu0 %v3583
    %3585 = vmatprep.subr.mxu0 0.0
    %v3586 = vand.u32 %v2623, 4294901760
    %v3587 = vsub.f32 %v2623, %v3586
    %v3588 = vand.u32 %v3587, 4294901760
    %3589 = vmatpush1.msra.mxu0 %v3588
    %3590 = vmatprep.subr.mxu0 0.0
    %v3591 = vand.u32 %v2622, 4294901760
    %v3592 = vsub.f32 %v2622, %v3591
    %v3593 = vand.u32 %v3592, 4294901760
    %3594 = vmatpush1.msra.mxu0 %v3593
    %3595 = vmatprep.subr.mxu0 0.0
    %v3596 = vand.u32 %v2621, 4294901760
    %v3597 = vsub.f32 %v2621, %v3596
    %v3598 = vand.u32 %v3597, 4294901760
    %3599 = vmatpush1.msra.mxu0 %v3598
    %3600 = vmatprep.subr.mxu0 0.0
    %v3601 = vand.u32 %v2620, 4294901760
    %v3602 = vsub.f32 %v2620, %v3601
    %v3603 = vand.u32 %v3602, 4294901760
    %3604 = vmatpush1.msra.mxu0 %v3603
    %3605 = vmatprep.subr.mxu0 0.0
    %v3606 = vand.u32 %v2619, 4294901760
    %v3607 = vsub.f32 %v2619, %v3606
    %v3608 = vand.u32 %v3607, 4294901760
    %3609 = vmatpush1.msra.mxu0 %v3608
    %3610 = vmatprep.subr.mxu0 0.0
    %v3611 = vand.u32 %v2618, 4294901760
    %v3612 = vsub.f32 %v2618, %v3611
    %v3613 = vand.u32 %v3612, 4294901760
    %3614 = vmatpush1.msra.mxu0 %v3613
    %3615 = vmatprep.subr.mxu0 0.0
    %v3616 = vand.u32 %v2617, 4294901760
    %v3617 = vsub.f32 %v2617, %v3616
    %v3618 = vand.u32 %v3617, 4294901760
    %3619 = vmatpush1.msra.mxu0 %v3618
    %3620 = vmatprep.subr.mxu0 0.0
    %3621 = vmatpush2.msra.mxu0 0.0
    %3622 = vmatprep.subr.mxu0 0.0
    %3623 = vmatpush2.msra.mxu0 0.0
    %3624 = vmatprep.subr.mxu0 0.0
    %3625 = vmatpush2.msra.mxu0 0.0
    %3626 = vmatprep.subr.mxu0 0.0
    %3627 = vmatpush2.msra.mxu0 0.0
    %3628 = vmatprep.subr.mxu0 0.0
    %3629 = vmatpush2.msra.mxu0 0.0
    %3630 = vmatprep.subr.mxu0 0.0
    %3631 = vmatpush2.msra.mxu0 0.0
    %3632 = vmatprep.subr.mxu0 0.0
    %3633 = vmatpush2.msra.mxu0 0.0
    %3634 = vmatprep.subr.mxu0 0.0
    %3635 = vmatpush2.msra.mxu0 0.0
    %3636 = vmatprep.subr.mxu0 0.0
    %3637 = vmatpush2.msra.mxu0 0.0
    %3638 = vmatprep.subr.mxu0 0.0
    %3639 = vmatpush2.msra.mxu0 0.0
    %3640 = vmatprep.subr.mxu0 0.0
    %3641 = vmatpush2.msra.mxu0 0.0
    %3642 = vmatprep.subr.mxu0 0.0
    %3643 = vmatpush2.msra.mxu0 0.0
    %3644 = vmatprep.subr.mxu0 0.0
    %3645 = vmatpush2.msra.mxu0 0.0
    %3646 = vmatprep.subr.mxu0 0.0
    %3647 = vmatpush2.msra.mxu0 0.0
    %3648 = vmatprep.subr.mxu0 0.0
    %3649 = vmatpush2.msra.mxu0 0.0
    %3650 = vmatprep.subr.mxu0 0.0
    %3651 = vmatpush2.msra.mxu0 0.0
    %3652 = vmatprep.mubr.f32.mxu0 0.0
    %v3653 = vand.u32 %v2601, 4294901760
    %3654 = vmatmul.mubr.f32.gmra.mxu0 %v3653
    %v3655 = vpop.f32.mrf.mxu0
    %v3656 = vadd.f32 %v3417, %v3655
    %v3657 = vpop.f32.mrf.mxu0
    %3658 = vmatprep.mubr.f32.mxu0 0.0
    %v3659 = vand.u32 %v2602, 4294901760
    %3660 = vmatmul.mubr.f32.gmra.mxu0 %v3659
    %v3661 = vpop.f32.mrf.mxu0
    %v3662 = vadd.f32 %v3425, %v3661
    %v3663 = vpop.f32.mrf.mxu0
    %3664 = vmatprep.mubr.f32.mxu0 0.0
    %v3665 = vand.u32 %v2603, 4294901760
    %3666 = vmatmul.mubr.f32.gmra.mxu0 %v3665
    %v3667 = vpop.f32.mrf.mxu0
    %v3668 = vadd.f32 %v3433, %v3667
    %v3669 = vpop.f32.mrf.mxu0
    %3670 = vmatprep.mubr.f32.mxu0 0.0
    %v3671 = vand.u32 %v2604, 4294901760
    %3672 = vmatmul.mubr.f32.gmra.mxu0 %v3671
    %v3673 = vpop.f32.mrf.mxu0
    %v3674 = vadd.f32 %v3441, %v3673
    %v3675 = vpop.f32.mrf.mxu0
    %3676 = vmatprep.mubr.f32.mxu0 0.0
    %v3677 = vand.u32 %v2605, 4294901760
    %3678 = vmatmul.mubr.f32.gmra.mxu0 %v3677
    %v3679 = vpop.f32.mrf.mxu0
    %v3680 = vadd.f32 %v3449, %v3679
    %v3681 = vpop.f32.mrf.mxu0
    %3682 = vmatprep.mubr.f32.mxu0 0.0
    %v3683 = vand.u32 %v2606, 4294901760
    %3684 = vmatmul.mubr.f32.gmra.mxu0 %v3683
    %v3685 = vpop.f32.mrf.mxu0
    %v3686 = vadd.f32 %v3457, %v3685
    %v3687 = vpop.f32.mrf.mxu0
    %3688 = vmatprep.mubr.f32.mxu0 0.0
    %v3689 = vand.u32 %v2607, 4294901760
    %3690 = vmatmul.mubr.f32.gmra.mxu0 %v3689
    %v3691 = vpop.f32.mrf.mxu0
    %v3692 = vadd.f32 %v3465, %v3691
    %v3693 = vpop.f32.mrf.mxu0
    %3694 = vmatprep.mubr.f32.mxu0 0.0
    %v3695 = vand.u32 %v2608, 4294901760
    %3696 = vmatmul.mubr.f32.gmra.mxu0 %v3695
    %v3697 = vpop.f32.mrf.mxu0
    %v3698 = vadd.f32 %v3473, %v3697
    %v3699 = vpop.f32.mrf.mxu0
    %3700 = vmatprep.mubr.f32.mxu0 0.0
    %v3701 = vand.u32 %v2609, 4294901760
    %3702 = vmatmul.mubr.f32.gmra.mxu0 %v3701
    %v3703 = vpop.f32.mrf.mxu0
    %v3704 = vadd.f32 %v3481, %v3703
    %v3705 = vpop.f32.mrf.mxu0
    %3706 = vmatprep.mubr.f32.mxu0 0.0
    %v3707 = vand.u32 %v2610, 4294901760
    %3708 = vmatmul.mubr.f32.gmra.mxu0 %v3707
    %v3709 = vpop.f32.mrf.mxu0
    %v3710 = vadd.f32 %v3489, %v3709
    %v3711 = vpop.f32.mrf.mxu0
    %3712 = vmatprep.mubr.f32.mxu0 0.0
    %v3713 = vand.u32 %v2611, 4294901760
    %3714 = vmatmul.mubr.f32.gmra.mxu0 %v3713
    %v3715 = vpop.f32.mrf.mxu0
    %v3716 = vadd.f32 %v3497, %v3715
    %v3717 = vpop.f32.mrf.mxu0
    %3718 = vmatprep.mubr.f32.mxu0 0.0
    %v3719 = vand.u32 %v2612, 4294901760
    %3720 = vmatmul.mubr.f32.gmra.mxu0 %v3719
    %v3721 = vpop.f32.mrf.mxu0
    %v3722 = vadd.f32 %v3505, %v3721
    %v3723 = vpop.f32.mrf.mxu0
    %3724 = vmatprep.mubr.f32.mxu0 0.0
    %v3725 = vand.u32 %v2613, 4294901760
    %3726 = vmatmul.mubr.f32.gmra.mxu0 %v3725
    %v3727 = vpop.f32.mrf.mxu0
    %v3728 = vadd.f32 %v3513, %v3727
    %v3729 = vpop.f32.mrf.mxu0
    %3730 = vmatprep.mubr.f32.mxu0 0.0
    %v3731 = vand.u32 %v2614, 4294901760
    %3732 = vmatmul.mubr.f32.gmra.mxu0 %v3731
    %v3733 = vpop.f32.mrf.mxu0
    %v3734 = vadd.f32 %v3521, %v3733
    %v3735 = vpop.f32.mrf.mxu0
    %3736 = vmatprep.mubr.f32.mxu0 0.0
    %v3737 = vand.u32 %v2615, 4294901760
    %3738 = vmatmul.mubr.f32.gmra.mxu0 %v3737
    %v3739 = vpop.f32.mrf.mxu0
    %v3740 = vadd.f32 %v3529, %v3739
    %v3741 = vpop.f32.mrf.mxu0
    %3742 = vmatprep.mubr.f32.mxu0 0.0
    %v3743 = vand.u32 %v2616, 4294901760
    %3744 = vmatmul.mubr.f32.gmra.mxu0 %v3743
    %v3745 = vpop.f32.mrf.mxu0
    %v3746 = vadd.f32 %v3537, %v3745
    %v3747 = vpop.f32.mrf.mxu0
    %3748 = vdwg.mxu0
    %3749 = vmatprep.subr.mxu0 0.0
    %v3750 = vand.u32 %v2632, 4294901760
    %3751 = vmatpush1.msra.mxu0 %v3750
    %3752 = vmatprep.subr.mxu0 0.0
    %v3753 = vand.u32 %v2631, 4294901760
    %3754 = vmatpush1.msra.mxu0 %v3753
    %3755 = vmatprep.subr.mxu0 0.0
    %v3756 = vand.u32 %v2630, 4294901760
    %3757 = vmatpush1.msra.mxu0 %v3756
    %3758 = vmatprep.subr.mxu0 0.0
    %v3759 = vand.u32 %v2629, 4294901760
    %3760 = vmatpush1.msra.mxu0 %v3759
    %3761 = vmatprep.subr.mxu0 0.0
    %v3762 = vand.u32 %v2628, 4294901760
    %3763 = vmatpush1.msra.mxu0 %v3762
    %3764 = vmatprep.subr.mxu0 0.0
    %v3765 = vand.u32 %v2627, 4294901760
    %3766 = vmatpush1.msra.mxu0 %v3765
    %3767 = vmatprep.subr.mxu0 0.0
    %v3768 = vand.u32 %v2626, 4294901760
    %3769 = vmatpush1.msra.mxu0 %v3768
    %3770 = vmatprep.subr.mxu0 0.0
    %v3771 = vand.u32 %v2625, 4294901760
    %3772 = vmatpush1.msra.mxu0 %v3771
    %3773 = vmatprep.subr.mxu0 0.0
    %v3774 = vand.u32 %v2624, 4294901760
    %3775 = vmatpush1.msra.mxu0 %v3774
    %3776 = vmatprep.subr.mxu0 0.0
    %v3777 = vand.u32 %v2623, 4294901760
    %3778 = vmatpush1.msra.mxu0 %v3777
    %3779 = vmatprep.subr.mxu0 0.0
    %v3780 = vand.u32 %v2622, 4294901760
    %3781 = vmatpush1.msra.mxu0 %v3780
    %3782 = vmatprep.subr.mxu0 0.0
    %v3783 = vand.u32 %v2621, 4294901760
    %3784 = vmatpush1.msra.mxu0 %v3783
    %3785 = vmatprep.subr.mxu0 0.0
    %v3786 = vand.u32 %v2620, 4294901760
    %3787 = vmatpush1.msra.mxu0 %v3786
    %3788 = vmatprep.subr.mxu0 0.0
    %v3789 = vand.u32 %v2619, 4294901760
    %3790 = vmatpush1.msra.mxu0 %v3789
    %3791 = vmatprep.subr.mxu0 0.0
    %v3792 = vand.u32 %v2618, 4294901760
    %3793 = vmatpush1.msra.mxu0 %v3792
    %3794 = vmatprep.subr.mxu0 0.0
    %v3795 = vand.u32 %v2617, 4294901760
    %3796 = vmatpush1.msra.mxu0 %v3795
    %3797 = vmatprep.subr.mxu0 0.0
    %3798 = vmatpush2.msra.mxu0 0.0
    %3799 = vmatprep.subr.mxu0 0.0
    %3800 = vmatpush2.msra.mxu0 0.0
    %3801 = vmatprep.subr.mxu0 0.0
    %3802 = vmatpush2.msra.mxu0 0.0
    %3803 = vmatprep.subr.mxu0 0.0
    %3804 = vmatpush2.msra.mxu0 0.0
    %3805 = vmatprep.subr.mxu0 0.0
    %3806 = vmatpush2.msra.mxu0 0.0
    %3807 = vmatprep.subr.mxu0 0.0
    %3808 = vmatpush2.msra.mxu0 0.0
    %3809 = vmatprep.subr.mxu0 0.0
    %3810 = vmatpush2.msra.mxu0 0.0
    %3811 = vmatprep.subr.mxu0 0.0
    %3812 = vmatpush2.msra.mxu0 0.0
    %3813 = vmatprep.subr.mxu0 0.0
    %3814 = vmatpush2.msra.mxu0 0.0
    %3815 = vmatprep.subr.mxu0 0.0
    %3816 = vmatpush2.msra.mxu0 0.0
    %3817 = vmatprep.subr.mxu0 0.0
    %3818 = vmatpush2.msra.mxu0 0.0
    %3819 = vmatprep.subr.mxu0 0.0
    %3820 = vmatpush2.msra.mxu0 0.0
    %3821 = vmatprep.subr.mxu0 0.0
    %3822 = vmatpush2.msra.mxu0 0.0
    %3823 = vmatprep.subr.mxu0 0.0
    %3824 = vmatpush2.msra.mxu0 0.0
    %3825 = vmatprep.subr.mxu0 0.0
    %3826 = vmatpush2.msra.mxu0 0.0
    %3827 = vmatprep.subr.mxu0 0.0
    %3828 = vmatpush2.msra.mxu0 0.0
    %3829 = vmatprep.mubr.f32.mxu0 0.0
    %v3830 = vand.u32 %v2601, 4294901760
    %3831 = vmatmul.mubr.f32.gmra.mxu0 %v3830
    %v3832 = vpop.f32.mrf.mxu0
    %v3833 = vadd.f32 %v3656, %v3832
    %v3834 = vpop.f32.mrf.mxu0
    %3835 = vmatprep.mubr.f32.mxu0 0.0
    %v3836 = vand.u32 %v2602, 4294901760
    %3837 = vmatmul.mubr.f32.gmra.mxu0 %v3836
    %v3838 = vpop.f32.mrf.mxu0
    %v3839 = vadd.f32 %v3662, %v3838
    %v3840 = vpop.f32.mrf.mxu0
    %3841 = vmatprep.mubr.f32.mxu0 0.0
    %v3842 = vand.u32 %v2603, 4294901760
    %3843 = vmatmul.mubr.f32.gmra.mxu0 %v3842
    %v3844 = vpop.f32.mrf.mxu0
    %v3845 = vadd.f32 %v3668, %v3844
    %v3846 = vpop.f32.mrf.mxu0
    %3847 = vmatprep.mubr.f32.mxu0 0.0
    %v3848 = vand.u32 %v2604, 4294901760
    %3849 = vmatmul.mubr.f32.gmra.mxu0 %v3848
    %v3850 = vpop.f32.mrf.mxu0
    %v3851 = vadd.f32 %v3674, %v3850
    %v3852 = vpop.f32.mrf.mxu0
    %3853 = vmatprep.mubr.f32.mxu0 0.0
    %v3854 = vand.u32 %v2605, 4294901760
    %3855 = vmatmul.mubr.f32.gmra.mxu0 %v3854
    %v3856 = vpop.f32.mrf.mxu0
    %v3857 = vadd.f32 %v3680, %v3856
    %v3858 = vpop.f32.mrf.mxu0
    %3859 = vmatprep.mubr.f32.mxu0 0.0
    %v3860 = vand.u32 %v2606, 4294901760
    %3861 = vmatmul.mubr.f32.gmra.mxu0 %v3860
    %v3862 = vpop.f32.mrf.mxu0
    %v3863 = vadd.f32 %v3686, %v3862
    %v3864 = vpop.f32.mrf.mxu0
    %3865 = vmatprep.mubr.f32.mxu0 0.0
    %v3866 = vand.u32 %v2607, 4294901760
    %3867 = vmatmul.mubr.f32.gmra.mxu0 %v3866
    %v3868 = vpop.f32.mrf.mxu0
    %v3869 = vadd.f32 %v3692, %v3868
    %v3870 = vpop.f32.mrf.mxu0
    %3871 = vmatprep.mubr.f32.mxu0 0.0
    %v3872 = vand.u32 %v2608, 4294901760
    %3873 = vmatmul.mubr.f32.gmra.mxu0 %v3872
    %v3874 = vpop.f32.mrf.mxu0
    %v3875 = vadd.f32 %v3698, %v3874
    %v3876 = vpop.f32.mrf.mxu0
    %3877 = vmatprep.mubr.f32.mxu0 0.0
    %v3878 = vand.u32 %v2609, 4294901760
    %3879 = vmatmul.mubr.f32.gmra.mxu0 %v3878
    %v3880 = vpop.f32.mrf.mxu0
    %v3881 = vadd.f32 %v3704, %v3880
    %v3882 = vpop.f32.mrf.mxu0
    %3883 = vmatprep.mubr.f32.mxu0 0.0
    %v3884 = vand.u32 %v2610, 4294901760
    %3885 = vmatmul.mubr.f32.gmra.mxu0 %v3884
    %v3886 = vpop.f32.mrf.mxu0
    %v3887 = vadd.f32 %v3710, %v3886
    %v3888 = vpop.f32.mrf.mxu0
    %3889 = vmatprep.mubr.f32.mxu0 0.0
    %v3890 = vand.u32 %v2611, 4294901760
    %3891 = vmatmul.mubr.f32.gmra.mxu0 %v3890
    %v3892 = vpop.f32.mrf.mxu0
    %v3893 = vadd.f32 %v3716, %v3892
    %v3894 = vpop.f32.mrf.mxu0
    %3895 = vmatprep.mubr.f32.mxu0 0.0
    %v3896 = vand.u32 %v2612, 4294901760
    %3897 = vmatmul.mubr.f32.gmra.mxu0 %v3896
    %v3898 = vpop.f32.mrf.mxu0
    %v3899 = vadd.f32 %v3722, %v3898
    %v3900 = vpop.f32.mrf.mxu0
    %3901 = vmatprep.mubr.f32.mxu0 0.0
    %v3902 = vand.u32 %v2613, 4294901760
    %3903 = vmatmul.mubr.f32.gmra.mxu0 %v3902
    %v3904 = vpop.f32.mrf.mxu0
    %v3905 = vadd.f32 %v3728, %v3904
    %v3906 = vpop.f32.mrf.mxu0
    %3907 = vmatprep.mubr.f32.mxu0 0.0
    %v3908 = vand.u32 %v2614, 4294901760
    %3909 = vmatmul.mubr.f32.gmra.mxu0 %v3908
    %v3910 = vpop.f32.mrf.mxu0
    %v3911 = vadd.f32 %v3734, %v3910
    %v3912 = vpop.f32.mrf.mxu0
    %3913 = vmatprep.mubr.f32.mxu0 0.0
    %v3914 = vand.u32 %v2615, 4294901760
    %3915 = vmatmul.mubr.f32.gmra.mxu0 %v3914
    %v3916 = vpop.f32.mrf.mxu0
    %v3917 = vadd.f32 %v3740, %v3916
    %v3918 = vpop.f32.mrf.mxu0
    %3919 = vmatprep.mubr.f32.mxu0 0.0
    %v3920 = vand.u32 %v2616, 4294901760
    %3921 = vmatmul.mubr.f32.gmra.mxu0 %v3920
    %v3922 = vpop.f32.mrf.mxu0
    %v3923 = vadd.f32 %v3746, %v3922
    %v3924 = vpop.f32.mrf.mxu0
    %3925 = vdwg.mxu0
    %v3926 = vtanh.pop %v3833
    %v3927 = vtanh.pop %v3839
    %v3928 = vtanh.pop %v3845
    %v3929 = vtanh.pop %v3851
    %v3930 = vtanh.pop %v3857
    %v3931 = vtanh.pop %v3863
    %v3932 = vtanh.pop %v3869
    %v3933 = vtanh.pop %v3875
    %v3934 = vtanh.pop %v3881
    %v3935 = vtanh.pop %v3887
    %v3936 = vtanh.pop %v3893
    %v3937 = vtanh.pop %v3899
    %v3938 = vtanh.pop %v3905
    %v3939 = vtanh.pop %v3911
    %v3940 = vtanh.pop %v3917
    %v3941 = vtanh.pop %v3923
    %v3942 = vld [vmem:[%s6] sm:$0xff]
    %v3943 = vld [vmem:[%s7] sm:$0xff]
    %3945 = vset.pattern.permute.xlu0 0
    %3946 = vperm.xlu0 %3945, %v3943
    %v3947 = vpop.permute.xlu0 %3946
    %3949 = vmatprep.subr.mxu0 0.0
    %v3950 = vand.u32 %v3941, 4294901760
    %3951 = vmatpush1.xpose.msra.mxu0 %v3950
    %3952 = vmatprep.subr.mxu0 0.0
    %v3953 = vand.u32 %v3940, 4294901760
    %3954 = vmatpush1.xpose.msra.mxu0 %v3953
    %3955 = vmatprep.subr.mxu0 0.0
    %v3956 = vand.u32 %v3939, 4294901760
    %3957 = vmatpush1.xpose.msra.mxu0 %v3956
    %3958 = vmatprep.subr.mxu0 0.0
    %v3959 = vand.u32 %v3938, 4294901760
    %3960 = vmatpush1.xpose.msra.mxu0 %v3959
    %3961 = vmatprep.subr.mxu0 0.0
    %v3962 = vand.u32 %v3937, 4294901760
    %3963 = vmatpush1.xpose.msra.mxu0 %v3962
    %3964 = vmatprep.subr.mxu0 0.0
    %v3965 = vand.u32 %v3936, 4294901760
    %3966 = vmatpush1.xpose.msra.mxu0 %v3965
    %3967 = vmatprep.subr.mxu0 0.0
    %v3968 = vand.u32 %v3935, 4294901760
    %3969 = vmatpush1.xpose.msra.mxu0 %v3968
    %3970 = vmatprep.subr.mxu0 0.0
    %v3971 = vand.u32 %v3934, 4294901760
    %3972 = vmatpush1.xpose.msra.mxu0 %v3971
    %3973 = vmatprep.subr.mxu0 0.0
    %v3974 = vand.u32 %v3933, 4294901760
    %3975 = vmatpush1.xpose.msra.mxu0 %v3974
    %3976 = vmatprep.subr.mxu0 0.0
    %v3977 = vand.u32 %v3932, 4294901760
    %3978 = vmatpush1.xpose.msra.mxu0 %v3977
    %3979 = vmatprep.subr.mxu0 0.0
    %v3980 = vand.u32 %v3931, 4294901760
    %3981 = vmatpush1.xpose.msra.mxu0 %v3980
    %3982 = vmatprep.subr.mxu0 0.0
    %v3983 = vand.u32 %v3930, 4294901760
    %3984 = vmatpush1.xpose.msra.mxu0 %v3983
    %3985 = vmatprep.subr.mxu0 0.0
    %v3986 = vand.u32 %v3929, 4294901760
    %3987 = vmatpush1.xpose.msra.mxu0 %v3986
    %3988 = vmatprep.subr.mxu0 0.0
    %v3989 = vand.u32 %v3928, 4294901760
    %3990 = vmatpush1.xpose.msra.mxu0 %v3989
    %3991 = vmatprep.subr.mxu0 0.0
    %v3992 = vand.u32 %v3927, 4294901760
    %3993 = vmatpush1.xpose.msra.mxu0 %v3992
    %3994 = vmatprep.subr.mxu0 0.0
    %v3995 = vand.u32 %v3926, 4294901760
    %3996 = vmatpush1.xpose.msra.mxu0 %v3995
    %3997 = vmatprep.subr.mxu0 0.0
    %3998 = vmatpush2.xpose.msra.mxu0 0.0
    %3999 = vmatprep.subr.mxu0 0.0
    %4000 = vmatpush2.xpose.msra.mxu0 0.0
    %4001 = vmatprep.subr.mxu0 0.0
    %4002 = vmatpush2.xpose.msra.mxu0 0.0
    %4003 = vmatprep.subr.mxu0 0.0
    %4004 = vmatpush2.xpose.msra.mxu0 0.0
    %4005 = vmatprep.subr.mxu0 0.0
    %4006 = vmatpush2.xpose.msra.mxu0 0.0
    %4007 = vmatprep.subr.mxu0 0.0
    %4008 = vmatpush2.xpose.msra.mxu0 0.0
    %4009 = vmatprep.subr.mxu0 0.0
    %4010 = vmatpush2.xpose.msra.mxu0 0.0
    %4011 = vmatprep.subr.mxu0 0.0
    %4012 = vmatpush2.xpose.msra.mxu0 0.0
    %4013 = vmatprep.subr.mxu0 0.0
    %4014 = vmatpush2.xpose.msra.mxu0 0.0
    %4015 = vmatprep.subr.mxu0 0.0
    %4016 = vmatpush2.xpose.msra.mxu0 0.0
    %4017 = vmatprep.subr.mxu0 0.0
    %4018 = vmatpush2.xpose.msra.mxu0 0.0
    %4019 = vmatprep.subr.mxu0 0.0
    %4020 = vmatpush2.xpose.msra.mxu0 0.0
    %4021 = vmatprep.subr.mxu0 0.0
    %4022 = vmatpush2.xpose.msra.mxu0 0.0
    %4023 = vmatprep.subr.mxu0 0.0
    %4024 = vmatpush2.xpose.msra.mxu0 0.0
    %4025 = vmatprep.subr.mxu0 0.0
    %4026 = vmatpush2.xpose.msra.mxu0 0.0
    %4027 = vmatprep.subr.mxu0 0.0
    %4028 = vmatpush2.xpose.msra.mxu0 0.0
    %4029 = vmatprep.mubr.f32.mxu0 0.0
    %v4030 = vand.u32 %v3942, 4294901760
    %v4031 = vsub.f32 %v3942, %v4030
    %v4032 = vand.u32 %v4031, 4294901760
    %v4033 = vsub.f32 %v4031, %v4032
    %v4034 = vand.u32 %v4033, 4294901760
    %4035 = vmatmul.mubr.f32.gmra.mxu0 %v4034
    %v4036 = vpop.f32.mrf.mxu0
    %v4037 = vadd.f32 %v3947, %v4036
    %v4038 = vpop.f32.mrf.mxu0
    %4039 = vdwg.mxu0
    %4040 = vmatprep.subr.mxu0 0.0
    %v4041 = vand.u32 %v3941, 4294901760
    %v4042 = vsub.f32 %v3941, %v4041
    %v4043 = vand.u32 %v4042, 4294901760
    %v4044 = vsub.f32 %v4042, %v4043
    %v4045 = vand.u32 %v4044, 4294901760
    %4046 = vmatpush1.xpose.msra.mxu0 %v4045
    %4047 = vmatprep.subr.mxu0 0.0
    %v4048 = vand.u32 %v3940, 4294901760
    %v4049 = vsub.f32 %v3940, %v4048
    %v4050 = vand.u32 %v4049, 4294901760
    %v4051 = vsub.f32 %v4049, %v4050
    %v4052 = vand.u32 %v4051, 4294901760
    %4053 = vmatpush1.xpose.msra.mxu0 %v4052
    %4054 = vmatprep.subr.mxu0 0.0
    %v4055 = vand.u32 %v3939, 4294901760
    %v4056 = vsub.f32 %v3939, %v4055
    %v4057 = vand.u32 %v4056, 4294901760
    %v4058 = vsub.f32 %v4056, %v4057
    %v4059 = vand.u32 %v4058, 4294901760
    %4060 = vmatpush1.xpose.msra.mxu0 %v4059
    %4061 = vmatprep.subr.mxu0 0.0
    %v4062 = vand.u32 %v3938, 4294901760
    %v4063 = vsub.f32 %v3938, %v4062
    %v4064 = vand.u32 %v4063, 4294901760
    %v4065 = vsub.f32 %v4063, %v4064
    %v4066 = vand.u32 %v4065, 4294901760
    %4067 = vmatpush1.xpose.msra.mxu0 %v4066
    %4068 = vmatprep.subr.mxu0 0.0
    %v4069 = vand.u32 %v3937, 4294901760
    %v4070 = vsub.f32 %v3937, %v4069
    %v4071 = vand.u32 %v4070, 4294901760
    %v4072 = vsub.f32 %v4070, %v4071
    %v4073 = vand.u32 %v4072, 4294901760
    %4074 = vmatpush1.xpose.msra.mxu0 %v4073
    %4075 = vmatprep.subr.mxu0 0.0
    %v4076 = vand.u32 %v3936, 4294901760
    %v4077 = vsub.f32 %v3936, %v4076
    %v4078 = vand.u32 %v4077, 4294901760
    %v4079 = vsub.f32 %v4077, %v4078
    %v4080 = vand.u32 %v4079, 4294901760
    %4081 = vmatpush1.xpose.msra.mxu0 %v4080
    %4082 = vmatprep.subr.mxu0 0.0
    %v4083 = vand.u32 %v3935, 4294901760
    %v4084 = vsub.f32 %v3935, %v4083
    %v4085 = vand.u32 %v4084, 4294901760
    %v4086 = vsub.f32 %v4084, %v4085
    %v4087 = vand.u32 %v4086, 4294901760
    %4088 = vmatpush1.xpose.msra.mxu0 %v4087
    %4089 = vmatprep.subr.mxu0 0.0
    %v4090 = vand.u32 %v3934, 4294901760
    %v4091 = vsub.f32 %v3934, %v4090
    %v4092 = vand.u32 %v4091, 4294901760
    %v4093 = vsub.f32 %v4091, %v4092
    %v4094 = vand.u32 %v4093, 4294901760
    %4095 = vmatpush1.xpose.msra.mxu0 %v4094
    %4096 = vmatprep.subr.mxu0 0.0
    %v4097 = vand.u32 %v3933, 4294901760
    %v4098 = vsub.f32 %v3933, %v4097
    %v4099 = vand.u32 %v4098, 4294901760
    %v4100 = vsub.f32 %v4098, %v4099
    %v4101 = vand.u32 %v4100, 4294901760
    %4102 = vmatpush1.xpose.msra.mxu0 %v4101
    %4103 = vmatprep.subr.mxu0 0.0
    %v4104 = vand.u32 %v3932, 4294901760
    %v4105 = vsub.f32 %v3932, %v4104
    %v4106 = vand.u32 %v4105, 4294901760
    %v4107 = vsub.f32 %v4105, %v4106
    %v4108 = vand.u32 %v4107, 4294901760
    %4109 = vmatpush1.xpose.msra.mxu0 %v4108
    %4110 = vmatprep.subr.mxu0 0.0
    %v4111 = vand.u32 %v3931, 4294901760
    %v4112 = vsub.f32 %v3931, %v4111
    %v4113 = vand.u32 %v4112, 4294901760
    %v4114 = vsub.f32 %v4112, %v4113
    %v4115 = vand.u32 %v4114, 4294901760
    %4116 = vmatpush1.xpose.msra.mxu0 %v4115
    %4117 = vmatprep.subr.mxu0 0.0
    %v4118 = vand.u32 %v3930, 4294901760
    %v4119 = vsub.f32 %v3930, %v4118
    %v4120 = vand.u32 %v4119, 4294901760
    %v4121 = vsub.f32 %v4119, %v4120
    %v4122 = vand.u32 %v4121, 4294901760
    %4123 = vmatpush1.xpose.msra.mxu0 %v4122
    %4124 = vmatprep.subr.mxu0 0.0
    %v4125 = vand.u32 %v3929, 4294901760
    %v4126 = vsub.f32 %v3929, %v4125
    %v4127 = vand.u32 %v4126, 4294901760
    %v4128 = vsub.f32 %v4126, %v4127
    %v4129 = vand.u32 %v4128, 4294901760
    %4130 = vmatpush1.xpose.msra.mxu0 %v4129
    %4131 = vmatprep.subr.mxu0 0.0
    %v4132 = vand.u32 %v3928, 4294901760
    %v4133 = vsub.f32 %v3928, %v4132
    %v4134 = vand.u32 %v4133, 4294901760
    %v4135 = vsub.f32 %v4133, %v4134
    %v4136 = vand.u32 %v4135, 4294901760
    %4137 = vmatpush1.xpose.msra.mxu0 %v4136
    %4138 = vmatprep.subr.mxu0 0.0
    %v4139 = vand.u32 %v3927, 4294901760
    %v4140 = vsub.f32 %v3927, %v4139
    %v4141 = vand.u32 %v4140, 4294901760
    %v4142 = vsub.f32 %v4140, %v4141
    %v4143 = vand.u32 %v4142, 4294901760
    %4144 = vmatpush1.xpose.msra.mxu0 %v4143
    %4145 = vmatprep.subr.mxu0 0.0
    %v4146 = vand.u32 %v3926, 4294901760
    %v4147 = vsub.f32 %v3926, %v4146
    %v4148 = vand.u32 %v4147, 4294901760
    %v4149 = vsub.f32 %v4147, %v4148
    %v4150 = vand.u32 %v4149, 4294901760
    %4151 = vmatpush1.xpose.msra.mxu0 %v4150
    %4152 = vmatprep.subr.mxu0 0.0
    %4153 = vmatpush2.xpose.msra.mxu0 0.0
    %4154 = vmatprep.subr.mxu0 0.0
    %4155 = vmatpush2.xpose.msra.mxu0 0.0
    %4156 = vmatprep.subr.mxu0 0.0
    %4157 = vmatpush2.xpose.msra.mxu0 0.0
    %4158 = vmatprep.subr.mxu0 0.0
    %4159 = vmatpush2.xpose.msra.mxu0 0.0
    %4160 = vmatprep.subr.mxu0 0.0
    %4161 = vmatpush2.xpose.msra.mxu0 0.0
    %4162 = vmatprep.subr.mxu0 0.0
    %4163 = vmatpush2.xpose.msra.mxu0 0.0
    %4164 = vmatprep.subr.mxu0 0.0
    %4165 = vmatpush2.xpose.msra.mxu0 0.0
    %4166 = vmatprep.subr.mxu0 0.0
    %4167 = vmatpush2.xpose.msra.mxu0 0.0
    %4168 = vmatprep.subr.mxu0 0.0
    %4169 = vmatpush2.xpose.msra.mxu0 0.0
    %4170 = vmatprep.subr.mxu0 0.0
    %4171 = vmatpush2.xpose.msra.mxu0 0.0
    %4172 = vmatprep.subr.mxu0 0.0
    %4173 = vmatpush2.xpose.msra.mxu0 0.0
    %4174 = vmatprep.subr.mxu0 0.0
    %4175 = vmatpush2.xpose.msra.mxu0 0.0
    %4176 = vmatprep.subr.mxu0 0.0
    %4177 = vmatpush2.xpose.msra.mxu0 0.0
    %4178 = vmatprep.subr.mxu0 0.0
    %4179 = vmatpush2.xpose.msra.mxu0 0.0
    %4180 = vmatprep.subr.mxu0 0.0
    %4181 = vmatpush2.xpose.msra.mxu0 0.0
    %4182 = vmatprep.subr.mxu0 0.0
    %4183 = vmatpush2.xpose.msra.mxu0 0.0
    %4184 = vmatprep.mubr.f32.mxu0 0.0
    %v4185 = vand.u32 %v3942, 4294901760
    %4186 = vmatmul.mubr.f32.gmra.mxu0 %v4185
    %v4187 = vpop.f32.mrf.mxu0
    %v4188 = vadd.f32 %v4037, %v4187
    %v4189 = vpop.f32.mrf.mxu0
    %4190 = vdwg.mxu0
    %4191 = vmatprep.subr.mxu0 0.0
    %v4192 = vand.u32 %v3941, 4294901760
    %v4193 = vsub.f32 %v3941, %v4192
    %4194 = vmatpush1.xpose.msra.mxu0 %v4193
    %4195 = vmatprep.subr.mxu0 0.0
    %v4196 = vand.u32 %v3940, 4294901760
    %v4197 = vsub.f32 %v3940, %v4196
    %4198 = vmatpush1.xpose.msra.mxu0 %v4197
    %4199 = vmatprep.subr.mxu0 0.0
    %v4200 = vand.u32 %v3939, 4294901760
    %v4201 = vsub.f32 %v3939, %v4200
    %4202 = vmatpush1.xpose.msra.mxu0 %v4201
    %4203 = vmatprep.subr.mxu0 0.0
    %v4204 = vand.u32 %v3938, 4294901760
    %v4205 = vsub.f32 %v3938, %v4204
    %4206 = vmatpush1.xpose.msra.mxu0 %v4205
    %4207 = vmatprep.subr.mxu0 0.0
    %v4208 = vand.u32 %v3937, 4294901760
    %v4209 = vsub.f32 %v3937, %v4208
    %4210 = vmatpush1.xpose.msra.mxu0 %v4209
    %4211 = vmatprep.subr.mxu0 0.0
    %v4212 = vand.u32 %v3936, 4294901760
    %v4213 = vsub.f32 %v3936, %v4212
    %4214 = vmatpush1.xpose.msra.mxu0 %v4213
    %4215 = vmatprep.subr.mxu0 0.0
    %v4216 = vand.u32 %v3935, 4294901760
    %v4217 = vsub.f32 %v3935, %v4216
    %4218 = vmatpush1.xpose.msra.mxu0 %v4217
    %4219 = vmatprep.subr.mxu0 0.0
    %v4220 = vand.u32 %v3934, 4294901760
    %v4221 = vsub.f32 %v3934, %v4220
    %4222 = vmatpush1.xpose.msra.mxu0 %v4221
    %4223 = vmatprep.subr.mxu0 0.0
    %v4224 = vand.u32 %v3933, 4294901760
    %v4225 = vsub.f32 %v3933, %v4224
    %4226 = vmatpush1.xpose.msra.mxu0 %v4225
    %4227 = vmatprep.subr.mxu0 0.0
    %v4228 = vand.u32 %v3932, 4294901760
    %v4229 = vsub.f32 %v3932, %v4228
    %4230 = vmatpush1.xpose.msra.mxu0 %v4229
    %4231 = vmatprep.subr.mxu0 0.0
    %v4232 = vand.u32 %v3931, 4294901760
    %v4233 = vsub.f32 %v3931, %v4232
    %4234 = vmatpush1.xpose.msra.mxu0 %v4233
    %4235 = vmatprep.subr.mxu0 0.0
    %v4236 = vand.u32 %v3930, 4294901760
    %v4237 = vsub.f32 %v3930, %v4236
    %4238 = vmatpush1.xpose.msra.mxu0 %v4237
    %4239 = vmatprep.subr.mxu0 0.0
    %v4240 = vand.u32 %v3929, 4294901760
    %v4241 = vsub.f32 %v3929, %v4240
    %4242 = vmatpush1.xpose.msra.mxu0 %v4241
    %4243 = vmatprep.subr.mxu0 0.0
    %v4244 = vand.u32 %v3928, 4294901760
    %v4245 = vsub.f32 %v3928, %v4244
    %4246 = vmatpush1.xpose.msra.mxu0 %v4245
    %4247 = vmatprep.subr.mxu0 0.0
    %v4248 = vand.u32 %v3927, 4294901760
    %v4249 = vsub.f32 %v3927, %v4248
    %4250 = vmatpush1.xpose.msra.mxu0 %v4249
    %4251 = vmatprep.subr.mxu0 0.0
    %v4252 = vand.u32 %v3926, 4294901760
    %v4253 = vsub.f32 %v3926, %v4252
    %4254 = vmatpush1.xpose.msra.mxu0 %v4253
    %4255 = vmatprep.subr.mxu0 0.0
    %4256 = vmatpush2.xpose.msra.mxu0 0.0
    %4257 = vmatprep.subr.mxu0 0.0
    %4258 = vmatpush2.xpose.msra.mxu0 0.0
    %4259 = vmatprep.subr.mxu0 0.0
    %4260 = vmatpush2.xpose.msra.mxu0 0.0
    %4261 = vmatprep.subr.mxu0 0.0
    %4262 = vmatpush2.xpose.msra.mxu0 0.0
    %4263 = vmatprep.subr.mxu0 0.0
    %4264 = vmatpush2.xpose.msra.mxu0 0.0
    %4265 = vmatprep.subr.mxu0 0.0
    %4266 = vmatpush2.xpose.msra.mxu0 0.0
    %4267 = vmatprep.subr.mxu0 0.0
    %4268 = vmatpush2.xpose.msra.mxu0 0.0
    %4269 = vmatprep.subr.mxu0 0.0
    %4270 = vmatpush2.xpose.msra.mxu0 0.0
    %4271 = vmatprep.subr.mxu0 0.0
    %4272 = vmatpush2.xpose.msra.mxu0 0.0
    %4273 = vmatprep.subr.mxu0 0.0
    %4274 = vmatpush2.xpose.msra.mxu0 0.0
    %4275 = vmatprep.subr.mxu0 0.0
    %4276 = vmatpush2.xpose.msra.mxu0 0.0
    %4277 = vmatprep.subr.mxu0 0.0
    %4278 = vmatpush2.xpose.msra.mxu0 0.0
    %4279 = vmatprep.subr.mxu0 0.0
    %4280 = vmatpush2.xpose.msra.mxu0 0.0
    %4281 = vmatprep.subr.mxu0 0.0
    %4282 = vmatpush2.xpose.msra.mxu0 0.0
    %4283 = vmatprep.subr.mxu0 0.0
    %4284 = vmatpush2.xpose.msra.mxu0 0.0
    %4285 = vmatprep.subr.mxu0 0.0
    %4286 = vmatpush2.xpose.msra.mxu0 0.0
    %4287 = vmatprep.mubr.f32.mxu0 0.0
    %v4288 = vand.u32 %v3942, 4294901760
    %v4289 = vsub.f32 %v3942, %v4288
    %4290 = vmatmul.mubr.f32.gmra.mxu0 %v4289
    %v4291 = vpop.f32.mrf.mxu0
    %v4292 = vadd.f32 %v4188, %v4291
    %v4293 = vpop.f32.mrf.mxu0
    %4294 = vdwg.mxu0
    %4295 = vmatprep.subr.mxu0 0.0
    %v4296 = vand.u32 %v3941, 4294901760
    %4297 = vmatpush1.xpose.msra.mxu0 %v4296
    %4298 = vmatprep.subr.mxu0 0.0
    %v4299 = vand.u32 %v3940, 4294901760
    %4300 = vmatpush1.xpose.msra.mxu0 %v4299
    %4301 = vmatprep.subr.mxu0 0.0
    %v4302 = vand.u32 %v3939, 4294901760
    %4303 = vmatpush1.xpose.msra.mxu0 %v4302
    %4304 = vmatprep.subr.mxu0 0.0
    %v4305 = vand.u32 %v3938, 4294901760
    %4306 = vmatpush1.xpose.msra.mxu0 %v4305
    %4307 = vmatprep.subr.mxu0 0.0
    %v4308 = vand.u32 %v3937, 4294901760
    %4309 = vmatpush1.xpose.msra.mxu0 %v4308
    %4310 = vmatprep.subr.mxu0 0.0
    %v4311 = vand.u32 %v3936, 4294901760
    %4312 = vmatpush1.xpose.msra.mxu0 %v4311
    %4313 = vmatprep.subr.mxu0 0.0
    %v4314 = vand.u32 %v3935, 4294901760
    %4315 = vmatpush1.xpose.msra.mxu0 %v4314
    %4316 = vmatprep.subr.mxu0 0.0
    %v4317 = vand.u32 %v3934, 4294901760
    %4318 = vmatpush1.xpose.msra.mxu0 %v4317
    %4319 = vmatprep.subr.mxu0 0.0
    %v4320 = vand.u32 %v3933, 4294901760
    %4321 = vmatpush1.xpose.msra.mxu0 %v4320
    %4322 = vmatprep.subr.mxu0 0.0
    %v4323 = vand.u32 %v3932, 4294901760
    %4324 = vmatpush1.xpose.msra.mxu0 %v4323
    %4325 = vmatprep.subr.mxu0 0.0
    %v4326 = vand.u32 %v3931, 4294901760
    %4327 = vmatpush1.xpose.msra.mxu0 %v4326
    %4328 = vmatprep.subr.mxu0 0.0
    %v4329 = vand.u32 %v3930, 4294901760
    %4330 = vmatpush1.xpose.msra.mxu0 %v4329
    %4331 = vmatprep.subr.mxu0 0.0
    %v4332 = vand.u32 %v3929, 4294901760
    %4333 = vmatpush1.xpose.msra.mxu0 %v4332
    %4334 = vmatprep.subr.mxu0 0.0
    %v4335 = vand.u32 %v3928, 4294901760
    %4336 = vmatpush1.xpose.msra.mxu0 %v4335
    %4337 = vmatprep.subr.mxu0 0.0
    %v4338 = vand.u32 %v3927, 4294901760
    %4339 = vmatpush1.xpose.msra.mxu0 %v4338
    %4340 = vmatprep.subr.mxu0 0.0
    %v4341 = vand.u32 %v3926, 4294901760
    %4342 = vmatpush1.xpose.msra.mxu0 %v4341
    %4343 = vmatprep.subr.mxu0 0.0
    %4344 = vmatpush2.xpose.msra.mxu0 0.0
    %4345 = vmatprep.subr.mxu0 0.0
    %4346 = vmatpush2.xpose.msra.mxu0 0.0
    %4347 = vmatprep.subr.mxu0 0.0
    %4348 = vmatpush2.xpose.msra.mxu0 0.0
    %4349 = vmatprep.subr.mxu0 0.0
    %4350 = vmatpush2.xpose.msra.mxu0 0.0
    %4351 = vmatprep.subr.mxu0 0.0
    %4352 = vmatpush2.xpose.msra.mxu0 0.0
    %4353 = vmatprep.subr.mxu0 0.0
    %4354 = vmatpush2.xpose.msra.mxu0 0.0
    %4355 = vmatprep.subr.mxu0 0.0
    %4356 = vmatpush2.xpose.msra.mxu0 0.0
    %4357 = vmatprep.subr.mxu0 0.0
    %4358 = vmatpush2.xpose.msra.mxu0 0.0
    %4359 = vmatprep.subr.mxu0 0.0
    %4360 = vmatpush2.xpose.msra.mxu0 0.0
    %4361 = vmatprep.subr.mxu0 0.0
    %4362 = vmatpush2.xpose.msra.mxu0 0.0
    %4363 = vmatprep.subr.mxu0 0.0
    %4364 = vmatpush2.xpose.msra.mxu0 0.0
    %4365 = vmatprep.subr.mxu0 0.0
    %4366 = vmatpush2.xpose.msra.mxu0 0.0
    %4367 = vmatprep.subr.mxu0 0.0
    %4368 = vmatpush2.xpose.msra.mxu0 0.0
    %4369 = vmatprep.subr.mxu0 0.0
    %4370 = vmatpush2.xpose.msra.mxu0 0.0
    %4371 = vmatprep.subr.mxu0 0.0
    %4372 = vmatpush2.xpose.msra.mxu0 0.0
    %4373 = vmatprep.subr.mxu0 0.0
    %4374 = vmatpush2.xpose.msra.mxu0 0.0
    %4375 = vmatprep.mubr.f32.mxu0 0.0
    %v4376 = vand.u32 %v3942, 4294901760
    %v4377 = vsub.f32 %v3942, %v4376
    %v4378 = vand.u32 %v4377, 4294901760
    %4379 = vmatmul.mubr.f32.gmra.mxu0 %v4378
    %v4380 = vpop.f32.mrf.mxu0
    %v4381 = vadd.f32 %v4292, %v4380
    %v4382 = vpop.f32.mrf.mxu0
    %4383 = vdwg.mxu0
    %4384 = vmatprep.subr.mxu0 0.0
    %v4385 = vand.u32 %v3941, 4294901760
    %v4386 = vsub.f32 %v3941, %v4385
    %v4387 = vand.u32 %v4386, 4294901760
    %4388 = vmatpush1.xpose.msra.mxu0 %v4387
    %4389 = vmatprep.subr.mxu0 0.0
    %v4390 = vand.u32 %v3940, 4294901760
    %v4391 = vsub.f32 %v3940, %v4390
    %v4392 = vand.u32 %v4391, 4294901760
    %4393 = vmatpush1.xpose.msra.mxu0 %v4392
    %4394 = vmatprep.subr.mxu0 0.0
    %v4395 = vand.u32 %v3939, 4294901760
    %v4396 = vsub.f32 %v3939, %v4395
    %v4397 = vand.u32 %v4396, 4294901760
    %4398 = vmatpush1.xpose.msra.mxu0 %v4397
    %4399 = vmatprep.subr.mxu0 0.0
    %v4400 = vand.u32 %v3938, 4294901760
    %v4401 = vsub.f32 %v3938, %v4400
    %v4402 = vand.u32 %v4401, 4294901760
    %4403 = vmatpush1.xpose.msra.mxu0 %v4402
    %4404 = vmatprep.subr.mxu0 0.0
    %v4405 = vand.u32 %v3937, 4294901760
    %v4406 = vsub.f32 %v3937, %v4405
    %v4407 = vand.u32 %v4406, 4294901760
    %4408 = vmatpush1.xpose.msra.mxu0 %v4407
    %4409 = vmatprep.subr.mxu0 0.0
    %v4410 = vand.u32 %v3936, 4294901760
    %v4411 = vsub.f32 %v3936, %v4410
    %v4412 = vand.u32 %v4411, 4294901760
    %4413 = vmatpush1.xpose.msra.mxu0 %v4412
    %4414 = vmatprep.subr.mxu0 0.0
    %v4415 = vand.u32 %v3935, 4294901760
    %v4416 = vsub.f32 %v3935, %v4415
    %v4417 = vand.u32 %v4416, 4294901760
    %4418 = vmatpush1.xpose.msra.mxu0 %v4417
    %4419 = vmatprep.subr.mxu0 0.0
    %v4420 = vand.u32 %v3934, 4294901760
    %v4421 = vsub.f32 %v3934, %v4420
    %v4422 = vand.u32 %v4421, 4294901760
    %4423 = vmatpush1.xpose.msra.mxu0 %v4422
    %4424 = vmatprep.subr.mxu0 0.0
    %v4425 = vand.u32 %v3933, 4294901760
    %v4426 = vsub.f32 %v3933, %v4425
    %v4427 = vand.u32 %v4426, 4294901760
    %4428 = vmatpush1.xpose.msra.mxu0 %v4427
    %4429 = vmatprep.subr.mxu0 0.0
    %v4430 = vand.u32 %v3932, 4294901760
    %v4431 = vsub.f32 %v3932, %v4430
    %v4432 = vand.u32 %v4431, 4294901760
    %4433 = vmatpush1.xpose.msra.mxu0 %v4432
    %4434 = vmatprep.subr.mxu0 0.0
    %v4435 = vand.u32 %v3931, 4294901760
    %v4436 = vsub.f32 %v3931, %v4435
    %v4437 = vand.u32 %v4436, 4294901760
    %4438 = vmatpush1.xpose.msra.mxu0 %v4437
    %4439 = vmatprep.subr.mxu0 0.0
    %v4440 = vand.u32 %v3930, 4294901760
    %v4441 = vsub.f32 %v3930, %v4440
    %v4442 = vand.u32 %v4441, 4294901760
    %4443 = vmatpush1.xpose.msra.mxu0 %v4442
    %4444 = vmatprep.subr.mxu0 0.0
    %v4445 = vand.u32 %v3929, 4294901760
    %v4446 = vsub.f32 %v3929, %v4445
    %v4447 = vand.u32 %v4446, 4294901760
    %4448 = vmatpush1.xpose.msra.mxu0 %v4447
    %4449 = vmatprep.subr.mxu0 0.0
    %v4450 = vand.u32 %v3928, 4294901760
    %v4451 = vsub.f32 %v3928, %v4450
    %v4452 = vand.u32 %v4451, 4294901760
    %4453 = vmatpush1.xpose.msra.mxu0 %v4452
    %4454 = vmatprep.subr.mxu0 0.0
    %v4455 = vand.u32 %v3927, 4294901760
    %v4456 = vsub.f32 %v3927, %v4455
    %v4457 = vand.u32 %v4456, 4294901760
    %4458 = vmatpush1.xpose.msra.mxu0 %v4457
    %4459 = vmatprep.subr.mxu0 0.0
    %v4460 = vand.u32 %v3926, 4294901760
    %v4461 = vsub.f32 %v3926, %v4460
    %v4462 = vand.u32 %v4461, 4294901760
    %4463 = vmatpush1.xpose.msra.mxu0 %v4462
    %4464 = vmatprep.subr.mxu0 0.0
    %4465 = vmatpush2.xpose.msra.mxu0 0.0
    %4466 = vmatprep.subr.mxu0 0.0
    %4467 = vmatpush2.xpose.msra.mxu0 0.0
    %4468 = vmatprep.subr.mxu0 0.0
    %4469 = vmatpush2.xpose.msra.mxu0 0.0
    %4470 = vmatprep.subr.mxu0 0.0
    %4471 = vmatpush2.xpose.msra.mxu0 0.0
    %4472 = vmatprep.subr.mxu0 0.0
    %4473 = vmatpush2.xpose.msra.mxu0 0.0
    %4474 = vmatprep.subr.mxu0 0.0
    %4475 = vmatpush2.xpose.msra.mxu0 0.0
    %4476 = vmatprep.subr.mxu0 0.0
    %4477 = vmatpush2.xpose.msra.mxu0 0.0
    %4478 = vmatprep.subr.mxu0 0.0
    %4479 = vmatpush2.xpose.msra.mxu0 0.0
    %4480 = vmatprep.subr.mxu0 0.0
    %4481 = vmatpush2.xpose.msra.mxu0 0.0
    %4482 = vmatprep.subr.mxu0 0.0
    %4483 = vmatpush2.xpose.msra.mxu0 0.0
    %4484 = vmatprep.subr.mxu0 0.0
    %4485 = vmatpush2.xpose.msra.mxu0 0.0
    %4486 = vmatprep.subr.mxu0 0.0
    %4487 = vmatpush2.xpose.msra.mxu0 0.0
    %4488 = vmatprep.subr.mxu0 0.0
    %4489 = vmatpush2.xpose.msra.mxu0 0.0
    %4490 = vmatprep.subr.mxu0 0.0
    %4491 = vmatpush2.xpose.msra.mxu0 0.0
    %4492 = vmatprep.subr.mxu0 0.0
    %4493 = vmatpush2.xpose.msra.mxu0 0.0
    %4494 = vmatprep.subr.mxu0 0.0
    %4495 = vmatpush2.xpose.msra.mxu0 0.0
    %4496 = vmatprep.mubr.f32.mxu0 0.0
    %v4497 = vand.u32 %v3942, 4294901760
    %4498 = vmatmul.mubr.f32.gmra.mxu0 %v4497
    %v4499 = vpop.f32.mrf.mxu0
    %v4500 = vadd.f32 %v4381, %v4499
    %v4501 = vpop.f32.mrf.mxu0
    %4502 = vdwg.mxu0
    %4503 = vmatprep.subr.mxu0 0.0
    %v4504 = vand.u32 %v3941, 4294901760
    %4505 = vmatpush1.xpose.msra.mxu0 %v4504
    %4506 = vmatprep.subr.mxu0 0.0
    %v4507 = vand.u32 %v3940, 4294901760
    %4508 = vmatpush1.xpose.msra.mxu0 %v4507
    %4509 = vmatprep.subr.mxu0 0.0
    %v4510 = vand.u32 %v3939, 4294901760
    %4511 = vmatpush1.xpose.msra.mxu0 %v4510
    %4512 = vmatprep.subr.mxu0 0.0
    %v4513 = vand.u32 %v3938, 4294901760
    %4514 = vmatpush1.xpose.msra.mxu0 %v4513
    %4515 = vmatprep.subr.mxu0 0.0
    %v4516 = vand.u32 %v3937, 4294901760
    %4517 = vmatpush1.xpose.msra.mxu0 %v4516
    %4518 = vmatprep.subr.mxu0 0.0
    %v4519 = vand.u32 %v3936, 4294901760
    %4520 = vmatpush1.xpose.msra.mxu0 %v4519
    %4521 = vmatprep.subr.mxu0 0.0
    %v4522 = vand.u32 %v3935, 4294901760
    %4523 = vmatpush1.xpose.msra.mxu0 %v4522
    %4524 = vmatprep.subr.mxu0 0.0
    %v4525 = vand.u32 %v3934, 4294901760
    %4526 = vmatpush1.xpose.msra.mxu0 %v4525
    %4527 = vmatprep.subr.mxu0 0.0
    %v4528 = vand.u32 %v3933, 4294901760
    %4529 = vmatpush1.xpose.msra.mxu0 %v4528
    %4530 = vmatprep.subr.mxu0 0.0
    %v4531 = vand.u32 %v3932, 4294901760
    %4532 = vmatpush1.xpose.msra.mxu0 %v4531
    %4533 = vmatprep.subr.mxu0 0.0
    %v4534 = vand.u32 %v3931, 4294901760
    %4535 = vmatpush1.xpose.msra.mxu0 %v4534
    %4536 = vmatprep.subr.mxu0 0.0
    %v4537 = vand.u32 %v3930, 4294901760
    %4538 = vmatpush1.xpose.msra.mxu0 %v4537
    %4539 = vmatprep.subr.mxu0 0.0
    %v4540 = vand.u32 %v3929, 4294901760
    %4541 = vmatpush1.xpose.msra.mxu0 %v4540
    %4542 = vmatprep.subr.mxu0 0.0
    %v4543 = vand.u32 %v3928, 4294901760
    %4544 = vmatpush1.xpose.msra.mxu0 %v4543
    %4545 = vmatprep.subr.mxu0 0.0
    %v4546 = vand.u32 %v3927, 4294901760
    %4547 = vmatpush1.xpose.msra.mxu0 %v4546
    %4548 = vmatprep.subr.mxu0 0.0
    %v4549 = vand.u32 %v3926, 4294901760
    %4550 = vmatpush1.xpose.msra.mxu0 %v4549
    %4551 = vmatprep.subr.mxu0 0.0
    %4552 = vmatpush2.xpose.msra.mxu0 0.0
    %4553 = vmatprep.subr.mxu0 0.0
    %4554 = vmatpush2.xpose.msra.mxu0 0.0
    %4555 = vmatprep.subr.mxu0 0.0
    %4556 = vmatpush2.xpose.msra.mxu0 0.0
    %4557 = vmatprep.subr.mxu0 0.0
    %4558 = vmatpush2.xpose.msra.mxu0 0.0
    %4559 = vmatprep.subr.mxu0 0.0
    %4560 = vmatpush2.xpose.msra.mxu0 0.0
    %4561 = vmatprep.subr.mxu0 0.0
    %4562 = vmatpush2.xpose.msra.mxu0 0.0
    %4563 = vmatprep.subr.mxu0 0.0
    %4564 = vmatpush2.xpose.msra.mxu0 0.0
    %4565 = vmatprep.subr.mxu0 0.0
    %4566 = vmatpush2.xpose.msra.mxu0 0.0
    %4567 = vmatprep.subr.mxu0 0.0
    %4568 = vmatpush2.xpose.msra.mxu0 0.0
    %4569 = vmatprep.subr.mxu0 0.0
    %4570 = vmatpush2.xpose.msra.mxu0 0.0
    %4571 = vmatprep.subr.mxu0 0.0
    %4572 = vmatpush2.xpose.msra.mxu0 0.0
    %4573 = vmatprep.subr.mxu0 0.0
    %4574 = vmatpush2.xpose.msra.mxu0 0.0
    %4575 = vmatprep.subr.mxu0 0.0
    %4576 = vmatpush2.xpose.msra.mxu0 0.0
    %4577 = vmatprep.subr.mxu0 0.0
    %4578 = vmatpush2.xpose.msra.mxu0 0.0
    %4579 = vmatprep.subr.mxu0 0.0
    %4580 = vmatpush2.xpose.msra.mxu0 0.0
    %4581 = vmatprep.subr.mxu0 0.0
    %4582 = vmatpush2.xpose.msra.mxu0 0.0
    %4583 = vmatprep.mubr.f32.mxu0 0.0
    %v4584 = vand.u32 %v3942, 4294901760
    %4585 = vmatmul.mubr.f32.gmra.mxu0 %v4584
    %v4586 = vpop.f32.mrf.mxu0
    %v4587 = vadd.f32 %v4500, %v4586
    %v4588 = vpop.f32.mrf.mxu0
    %4589 = vdwg.mxu0
    %4590 = vst [vmem:[%s8] sm:$0xff] %v4587
    // Predicated region
    $region50: #{_lambda_.1} parent=1 // pred_check
      _
    $region51: #{_lambda_.1} parent=1 // pred_check_branch
      %4592 = sbr.rel (0) target = $region53
    $region52: #{_lambda_.1} parent=1 // pred_region
      _
    $region53: #{_lambda_.1} parent=1 // pred_fallthru
      _
    // Predicated region
    $region54: #{_lambda_.1} parent=1 // pred_check
      _
    $region55: #{_lambda_.1} parent=1 // pred_check_branch
      %4594 = sbr.rel (0) target = $region57
    $region56: #{_lambda_.1} parent=1 // pred_region
      _
    $region57: #{_lambda_.1} parent=1 // pred_fallthru
      _
    %4595 = vsyncpa [#allocation3], 1
    %4596 = vsyncpa [#allocation5], 1
    %4597 = vsyncpa [#allocation8], 1

</llo_original>
